<compile_context>
chip_gen: v5e
topology: v5e:2x2
jax: 0.10.0
libtpu: 0.0.40
codegen_flags: <defaults>
</compile_context>

<pallas_src>
import functools

import jax
import jax.numpy as jnp
from jax.experimental import pallas as pl
from jax.experimental.pallas import tpu as pltpu


def _round_up(x, m):
    return (x + m - 1) // m * m


# CompilerParams name compat (older jax spells it TPUCompilerParams).
_CompilerParams = getattr(pltpu, "CompilerParams", None)
if _CompilerParams is None:  # pragma: no cover
    _CompilerParams = getattr(pltpu, "TPUCompilerParams")


def _vmem_limit_bytes(tt, bb, k, hp, last_layer):
    """Explicit scoped-VMEM budget sized from the actual block footprint."""
    four_hp = 4 * hp
    need = (
        2 * tt * bb * k * 2            # x block (bf16, double-buffered)
        + 2 * k * four_hp * 2          # W_ih (bf16)
        + 2 * hp * four_hp * 2         # W_hh (bf16)
        + 2 * four_hp * 4              # bias (f32)
        + tt * bb * four_hp * 4        # zx scratch (f32)
        + 2 * bb * hp * 4)             # h/c scratch (f32)
    need += 2 * (bb * hp * 4 if last_layer else tt * bb * hp * 2)   # out
    try:
        cap = int(pltpu.get_tpu_info().vmem_capacity_bytes)
    except Exception:  # older jax / no device info
        cap = 128 * 1024 * 1024
    budget = int(cap * 0.85)           # leave headroom (v7x has only 64 MiB)
    return int(min(budget, max(32 * 1024 * 1024, 2 * need)))


# ---------------------------------------------------------------------------
# Fused per-layer kernel: input projection + serial recurrence.
# ---------------------------------------------------------------------------
def _lstm_layer_kernel(x_ref, wih_ref, whh_ref, bias_ref, out_ref,
                       h_sc, c_sc, zx_sc, *, tt, hp, t_last, last_layer,
                       unroll):
    # zero initial (h, c) at the start of every batch block's time sweep
    @pl.when(pl.program_id(1) == 0)
    def _():
        h_sc[...] = jnp.zeros_like(h_sc)
        c_sc[...] = jnp.zeros_like(c_sc)

    bb = x_ref.shape[1]
    k = x_ref.shape[2]

    # Fused input projection for this (tt, bb) block: one MXU GEMM, bias
    # folded in once, f32 accumulation, kept on-chip in VMEM scratch.
    x_rows = x_ref[...].reshape(tt * bb, k)            # bf16
    zx_sc[...] = (
        jnp.dot(x_rows, wih_ref[...], preferred_element_type=jnp.float32)
        + bias_ref[...]).reshape(tt, bb, 4 * hp)

    t0 = pl.program_id(1) * tt

    def step(i, carry):
        h, c = carry                                    # f32, vreg-resident
        z = zx_sc[i] + jnp.dot(h.astype(whh_ref.dtype), whh_ref[...],
                               preferred_element_type=jnp.float32)
        # gate layout (reordered at prep time): [i | f | o] sigmoid, [g] tanh
        s = jax.nn.sigmoid(z[:, 0:3 * hp])              # one EUP slab dispatch
        g_g = jnp.tanh(z[:, 3 * hp:4 * hp])
        i_g = s[:, 0 * hp:1 * hp]
        f_g = s[:, 1 * hp:2 * hp]
        o_g = s[:, 2 * hp:3 * hp]
        c_new = f_g * c + i_g * g_g
        h_new = o_g * jnp.tanh(c_new)
        if last_layer:
            # only the final real timestep's hidden state is ever read
            @pl.when(t0 + i == t_last)
            def _():
                out_ref[...] = h_new.astype(out_ref.dtype)
        else:
            out_ref[i] = h_new.astype(out_ref.dtype)
        return (h_new, c_new)

    h_fin, c_fin = jax.lax.fori_loop(0, tt, step, (h_sc[...], c_sc[...]),
                                     unroll=unroll)
    h_sc[...] = h_fin
    c_sc[...] = c_fin


def _lstm_layer(x_tm, w_ih_t, w_hh_t, bias, *, tt, bb, t_last, last_layer):
    """One fused LSTM layer.

    x_tm: (Tp, Bp, K) bf16 time-major, tile-padded.
    Returns (Tp, Bp, Hp) bf16 (intermediate layer) or (Bp, Hp) f32 final
    hidden state (last layer).
    """
    tp, bp, k = x_tm.shape
    four_hp = w_hh_t.shape[1]
    hp = four_hp // 4
    assert tp % tt == 0 and bp % bb == 0
    nb, nt = bp // bb, tp // tt

    # vreg-pressure guard: only fully unroll the serial loop when one step's
    # z slab comfortably fits the 64x4KiB vreg file.
    unroll = (bb * four_hp * 4) <= 64 * 1024

    if last_layer:
        out_shape = jax.ShapeDtypeStruct((bp, hp), jnp.float32)
        out_spec = pl.BlockSpec((bb, hp), lambda b, t: (b, 0))
    else:
        out_shape = jax.ShapeDtypeStruct((tp, bp, hp), jnp.bfloat16)
        out_spec = pl.BlockSpec((tt, bb, hp), lambda b, t: (t, b, 0))

    return pl.pallas_call(
        functools.partial(_lstm_layer_kernel, tt=tt, hp=hp, t_last=t_last,
                          last_layer=last_layer, unroll=unroll),
        out_shape=out_shape,
        grid=(nb, nt),
        in_specs=[
            pl.BlockSpec((tt, bb, k), lambda b, t: (t, b, 0)),
            pl.BlockSpec((k, four_hp), lambda b, t: (0, 0)),
            pl.BlockSpec((hp, four_hp), lambda b, t: (0, 0)),
            pl.BlockSpec((1, four_hp), lambda b, t: (0, 0)),
        ],
        out_specs=out_spec,
        scratch_shapes=[
            pltpu.VMEM((bb, hp), jnp.float32),           # h carry
            pltpu.VMEM((bb, hp), jnp.float32),           # c carry
            pltpu.VMEM((tt, bb, four_hp), jnp.float32),  # fused zx block
        ],
        compiler_params=_CompilerParams(
            dimension_semantics=("parallel", "arbitrary"),
            vmem_limit_bytes=_vmem_limit_bytes(tt, bb, k, hp, last_layer)),
    )(x_tm, w_ih_t, w_hh_t, bias)


# ---------------------------------------------------------------------------
# Parameter init (mirrors TkStackedLSTM.initWeights) + kernel-layout prep.
# ---------------------------------------------------------------------------
def _xavier_uniform(key, shape):
    fan_out, fan_in = shape
    limit = (6.0 / (fan_in + fan_out)) ** 0.5
    return jax.random.uniform(key, shape, jnp.float32, -limit, limit)


def _orthogonal(key, shape):
    rows, cols = shape
    a = jax.random.normal(key, (max(rows, cols), min(rows, cols)), jnp.float32)
    q, r = jnp.linalg.qr(a)
    q = q * jnp.sign(jnp.diagonal(r))[None, :]
    if rows < cols:
        q = q.T
    return q[:rows, :cols]


def init_stacked_lstm_params(key, input_size, specification):
    """Raw per-layer parameters in the PyTorch nn.LSTM layout (i, f, g, o)."""
    params = []
    for i, hidden in enumerate(specification):
        in_size = input_size if i == 0 else specification[i - 1]
        key, k1, k2 = jax.random.split(key, 3)
        w_ih = _xavier_uniform(k1, (4 * hidden, in_size))      # weight_ih_l0
        w_hh = _orthogonal(k2, (4 * hidden, hidden))           # weight_hh_l0
        b_ih = jnp.zeros((4 * hidden,), jnp.float32).at[hidden:2 * hidden].set(1.0)
        b_hh = jnp.zeros((4 * hidden,), jnp.float32)
        params.append({"w_ih": w_ih, "w_hh": w_hh, "b_ih": b_ih, "b_hh": b_hh})
    return params


# PyTorch gate order along the 4H axis is (i, f, g, o); the kernel wants the
# three sigmoid gates contiguous, so destination blocks are (i, f, o, g).
_GATE_DEST = (0, 1, 3, 2)


def _place_gates(w_t, h, hp):
    """(K, 4h) -> (K, 4hp): source gate g's h cols go to block _GATE_DEST[g]."""
    k = w_t.shape[0]
    out = jnp.zeros((k, 4 * hp), w_t.dtype)
    for src in range(4):
        dst = _GATE_DEST[src]
        out = out.at[:, dst * hp:dst * hp + h].set(w_t[:, src * h:(src + 1) * h])
    return out


def prepare_kernel_params(raw_params, input_size, specification):
    """Pad H (per gate) to multiples of 128, reorder gates to [i|f|o|g], pad
    the K dim of inner-layer weights to the padded previous-layer width,
    pre-transpose to (K, 4Hp) and cast matmul operands to bf16 (bias f32)."""
    prepared = []
    for i, (p, hidden) in enumerate(zip(raw_params, specification)):
        hp = _round_up(hidden, 128)
        in_size = input_size if i == 0 else specification[i - 1]
        kp = in_size if i == 0 else _round_up(in_size, 128)

        w_ih_t = _place_gates(p["w_ih"].T, hidden, hp)           # (in_size, 4Hp)
        w_ih_t = jnp.pad(w_ih_t, ((0, kp - in_size), (0, 0)))    # (Kp, 4Hp)
        w_hh_t = _place_gates(p["w_hh"].T, hidden, hp)           # (hidden, 4Hp)
        w_hh_t = jnp.pad(w_hh_t, ((0, hp - hidden), (0, 0)))     # (Hp, 4Hp)
        bias = _place_gates((p["b_ih"] + p["b_hh"])[None, :], hidden, hp)

        prepared.append({
            "w_ih_t": w_ih_t.astype(jnp.bfloat16),
            "w_hh_t": w_hh_t.astype(jnp.bfloat16),
            "bias": bias.astype(jnp.float32),
        })
    return prepared


def _pick_bb(batch):
    """Batch block: fill MXU rows, but keep >= 2 batch blocks (so the
    'parallel' axis can span both v7x TensorCores) when batch allows it."""
    b8 = _round_up(batch, 8)
    if 16 <= b8 <= 512:
        return _round_up(-(-b8 // 2), 8)
    return min(b8, 256)


# ---------------------------------------------------------------------------
# Module forward: stacked LSTM, returns last layer's final hidden state.
# ---------------------------------------------------------------------------
@functools.partial(jax.jit, static_argnames=("hidden_last", "tt", "bb"))
def tk_stacked_lstm_forward(x_btf, kernel_params, *, hidden_last, tt, bb):
    """x_btf: (B, T, input_size), batch_first like the PyTorch module."""
    b, t, _ = x_btf.shape
    tp = _round_up(t, tt)
    bp = _round_up(b, bb)
    # single up-front transpose to time-major + zero-pad; bf16 activations
    x_tm = jnp.transpose(x_btf, (1, 0, 2)).astype(jnp.bfloat16)
    x_tm = jnp.pad(x_tm, ((0, tp - t), (0, bp - b), (0, 0)))

    y = x_tm
    n = len(kernel_params)
    for li, p in enumerate(kernel_params):
        y = _lstm_layer(y, p["w_ih_t"], p["w_hh_t"], p["bias"],
                        tt=tt, bb=bb, t_last=t - 1, last_layer=(li == n - 1))
    # last layer emits only the final real hidden state: (Bp, Hp) f32
    return y[:b, :hidden_last]


# ---------------------------------------------------------------------------
# Pure-JAX reference (same bf16-operand / f32-accumulate math, for checking).
# ---------------------------------------------------------------------------
def _reference_forward(x_btf, raw_params):
    x = jnp.transpose(x_btf, (1, 0, 2)).astype(jnp.float32)   # (T, B, F)
    h_last = None
    for p in raw_params:
        hidden = p["w_hh"].shape[1]
        t, b, f = x.shape
        w_ih_t = p["w_ih"].T.astype(jnp.bfloat16)
        w_hh_t = p["w_hh"].T.astype(jnp.bfloat16)
        bias = (p["b_ih"] + p["b_hh"]).astype(jnp.float32)
        zx = (jnp.dot(x.reshape(t * b, f).astype(jnp.bfloat16), w_ih_t,
                      preferred_element_type=jnp.float32)
              .reshape(t, b, 4 * hidden) + bias)

        def step(carry, zx_t):
            h, c = carry
            z = zx_t + jnp.dot(h.astype(jnp.bfloat16), w_hh_t,
                               preferred_element_type=jnp.float32)
            i = jax.nn.sigmoid(z[:, 0 * hidden:1 * hidden])
            fg = jax.nn.sigmoid(z[:, 1 * hidden:2 * hidden])
            g = jnp.tanh(z[:, 2 * hidden:3 * hidden])
            o = jax.nn.sigmoid(z[:, 3 * hidden:4 * hidden])
            c = fg * c + i * g
            h = o * jnp.tanh(c)
            return (h, c), h

        init = (jnp.zeros((b, hidden), jnp.float32),
                jnp.zeros((b, hidden), jnp.float32))
        (h_last, _), ys = jax.lax.scan(step, init, zx)
        x = ys
    return h_last


if __name__ == "__main__":
    key = jax.random.PRNGKey(0)

    batch = 2
    seq = 8
    input_size = 16
    specification = [32, 32]

    kx, kp = jax.random.split(key)
    x = jax.random.normal(kx, (batch, seq, input_size), jnp.float32)

    raw_params = init_stacked_lstm_params(kp, input_size, specification)
    kernel_params = prepare_kernel_params(raw_params, input_size, specification)

    tt = 8                     # timesteps per grid step
    bb = _pick_bb(batch)       # batch block ("parallel" grid axis)

    out = tk_stacked_lstm_forward(
        x, kernel_params, hidden_last=specification[-1], tt=tt, bb=bb)
    out = jax.block_until_ready(out)

    assert out.shape == (batch, specification[-1]), out.shape

    ref = _reference_forward(x, raw_params)
    assert jnp.allclose(out, ref, atol=2e-3, rtol=2e-3), (
        float(jnp.max(jnp.abs(out - ref))))

    print("KERNEL_OK")
</pallas_src>

<mosaic_0001>
module attributes {stable_mosaic.version = 11 : i64} {
  func.func @_lstm_layer_kernel(%arg0: i32, %arg1: i32, %arg2: memref<8x8x128xbf16, #tpu.memory_space<vmem>>, %arg3: memref<128x512xbf16, #tpu.memory_space<vmem>>, %arg4: memref<128x512xbf16, #tpu.memory_space<vmem>>, %arg5: memref<1x512xf32, #tpu.memory_space<vmem>>, %arg6: memref<8x128xf32, #tpu.memory_space<vmem>>, %arg7: memref<8x128xf32, #tpu.memory_space<vmem>>, %arg8: memref<8x128xf32, #tpu.memory_space<vmem>>, %arg9: memref<8x8x512xf32, #tpu.memory_space<vmem>>) attributes {dimension_semantics = [#tpu.dimension_semantics<parallel>, #tpu.dimension_semantics<arbitrary>], iteration_bounds = array<i64: 1, 1>, scalar_prefetch = 0 : i64, scratch_operands = 3 : i64, tpu.core_type = #tpu.core_type<tc>, window_params = [{transform_indices = @transform_0, window_bounds = array<i64: 8, 8, 128>}, {pipeline_mode = #tpu.pipeline_mode<synchronous>, transform_indices = @transform_1, window_bounds = array<i64: 128, 512>}, {pipeline_mode = #tpu.pipeline_mode<synchronous>, transform_indices = @transform_2, window_bounds = array<i64: 128, 512>}, {pipeline_mode = #tpu.pipeline_mode<synchronous>, transform_indices = @transform_3, window_bounds = array<i64: 1, 512>}, {transform_indices = @transform_4, window_bounds = array<i64: 8, 128>}]} {
    %c0_i32 = arith.constant 0 : i32
    %0 = arith.cmpi eq, %arg1, %c0_i32 : i32
    %1 = arith.extui %0 : i1 to i32
    %c0_i32_0 = arith.constant 0 : i32
    %2 = arith.cmpi ne, %1, %c0_i32_0 : i32
    scf.if %2 {
      %cst_84 = arith.constant 0.000000e+00 : f32
      %233 = vector.broadcast %cst_84 : f32 to vector<8x128xf32>
      %c0_85 = arith.constant 0 : index
      %c0_86 = arith.constant 0 : index
      %234 = vector.load %arg7[%c0_85, %c0_86] : memref<8x128xf32, #tpu.memory_space<vmem>>, vector<8x128xf32>
      tpu.vector_store %arg7[%c0_85, %c0_86], %233 {strides = array<i32>} : memref<8x128xf32, #tpu.memory_space<vmem>>, vector<8x128xf32>,
      %cst_87 = arith.constant 0.000000e+00 : f32
      %235 = vector.broadcast %cst_87 : f32 to vector<8x128xf32>
      %c0_88 = arith.constant 0 : index
      %c0_89 = arith.constant 0 : index
      %236 = vector.load %arg8[%c0_88, %c0_89] : memref<8x128xf32, #tpu.memory_space<vmem>>, vector<8x128xf32>
      tpu.vector_store %arg8[%c0_88, %c0_89], %235 {strides = array<i32>} : memref<8x128xf32, #tpu.memory_space<vmem>>, vector<8x128xf32>,
    } else {
    }
    %c0 = arith.constant 0 : index
    %c0_1 = arith.constant 0 : index
    %c0_2 = arith.constant 0 : index
    %3 = vector.load %arg2[%c0, %c0_1, %c0_2] : memref<8x8x128xbf16, #tpu.memory_space<vmem>>, vector<8x8x128xbf16>
    %4 = vector.shape_cast %3 : vector<8x8x128xbf16> to vector<64x128xbf16>
    %c0_3 = arith.constant 0 : index
    %c0_4 = arith.constant 0 : index
    %5 = vector.load %arg3[%c0_3, %c0_4] : memref<128x512xbf16, #tpu.memory_space<vmem>>, vector<128x512xbf16>
    %cst = arith.constant dense<0.000000e+00> : vector<64x512xf32>
    %6 = tpu.matmul %4, %5, %cst {dimension_numbers = #tpu.dot_dimension_numbers<[1], [0], [0], [1], [0, 0, 1, 1], [], []>} : vector<64x128xbf16>, vector<128x512xbf16>, vector<64x512xf32> -> vector<64x512xf32>
    %c0_5 = arith.constant 0 : index
    %c0_6 = arith.constant 0 : index
    %7 = vector.load %arg5[%c0_5, %c0_6] : memref<1x512xf32, #tpu.memory_space<vmem>>, vector<1x512xf32>
    %8 = vector.broadcast %7 : vector<1x512xf32> to vector<64x512xf32>
    %9 = arith.addf %6, %8 : vector<64x512xf32>
    %10 = vector.shape_cast %9 : vector<64x512xf32> to vector<8x8x512xf32>
    %c0_7 = arith.constant 0 : index
    %c0_8 = arith.constant 0 : index
    %c0_9 = arith.constant 0 : index
    %11 = vector.load %arg9[%c0_7, %c0_8, %c0_9] : memref<8x8x512xf32, #tpu.memory_space<vmem>>, vector<8x8x512xf32>
    tpu.vector_store %arg9[%c0_7, %c0_8, %c0_9], %10 {strides = array<i32>} : memref<8x8x512xf32, #tpu.memory_space<vmem>>, vector<8x8x512xf32>,
    %c8_i32 = arith.constant 8 : i32
    %12 = arith.muli %arg1, %c8_i32 : i32
    %c0_10 = arith.constant 0 : index
    %c0_11 = arith.constant 0 : index
    %13 = vector.load %arg7[%c0_10, %c0_11] : memref<8x128xf32, #tpu.memory_space<vmem>>, vector<8x128xf32>
    %c0_12 = arith.constant 0 : index
    %c0_13 = arith.constant 0 : index
    %14 = vector.load %arg8[%c0_12, %c0_13] : memref<8x128xf32, #tpu.memory_space<vmem>>, vector<8x128xf32>
    %c0_i32_14 = arith.constant 0 : i32
    %15 = arith.index_cast %c0_i32_14 : i32 to index
    %c0_15 = arith.constant 0 : index
    %c0_16 = arith.constant 0 : index
    %16 = vector.load %arg9[%15, %c0_15, %c0_16] : memref<8x8x512xf32, #tpu.memory_space<vmem>>, vector<1x8x512xf32>
    %17 = vector.shape_cast %16 : vector<1x8x512xf32> to vector<8x512xf32>
    %18 = arith.truncf %13 : vector<8x128xf32> to vector<8x128xbf16>
    %c0_17 = arith.constant 0 : index
    %c0_18 = arith.constant 0 : index
    %19 = vector.load %arg4[%c0_17, %c0_18] : memref<128x512xbf16, #tpu.memory_space<vmem>>, vector<128x512xbf16>
    %cst_19 = arith.constant dense<0.000000e+00> : vector<8x512xf32>
    %20 = tpu.matmul %18, %19, %cst_19 {dimension_numbers = #tpu.dot_dimension_numbers<[1], [0], [0], [1], [0, 0, 1, 1], [], []>} : vector<8x128xbf16>, vector<128x512xbf16>, vector<8x512xf32> -> vector<8x512xf32>
    %21 = arith.addf %17, %20 : vector<8x512xf32>
    %22 = vector.extract_strided_slice %21 {offsets = [0, 0], sizes = [8, 384], strides = [1, 1]} : vector<8x512xf32> to vector<8x384xf32>
    %23 = arith.negf %22 : vector<8x384xf32>
    %24 = math.exp %23 : vector<8x384xf32>
    %cst_20 = arith.constant 1.000000e+00 : f32
    %25 = vector.broadcast %cst_20 : f32 to vector<8x384xf32>
    %26 = arith.addf %25, %24 : vector<8x384xf32>
    %27 = arith.divf %25, %26 : vector<8x384xf32>
    %28 = vector.extract_strided_slice %21 {offsets = [0, 384], sizes = [8, 128], strides = [1, 1]} : vector<8x512xf32> to vector<8x128xf32>
    %29 = math.tanh %28 : vector<8x128xf32>
    %30 = vector.extract_strided_slice %27 {offsets = [0, 0], sizes = [8, 128], strides = [1, 1]} : vector<8x384xf32> to vector<8x128xf32>
    %31 = vector.extract_strided_slice %27 {offsets = [0, 128], sizes = [8, 128], strides = [1, 1]} : vector<8x384xf32> to vector<8x128xf32>
    %32 = vector.extract_strided_slice %27 {offsets = [0, 256], sizes = [8, 128], strides = [1, 1]} : vector<8x384xf32> to vector<8x128xf32>
    %33 = arith.mulf %31, %14 : vector<8x128xf32>
    %34 = arith.mulf %30, %29 : vector<8x128xf32>
    %35 = arith.addf %33, %34 : vector<8x128xf32>
    %36 = math.tanh %35 : vector<8x128xf32>
    %37 = arith.mulf %32, %36 : vector<8x128xf32>
    %38 = arith.addi %12, %c0_i32_14 : i32
    %c7_i32 = arith.constant 7 : i32
    %39 = arith.cmpi eq, %38, %c7_i32 : i32
    %40 = arith.extui %39 : i1 to i32
    %c0_i32_21 = arith.constant 0 : i32
    %41 = arith.cmpi ne, %40, %c0_i32_21 : i32
    scf.if %41 {
      %c0_84 = arith.constant 0 : index
      %c0_85 = arith.constant 0 : index
      %233 = vector.load %arg6[%c0_84, %c0_85] : memref<8x128xf32, #tpu.memory_space<vmem>>, vector<8x128xf32>
      tpu.vector_store %arg6[%c0_84, %c0_85], %37 {strides = array<i32>} : memref<8x128xf32, #tpu.memory_space<vmem>>, vector<8x128xf32>,
    } else {
    }
    %c1_i32 = arith.constant 1 : i32
    %42 = arith.index_cast %c1_i32 : i32 to index
    %c0_22 = arith.constant 0 : index
    %c0_23 = arith.constant 0 : index
    %43 = vector.load %arg9[%42, %c0_22, %c0_23] : memref<8x8x512xf32, #tpu.memory_space<vmem>>, vector<1x8x512xf32>
    %44 = vector.shape_cast %43 : vector<1x8x512xf32> to vector<8x512xf32>
    %45 = arith.truncf %37 : vector<8x128xf32> to vector<8x128xbf16>
    %c0_24 = arith.constant 0 : index
    %c0_25 = arith.constant 0 : index
    %46 = vector.load %arg4[%c0_24, %c0_25] : memref<128x512xbf16, #tpu.memory_space<vmem>>, vector<128x512xbf16>
    %cst_26 = arith.constant dense<0.000000e+00> : vector<8x512xf32>
    %47 = tpu.matmul %45, %46, %cst_26 {dimension_numbers = #tpu.dot_dimension_numbers<[1], [0], [0], [1], [0, 0, 1, 1], [], []>} : vector<8x128xbf16>, vector<128x512xbf16>, vector<8x512xf32> -> vector<8x512xf32>
    %48 = arith.addf %44, %47 : vector<8x512xf32>
    %49 = vector.extract_strided_slice %48 {offsets = [0, 0], sizes = [8, 384], strides = [1, 1]} : vector<8x512xf32> to vector<8x384xf32>
    %50 = arith.negf %49 : vector<8x384xf32>
    %51 = math.exp %50 : vector<8x384xf32>
    %cst_27 = arith.constant 1.000000e+00 : f32
    %52 = vector.broadcast %cst_27 : f32 to vector<8x384xf32>
    %53 = arith.addf %52, %51 : vector<8x384xf32>
    %54 = arith.divf %52, %53 : vector<8x384xf32>
    %55 = vector.extract_strided_slice %48 {offsets = [0, 384], sizes = [8, 128], strides = [1, 1]} : vector<8x512xf32> to vector<8x128xf32>
    %56 = math.tanh %55 : vector<8x128xf32>
    %57 = vector.extract_strided_slice %54 {offsets = [0, 0], sizes = [8, 128], strides = [1, 1]} : vector<8x384xf32> to vector<8x128xf32>
    %58 = vector.extract_strided_slice %54 {offsets = [0, 128], sizes = [8, 128], strides = [1, 1]} : vector<8x384xf32> to vector<8x128xf32>
    %59 = vector.extract_strided_slice %54 {offsets = [0, 256], sizes = [8, 128], strides = [1, 1]} : vector<8x384xf32> to vector<8x128xf32>
    %60 = arith.mulf %58, %35 : vector<8x128xf32>
    %61 = arith.mulf %57, %56 : vector<8x128xf32>
    %62 = arith.addf %60, %61 : vector<8x128xf32>
    %63 = math.tanh %62 : vector<8x128xf32>
    %64 = arith.mulf %59, %63 : vector<8x128xf32>
    %65 = arith.addi %12, %c1_i32 : i32
    %c7_i32_28 = arith.constant 7 : i32
    %66 = arith.cmpi eq, %65, %c7_i32_28 : i32
    %67 = arith.extui %66 : i1 to i32
    %c0_i32_29 = arith.constant 0 : i32
    %68 = arith.cmpi ne, %67, %c0_i32_29 : i32
    scf.if %68 {
      %c0_84 = arith.constant 0 : index
      %c0_85 = arith.constant 0 : index
      %233 = vector.load %arg6[%c0_84, %c0_85] : memref<8x128xf32, #tpu.memory_space<vmem>>, vector<8x128xf32>
      tpu.vector_store %arg6[%c0_84, %c0_85], %64 {strides = array<i32>} : memref<8x128xf32, #tpu.memory_space<vmem>>, vector<8x128xf32>,
    } else {
    }
    %c2_i32 = arith.constant 2 : i32
    %69 = arith.index_cast %c2_i32 : i32 to index
    %c0_30 = arith.constant 0 : index
    %c0_31 = arith.constant 0 : index
    %70 = vector.load %arg9[%69, %c0_30, %c0_31] : memref<8x8x512xf32, #tpu.memory_space<vmem>>, vector<1x8x512xf32>
    %71 = vector.shape_cast %70 : vector<1x8x512xf32> to vector<8x512xf32>
    %72 = arith.truncf %64 : vector<8x128xf32> to vector<8x128xbf16>
    %c0_32 = arith.constant 0 : index
    %c0_33 = arith.constant 0 : index
    %73 = vector.load %arg4[%c0_32, %c0_33] : memref<128x512xbf16, #tpu.memory_space<vmem>>, vector<128x512xbf16>
    %cst_34 = arith.constant dense<0.000000e+00> : vector<8x512xf32>
    %74 = tpu.matmul %72, %73, %cst_34 {dimension_numbers = #tpu.dot_dimension_numbers<[1], [0], [0], [1], [0, 0, 1, 1], [], []>} : vector<8x128xbf16>, vector<128x512xbf16>, vector<8x512xf32> -> vector<8x512xf32>
    %75 = arith.addf %71, %74 : vector<8x512xf32>
    %76 = vector.extract_strided_slice %75 {offsets = [0, 0], sizes = [8, 384], strides = [1, 1]} : vector<8x512xf32> to vector<8x384xf32>
    %77 = arith.negf %76 : vector<8x384xf32>
    %78 = math.exp %77 : vector<8x384xf32>
    %cst_35 = arith.constant 1.000000e+00 : f32
    %79 = vector.broadcast %cst_35 : f32 to vector<8x384xf32>
    %80 = arith.addf %79, %78 : vector<8x384xf32>
    %81 = arith.divf %79, %80 : vector<8x384xf32>
    %82 = vector.extract_strided_slice %75 {offsets = [0, 384], sizes = [8, 128], strides = [1, 1]} : vector<8x512xf32> to vector<8x128xf32>
    %83 = math.tanh %82 : vector<8x128xf32>
    %84 = vector.extract_strided_slice %81 {offsets = [0, 0], sizes = [8, 128], strides = [1, 1]} : vector<8x384xf32> to vector<8x128xf32>
    %85 = vector.extract_strided_slice %81 {offsets = [0, 128], sizes = [8, 128], strides = [1, 1]} : vector<8x384xf32> to vector<8x128xf32>
    %86 = vector.extract_strided_slice %81 {offsets = [0, 256], sizes = [8, 128], strides = [1, 1]} : vector<8x384xf32> to vector<8x128xf32>
    %87 = arith.mulf %85, %62 : vector<8x128xf32>
    %88 = arith.mulf %84, %83 : vector<8x128xf32>
    %89 = arith.addf %87, %88 : vector<8x128xf32>
    %90 = math.tanh %89 : vector<8x128xf32>
    %91 = arith.mulf %86, %90 : vector<8x128xf32>
    %92 = arith.addi %12, %c2_i32 : i32
    %c7_i32_36 = arith.constant 7 : i32
    %93 = arith.cmpi eq, %92, %c7_i32_36 : i32
    %94 = arith.extui %93 : i1 to i32
    %c0_i32_37 = arith.constant 0 : i32
    %95 = arith.cmpi ne, %94, %c0_i32_37 : i32
    scf.if %95 {
      %c0_84 = arith.constant 0 : index
      %c0_85 = arith.constant 0 : index
      %233 = vector.load %arg6[%c0_84, %c0_85] : memref<8x128xf32, #tpu.memory_space<vmem>>, vector<8x128xf32>
      tpu.vector_store %arg6[%c0_84, %c0_85], %91 {strides = array<i32>} : memref<8x128xf32, #tpu.memory_space<vmem>>, vector<8x128xf32>,
    } else {
    }
    %c3_i32 = arith.constant 3 : i32
    %96 = arith.index_cast %c3_i32 : i32 to index
    %c0_38 = arith.constant 0 : index
    %c0_39 = arith.constant 0 : index
    %97 = vector.load %arg9[%96, %c0_38, %c0_39] : memref<8x8x512xf32, #tpu.memory_space<vmem>>, vector<1x8x512xf32>
    %98 = vector.shape_cast %97 : vector<1x8x512xf32> to vector<8x512xf32>
    %99 = arith.truncf %91 : vector<8x128xf32> to vector<8x128xbf16>
    %c0_40 = arith.constant 0 : index
    %c0_41 = arith.constant 0 : index
    %100 = vector.load %arg4[%c0_40, %c0_41] : memref<128x512xbf16, #tpu.memory_space<vmem>>, vector<128x512xbf16>
    %cst_42 = arith.constant dense<0.000000e+00> : vector<8x512xf32>
    %101 = tpu.matmul %99, %100, %cst_42 {dimension_numbers = #tpu.dot_dimension_numbers<[1], [0], [0], [1], [0, 0, 1, 1], [], []>} : vector<8x128xbf16>, vector<128x512xbf16>, vector<8x512xf32> -> vector<8x512xf32>
    %102 = arith.addf %98, %101 : vector<8x512xf32>
    %103 = vector.extract_strided_slice %102 {offsets = [0, 0], sizes = [8, 384], strides = [1, 1]} : vector<8x512xf32> to vector<8x384xf32>
    %104 = arith.negf %103 : vector<8x384xf32>
    %105 = math.exp %104 : vector<8x384xf32>
    %cst_43 = arith.constant 1.000000e+00 : f32
    %106 = vector.broadcast %cst_43 : f32 to vector<8x384xf32>
    %107 = arith.addf %106, %105 : vector<8x384xf32>
    %108 = arith.divf %106, %107 : vector<8x384xf32>
    %109 = vector.extract_strided_slice %102 {offsets = [0, 384], sizes = [8, 128], strides = [1, 1]} : vector<8x512xf32> to vector<8x128xf32>
    %110 = math.tanh %109 : vector<8x128xf32>
    %111 = vector.extract_strided_slice %108 {offsets = [0, 0], sizes = [8, 128], strides = [1, 1]} : vector<8x384xf32> to vector<8x128xf32>
    %112 = vector.extract_strided_slice %108 {offsets = [0, 128], sizes = [8, 128], strides = [1, 1]} : vector<8x384xf32> to vector<8x128xf32>
    %113 = vector.extract_strided_slice %108 {offsets = [0, 256], sizes = [8, 128], strides = [1, 1]} : vector<8x384xf32> to vector<8x128xf32>
    %114 = arith.mulf %112, %89 : vector<8x128xf32>
    %115 = arith.mulf %111, %110 : vector<8x128xf32>
    %116 = arith.addf %114, %115 : vector<8x128xf32>
    %117 = math.tanh %116 : vector<8x128xf32>
    %118 = arith.mulf %113, %117 : vector<8x128xf32>
    %119 = arith.addi %12, %c3_i32 : i32
    %c7_i32_44 = arith.constant 7 : i32
    %120 = arith.cmpi eq, %119, %c7_i32_44 : i32
    %121 = arith.extui %120 : i1 to i32
    %c0_i32_45 = arith.constant 0 : i32
    %122 = arith.cmpi ne, %121, %c0_i32_45 : i32
    scf.if %122 {
      %c0_84 = arith.constant 0 : index
      %c0_85 = arith.constant 0 : index
      %233 = vector.load %arg6[%c0_84, %c0_85] : memref<8x128xf32, #tpu.memory_space<vmem>>, vector<8x128xf32>
      tpu.vector_store %arg6[%c0_84, %c0_85], %118 {strides = array<i32>} : memref<8x128xf32, #tpu.memory_space<vmem>>, vector<8x128xf32>,
    } else {
    }
    %c4_i32 = arith.constant 4 : i32
    %123 = arith.index_cast %c4_i32 : i32 to index
    %c0_46 = arith.constant 0 : index
    %c0_47 = arith.constant 0 : index
    %124 = vector.load %arg9[%123, %c0_46, %c0_47] : memref<8x8x512xf32, #tpu.memory_space<vmem>>, vector<1x8x512xf32>
    %125 = vector.shape_cast %124 : vector<1x8x512xf32> to vector<8x512xf32>
    %126 = arith.truncf %118 : vector<8x128xf32> to vector<8x128xbf16>
    %c0_48 = arith.constant 0 : index
    %c0_49 = arith.constant 0 : index
    %127 = vector.load %arg4[%c0_48, %c0_49] : memref<128x512xbf16, #tpu.memory_space<vmem>>, vector<128x512xbf16>
    %cst_50 = arith.constant dense<0.000000e+00> : vector<8x512xf32>
    %128 = tpu.matmul %126, %127, %cst_50 {dimension_numbers = #tpu.dot_dimension_numbers<[1], [0], [0], [1], [0, 0, 1, 1], [], []>} : vector<8x128xbf16>, vector<128x512xbf16>, vector<8x512xf32> -> vector<8x512xf32>
    %129 = arith.addf %125, %128 : vector<8x512xf32>
    %130 = vector.extract_strided_slice %129 {offsets = [0, 0], sizes = [8, 384], strides = [1, 1]} : vector<8x512xf32> to vector<8x384xf32>
    %131 = arith.negf %130 : vector<8x384xf32>
    %132 = math.exp %131 : vector<8x384xf32>
    %cst_51 = arith.constant 1.000000e+00 : f32
    %133 = vector.broadcast %cst_51 : f32 to vector<8x384xf32>
    %134 = arith.addf %133, %132 : vector<8x384xf32>
    %135 = arith.divf %133, %134 : vector<8x384xf32>
    %136 = vector.extract_strided_slice %129 {offsets = [0, 384], sizes = [8, 128], strides = [1, 1]} : vector<8x512xf32> to vector<8x128xf32>
    %137 = math.tanh %136 : vector<8x128xf32>
    %138 = vector.extract_strided_slice %135 {offsets = [0, 0], sizes = [8, 128], strides = [1, 1]} : vector<8x384xf32> to vector<8x128xf32>
    %139 = vector.extract_strided_slice %135 {offsets = [0, 128], sizes = [8, 128], strides = [1, 1]} : vector<8x384xf32> to vector<8x128xf32>
    %140 = vector.extract_strided_slice %135 {offsets = [0, 256], sizes = [8, 128], strides = [1, 1]} : vector<8x384xf32> to vector<8x128xf32>
    %141 = arith.mulf %139, %116 : vector<8x128xf32>
    %142 = arith.mulf %138, %137 : vector<8x128xf32>
    %143 = arith.addf %141, %142 : vector<8x128xf32>
    %144 = math.tanh %143 : vector<8x128xf32>
    %145 = arith.mulf %140, %144 : vector<8x128xf32>
    %146 = arith.addi %12, %c4_i32 : i32
    %c7_i32_52 = arith.constant 7 : i32
    %147 = arith.cmpi eq, %146, %c7_i32_52 : i32
    %148 = arith.extui %147 : i1 to i32
    %c0_i32_53 = arith.constant 0 : i32
    %149 = arith.cmpi ne, %148, %c0_i32_53 : i32
    scf.if %149 {
      %c0_84 = arith.constant 0 : index
      %c0_85 = arith.constant 0 : index
      %233 = vector.load %arg6[%c0_84, %c0_85] : memref<8x128xf32, #tpu.memory_space<vmem>>, vector<8x128xf32>
      tpu.vector_store %arg6[%c0_84, %c0_85], %145 {strides = array<i32>} : memref<8x128xf32, #tpu.memory_space<vmem>>, vector<8x128xf32>,
    } else {
    }
    %c5_i32 = arith.constant 5 : i32
    %150 = arith.index_cast %c5_i32 : i32 to index
    %c0_54 = arith.constant 0 : index
    %c0_55 = arith.constant 0 : index
    %151 = vector.load %arg9[%150, %c0_54, %c0_55] : memref<8x8x512xf32, #tpu.memory_space<vmem>>, vector<1x8x512xf32>
    %152 = vector.shape_cast %151 : vector<1x8x512xf32> to vector<8x512xf32>
    %153 = arith.truncf %145 : vector<8x128xf32> to vector<8x128xbf16>
    %c0_56 = arith.constant 0 : index
    %c0_57 = arith.constant 0 : index
    %154 = vector.load %arg4[%c0_56, %c0_57] : memref<128x512xbf16, #tpu.memory_space<vmem>>, vector<128x512xbf16>
    %cst_58 = arith.constant dense<0.000000e+00> : vector<8x512xf32>
    %155 = tpu.matmul %153, %154, %cst_58 {dimension_numbers = #tpu.dot_dimension_numbers<[1], [0], [0], [1], [0, 0, 1, 1], [], []>} : vector<8x128xbf16>, vector<128x512xbf16>, vector<8x512xf32> -> vector<8x512xf32>
    %156 = arith.addf %152, %155 : vector<8x512xf32>
    %157 = vector.extract_strided_slice %156 {offsets = [0, 0], sizes = [8, 384], strides = [1, 1]} : vector<8x512xf32> to vector<8x384xf32>
    %158 = arith.negf %157 : vector<8x384xf32>
    %159 = math.exp %158 : vector<8x384xf32>
    %cst_59 = arith.constant 1.000000e+00 : f32
    %160 = vector.broadcast %cst_59 : f32 to vector<8x384xf32>
    %161 = arith.addf %160, %159 : vector<8x384xf32>
    %162 = arith.divf %160, %161 : vector<8x384xf32>
    %163 = vector.extract_strided_slice %156 {offsets = [0, 384], sizes = [8, 128], strides = [1, 1]} : vector<8x512xf32> to vector<8x128xf32>
    %164 = math.tanh %163 : vector<8x128xf32>
    %165 = vector.extract_strided_slice %162 {offsets = [0, 0], sizes = [8, 128], strides = [1, 1]} : vector<8x384xf32> to vector<8x128xf32>
    %166 = vector.extract_strided_slice %162 {offsets = [0, 128], sizes = [8, 128], strides = [1, 1]} : vector<8x384xf32> to vector<8x128xf32>
    %167 = vector.extract_strided_slice %162 {offsets = [0, 256], sizes = [8, 128], strides = [1, 1]} : vector<8x384xf32> to vector<8x128xf32>
    %168 = arith.mulf %166, %143 : vector<8x128xf32>
    %169 = arith.mulf %165, %164 : vector<8x128xf32>
    %170 = arith.addf %168, %169 : vector<8x128xf32>
    %171 = math.tanh %170 : vector<8x128xf32>
    %172 = arith.mulf %167, %171 : vector<8x128xf32>
    %173 = arith.addi %12, %c5_i32 : i32
    %c7_i32_60 = arith.constant 7 : i32
    %174 = arith.cmpi eq, %173, %c7_i32_60 : i32
    %175 = arith.extui %174 : i1 to i32
    %c0_i32_61 = arith.constant 0 : i32
    %176 = arith.cmpi ne, %175, %c0_i32_61 : i32
    scf.if %176 {
      %c0_84 = arith.constant 0 : index
      %c0_85 = arith.constant 0 : index
      %233 = vector.load %arg6[%c0_84, %c0_85] : memref<8x128xf32, #tpu.memory_space<vmem>>, vector<8x128xf32>
      tpu.vector_store %arg6[%c0_84, %c0_85], %172 {strides = array<i32>} : memref<8x128xf32, #tpu.memory_space<vmem>>, vector<8x128xf32>,
    } else {
    }
    %c6_i32 = arith.constant 6 : i32
    %177 = arith.index_cast %c6_i32 : i32 to index
    %c0_62 = arith.constant 0 : index
    %c0_63 = arith.constant 0 : index
    %178 = vector.load %arg9[%177, %c0_62, %c0_63] : memref<8x8x512xf32, #tpu.memory_space<vmem>>, vector<1x8x512xf32>
    %179 = vector.shape_cast %178 : vector<1x8x512xf32> to vector<8x512xf32>
    %180 = arith.truncf %172 : vector<8x128xf32> to vector<8x128xbf16>
    %c0_64 = arith.constant 0 : index
    %c0_65 = arith.constant 0 : index
    %181 = vector.load %arg4[%c0_64, %c0_65] : memref<128x512xbf16, #tpu.memory_space<vmem>>, vector<128x512xbf16>
    %cst_66 = arith.constant dense<0.000000e+00> : vector<8x512xf32>
    %182 = tpu.matmul %180, %181, %cst_66 {dimension_numbers = #tpu.dot_dimension_numbers<[1], [0], [0], [1], [0, 0, 1, 1], [], []>} : vector<8x128xbf16>, vector<128x512xbf16>, vector<8x512xf32> -> vector<8x512xf32>
    %183 = arith.addf %179, %182 : vector<8x512xf32>
    %184 = vector.extract_strided_slice %183 {offsets = [0, 0], sizes = [8, 384], strides = [1, 1]} : vector<8x512xf32> to vector<8x384xf32>
    %185 = arith.negf %184 : vector<8x384xf32>
    %186 = math.exp %185 : vector<8x384xf32>
    %cst_67 = arith.constant 1.000000e+00 : f32
    %187 = vector.broadcast %cst_67 : f32 to vector<8x384xf32>
    %188 = arith.addf %187, %186 : vector<8x384xf32>
    %189 = arith.divf %187, %188 : vector<8x384xf32>
    %190 = vector.extract_strided_slice %183 {offsets = [0, 384], sizes = [8, 128], strides = [1, 1]} : vector<8x512xf32> to vector<8x128xf32>
    %191 = math.tanh %190 : vector<8x128xf32>
    %192 = vector.extract_strided_slice %189 {offsets = [0, 0], sizes = [8, 128], strides = [1, 1]} : vector<8x384xf32> to vector<8x128xf32>
    %193 = vector.extract_strided_slice %189 {offsets = [0, 128], sizes = [8, 128], strides = [1, 1]} : vector<8x384xf32> to vector<8x128xf32>
    %194 = vector.extract_strided_slice %189 {offsets = [0, 256], sizes = [8, 128], strides = [1, 1]} : vector<8x384xf32> to vector<8x128xf32>
    %195 = arith.mulf %193, %170 : vector<8x128xf32>
    %196 = arith.mulf %192, %191 : vector<8x128xf32>
    %197 = arith.addf %195, %196 : vector<8x128xf32>
    %198 = math.tanh %197 : vector<8x128xf32>
    %199 = arith.mulf %194, %198 : vector<8x128xf32>
    %200 = arith.addi %12, %c6_i32 : i32
    %c7_i32_68 = arith.constant 7 : i32
    %201 = arith.cmpi eq, %200, %c7_i32_68 : i32
    %202 = arith.extui %201 : i1 to i32
    %c0_i32_69 = arith.constant 0 : i32
    %203 = arith.cmpi ne, %202, %c0_i32_69 : i32
    scf.if %203 {
      %c0_84 = arith.constant 0 : index
      %c0_85 = arith.constant 0 : index
      %233 = vector.load %arg6[%c0_84, %c0_85] : memref<8x128xf32, #tpu.memory_space<vmem>>, vector<8x128xf32>
      tpu.vector_store %arg6[%c0_84, %c0_85], %199 {strides = array<i32>} : memref<8x128xf32, #tpu.memory_space<vmem>>, vector<8x128xf32>,
    } else {
    }
    %c7_i32_70 = arith.constant 7 : i32
    %204 = arith.index_cast %c7_i32_70 : i32 to index
    %c0_71 = arith.constant 0 : index
    %c0_72 = arith.constant 0 : index
    %205 = vector.load %arg9[%204, %c0_71, %c0_72] : memref<8x8x512xf32, #tpu.memory_space<vmem>>, vector<1x8x512xf32>
    %206 = vector.shape_cast %205 : vector<1x8x512xf32> to vector<8x512xf32>
    %207 = arith.truncf %199 : vector<8x128xf32> to vector<8x128xbf16>
    %c0_73 = arith.constant 0 : index
    %c0_74 = arith.constant 0 : index
    %208 = vector.load %arg4[%c0_73, %c0_74] : memref<128x512xbf16, #tpu.memory_space<vmem>>, vector<128x512xbf16>
    %cst_75 = arith.constant dense<0.000000e+00> : vector<8x512xf32>
    %209 = tpu.matmul %207, %208, %cst_75 {dimension_numbers = #tpu.dot_dimension_numbers<[1], [0], [0], [1], [0, 0, 1, 1], [], []>} : vector<8x128xbf16>, vector<128x512xbf16>, vector<8x512xf32> -> vector<8x512xf32>
    %210 = arith.addf %206, %209 : vector<8x512xf32>
    %211 = vector.extract_strided_slice %210 {offsets = [0, 0], sizes = [8, 384], strides = [1, 1]} : vector<8x512xf32> to vector<8x384xf32>
    %212 = arith.negf %211 : vector<8x384xf32>
    %213 = math.exp %212 : vector<8x384xf32>
    %cst_76 = arith.constant 1.000000e+00 : f32
    %214 = vector.broadcast %cst_76 : f32 to vector<8x384xf32>
    %215 = arith.addf %214, %213 : vector<8x384xf32>
    %216 = arith.divf %214, %215 : vector<8x384xf32>
    %217 = vector.extract_strided_slice %210 {offsets = [0, 384], sizes = [8, 128], strides = [1, 1]} : vector<8x512xf32> to vector<8x128xf32>
    %218 = math.tanh %217 : vector<8x128xf32>
    %219 = vector.extract_strided_slice %216 {offsets = [0, 0], sizes = [8, 128], strides = [1, 1]} : vector<8x384xf32> to vector<8x128xf32>
    %220 = vector.extract_strided_slice %216 {offsets = [0, 128], sizes = [8, 128], strides = [1, 1]} : vector<8x384xf32> to vector<8x128xf32>
    %221 = vector.extract_strided_slice %216 {offsets = [0, 256], sizes = [8, 128], strides = [1, 1]} : vector<8x384xf32> to vector<8x128xf32>
    %222 = arith.mulf %220, %197 : vector<8x128xf32>
    %223 = arith.mulf %219, %218 : vector<8x128xf32>
    %224 = arith.addf %222, %223 : vector<8x128xf32>
    %225 = math.tanh %224 : vector<8x128xf32>
    %226 = arith.mulf %221, %225 : vector<8x128xf32>
    %227 = arith.addi %12, %c7_i32_70 : i32
    %c7_i32_77 = arith.constant 7 : i32
    %228 = arith.cmpi eq, %227, %c7_i32_77 : i32
    %229 = arith.extui %228 : i1 to i32
    %c0_i32_78 = arith.constant 0 : i32
    %230 = arith.cmpi ne, %229, %c0_i32_78 : i32
    scf.if %230 {
      %c0_84 = arith.constant 0 : index
      %c0_85 = arith.constant 0 : index
      %233 = vector.load %arg6[%c0_84, %c0_85] : memref<8x128xf32, #tpu.memory_space<vmem>>, vector<8x128xf32>
      tpu.vector_store %arg6[%c0_84, %c0_85], %226 {strides = array<i32>} : memref<8x128xf32, #tpu.memory_space<vmem>>, vector<8x128xf32>,
    } else {
    }
    %c8_i32_79 = arith.constant 8 : i32
    %c0_80 = arith.constant 0 : index
    %c0_81 = arith.constant 0 : index
    %231 = vector.load %arg7[%c0_80, %c0_81] : memref<8x128xf32, #tpu.memory_space<vmem>>, vector<8x128xf32>
    tpu.vector_store %arg7[%c0_80, %c0_81], %226 {strides = array<i32>} : memref<8x128xf32, #tpu.memory_space<vmem>>, vector<8x128xf32>,
    %c0_82 = arith.constant 0 : index
    %c0_83 = arith.constant 0 : index
    %232 = vector.load %arg8[%c0_82, %c0_83] : memref<8x128xf32, #tpu.memory_space<vmem>>, vector<8x128xf32>
    tpu.vector_store %arg8[%c0_82, %c0_83], %224 {strides = array<i32>} : memref<8x128xf32, #tpu.memory_space<vmem>>, vector<8x128xf32>,
    return
  }
  func.func @transform_0(%arg0: i32, %arg1: i32) -> (i32, i32, i32) {
    %c0_i32 = arith.constant 0 : i32
    %c0_i32_0 = arith.constant 0 : i32
    return %arg1, %arg0, %c0_i32 : i32, i32, i32
  }
  func.func @transform_1(%arg0: i32, %arg1: i32) -> (i32, i32) {
    %c0_i32 = arith.constant 0 : i32
    %c0_i32_0 = arith.constant 0 : i32
    %c0_i32_1 = arith.constant 0 : i32
    return %c0_i32, %c0_i32_0 : i32, i32
  }
  func.func @transform_2(%arg0: i32, %arg1: i32) -> (i32, i32) {
    %c0_i32 = arith.constant 0 : i32
    %c0_i32_0 = arith.constant 0 : i32
    %c0_i32_1 = arith.constant 0 : i32
    return %c0_i32, %c0_i32_0 : i32, i32
  }
  func.func @transform_3(%arg0: i32, %arg1: i32) -> (i32, i32) {
    %c0_i32 = arith.constant 0 : i32
    %c0_i32_0 = arith.constant 0 : i32
    %c0_i32_1 = arith.constant 0 : i32
    return %c0_i32, %c0_i32_0 : i32, i32
  }
  func.func @transform_4(%arg0: i32, %arg1: i32) -> (i32, i32) {
    %c0_i32 = arith.constant 0 : i32
    %c0_i32_0 = arith.constant 0 : i32
    return %arg0, %c0_i32 : i32, i32
  }
}

module attributes {stable_mosaic.version = 11 : i64} {
  func.func @_lstm_layer_kernel(%arg0: i32, %arg1: i32, %arg2: memref<8x8x16xbf16, #tpu.memory_space<vmem>>, %arg3: memref<16x512xbf16, #tpu.memory_space<vmem>>, %arg4: memref<128x512xbf16, #tpu.memory_space<vmem>>, %arg5: memref<1x512xf32, #tpu.memory_space<vmem>>, %arg6: memref<8x8x128xbf16, #tpu.memory_space<vmem>>, %arg7: memref<8x128xf32, #tpu.memory_space<vmem>>, %arg8: memref<8x128xf32, #tpu.memory_space<vmem>>, %arg9: memref<8x8x512xf32, #tpu.memory_space<vmem>>) attributes {dimension_semantics = [#tpu.dimension_semantics<parallel>, #tpu.dimension_semantics<arbitrary>], iteration_bounds = array<i64: 1, 1>, scalar_prefetch = 0 : i64, scratch_operands = 3 : i64, tpu.core_type = #tpu.core_type<tc>, window_params = [{transform_indices = @transform_0, window_bounds = array<i64: 8, 8, 16>}, {pipeline_mode = #tpu.pipeline_mode<synchronous>, transform_indices = @transform_1, window_bounds = array<i64: 16, 512>}, {pipeline_mode = #tpu.pipeline_mode<synchronous>, transform_indices = @transform_2, window_bounds = array<i64: 128, 512>}, {pipeline_mode = #tpu.pipeline_mode<synchronous>, transform_indices = @transform_3, window_bounds = array<i64: 1, 512>}, {transform_indices = @transform_4, window_bounds = array<i64: 8, 8, 128>}]} {
    %c0_i32 = arith.constant 0 : i32
    %0 = arith.cmpi eq, %arg1, %c0_i32 : i32
    %1 = arith.extui %0 : i1 to i32
    %c0_i32_0 = arith.constant 0 : i32
    %2 = arith.cmpi ne, %1, %c0_i32_0 : i32
    scf.if %2 {
      %cst_83 = arith.constant 0.000000e+00 : f32
      %240 = vector.broadcast %cst_83 : f32 to vector<8x128xf32>
      %c0_84 = arith.constant 0 : index
      %c0_85 = arith.constant 0 : index
      %241 = vector.load %arg7[%c0_84, %c0_85] : memref<8x128xf32, #tpu.memory_space<vmem>>, vector<8x128xf32>
      tpu.vector_store %arg7[%c0_84, %c0_85], %240 {strides = array<i32>} : memref<8x128xf32, #tpu.memory_space<vmem>>, vector<8x128xf32>,
      %cst_86 = arith.constant 0.000000e+00 : f32
      %242 = vector.broadcast %cst_86 : f32 to vector<8x128xf32>
      %c0_87 = arith.constant 0 : index
      %c0_88 = arith.constant 0 : index
      %243 = vector.load %arg8[%c0_87, %c0_88] : memref<8x128xf32, #tpu.memory_space<vmem>>, vector<8x128xf32>
      tpu.vector_store %arg8[%c0_87, %c0_88], %242 {strides = array<i32>} : memref<8x128xf32, #tpu.memory_space<vmem>>, vector<8x128xf32>,
    } else {
    }
    %c0 = arith.constant 0 : index
    %c0_1 = arith.constant 0 : index
    %c0_2 = arith.constant 0 : index
    %3 = vector.load %arg2[%c0, %c0_1, %c0_2] : memref<8x8x16xbf16, #tpu.memory_space<vmem>>, vector<8x8x16xbf16>
    %4 = vector.shape_cast %3 : vector<8x8x16xbf16> to vector<64x16xbf16>
    %c0_3 = arith.constant 0 : index
    %c0_4 = arith.constant 0 : index
    %5 = vector.load %arg3[%c0_3, %c0_4] : memref<16x512xbf16, #tpu.memory_space<vmem>>, vector<16x512xbf16>
    %cst = arith.constant dense<0.000000e+00> : vector<64x512xf32>
    %6 = tpu.matmul %4, %5, %cst {dimension_numbers = #tpu.dot_dimension_numbers<[1], [0], [0], [1], [0, 0, 1, 1], [], []>} : vector<64x16xbf16>, vector<16x512xbf16>, vector<64x512xf32> -> vector<64x512xf32>
    %c0_5 = arith.constant 0 : index
    %c0_6 = arith.constant 0 : index
    %7 = vector.load %arg5[%c0_5, %c0_6] : memref<1x512xf32, #tpu.memory_space<vmem>>, vector<1x512xf32>
    %8 = vector.broadcast %7 : vector<1x512xf32> to vector<64x512xf32>
    %9 = arith.addf %6, %8 : vector<64x512xf32>
    %10 = vector.shape_cast %9 : vector<64x512xf32> to vector<8x8x512xf32>
    %c0_7 = arith.constant 0 : index
    %c0_8 = arith.constant 0 : index
    %c0_9 = arith.constant 0 : index
    %11 = vector.load %arg9[%c0_7, %c0_8, %c0_9] : memref<8x8x512xf32, #tpu.memory_space<vmem>>, vector<8x8x512xf32>
    tpu.vector_store %arg9[%c0_7, %c0_8, %c0_9], %10 {strides = array<i32>} : memref<8x8x512xf32, #tpu.memory_space<vmem>>, vector<8x8x512xf32>,
    %c0_10 = arith.constant 0 : index
    %c0_11 = arith.constant 0 : index
    %12 = vector.load %arg7[%c0_10, %c0_11] : memref<8x128xf32, #tpu.memory_space<vmem>>, vector<8x128xf32>
    %c0_12 = arith.constant 0 : index
    %c0_13 = arith.constant 0 : index
    %13 = vector.load %arg8[%c0_12, %c0_13] : memref<8x128xf32, #tpu.memory_space<vmem>>, vector<8x128xf32>
    %c0_i32_14 = arith.constant 0 : i32
    %14 = arith.index_cast %c0_i32_14 : i32 to index
    %c0_15 = arith.constant 0 : index
    %c0_16 = arith.constant 0 : index
    %15 = vector.load %arg9[%14, %c0_15, %c0_16] : memref<8x8x512xf32, #tpu.memory_space<vmem>>, vector<1x8x512xf32>
    %16 = vector.shape_cast %15 : vector<1x8x512xf32> to vector<8x512xf32>
    %17 = arith.truncf %12 : vector<8x128xf32> to vector<8x128xbf16>
    %c0_17 = arith.constant 0 : index
    %c0_18 = arith.constant 0 : index
    %18 = vector.load %arg4[%c0_17, %c0_18] : memref<128x512xbf16, #tpu.memory_space<vmem>>, vector<128x512xbf16>
    %cst_19 = arith.constant dense<0.000000e+00> : vector<8x512xf32>
    %19 = tpu.matmul %17, %18, %cst_19 {dimension_numbers = #tpu.dot_dimension_numbers<[1], [0], [0], [1], [0, 0, 1, 1], [], []>} : vector<8x128xbf16>, vector<128x512xbf16>, vector<8x512xf32> -> vector<8x512xf32>
    %20 = arith.addf %16, %19 : vector<8x512xf32>
    %21 = vector.extract_strided_slice %20 {offsets = [0, 0], sizes = [8, 384], strides = [1, 1]} : vector<8x512xf32> to vector<8x384xf32>
    %22 = arith.negf %21 : vector<8x384xf32>
    %23 = math.exp %22 : vector<8x384xf32>
    %cst_20 = arith.constant 1.000000e+00 : f32
    %24 = vector.broadcast %cst_20 : f32 to vector<8x384xf32>
    %25 = arith.addf %24, %23 : vector<8x384xf32>
    %26 = arith.divf %24, %25 : vector<8x384xf32>
    %27 = vector.extract_strided_slice %20 {offsets = [0, 384], sizes = [8, 128], strides = [1, 1]} : vector<8x512xf32> to vector<8x128xf32>
    %28 = math.tanh %27 : vector<8x128xf32>
    %29 = vector.extract_strided_slice %26 {offsets = [0, 0], sizes = [8, 128], strides = [1, 1]} : vector<8x384xf32> to vector<8x128xf32>
    %30 = vector.extract_strided_slice %26 {offsets = [0, 128], sizes = [8, 128], strides = [1, 1]} : vector<8x384xf32> to vector<8x128xf32>
    %31 = vector.extract_strided_slice %26 {offsets = [0, 256], sizes = [8, 128], strides = [1, 1]} : vector<8x384xf32> to vector<8x128xf32>
    %32 = arith.mulf %30, %13 : vector<8x128xf32>
    %33 = arith.mulf %29, %28 : vector<8x128xf32>
    %34 = arith.addf %32, %33 : vector<8x128xf32>
    %35 = math.tanh %34 : vector<8x128xf32>
    %36 = arith.mulf %31, %35 : vector<8x128xf32>
    %37 = arith.truncf %36 : vector<8x128xf32> to vector<8x128xbf16>
    %38 = arith.index_cast %c0_i32_14 : i32 to index
    %c0_21 = arith.constant 0 : index
    %c0_22 = arith.constant 0 : index
    %39 = vector.load %arg6[%38, %c0_21, %c0_22] : memref<8x8x128xbf16, #tpu.memory_space<vmem>>, vector<1x8x128xbf16>
    %40 = vector.shape_cast %39 : vector<1x8x128xbf16> to vector<8x128xbf16>
    %41 = vector.shape_cast %37 : vector<8x128xbf16> to vector<1x8x128xbf16>
    tpu.vector_store %arg6[%38, %c0_21, %c0_22], %41 {strides = array<i32>} : memref<8x8x128xbf16, #tpu.memory_space<vmem>>, vector<1x8x128xbf16>,
    %c1_i32 = arith.constant 1 : i32
    %42 = arith.index_cast %c1_i32 : i32 to index
    %c0_23 = arith.constant 0 : index
    %c0_24 = arith.constant 0 : index
    %43 = vector.load %arg9[%42, %c0_23, %c0_24] : memref<8x8x512xf32, #tpu.memory_space<vmem>>, vector<1x8x512xf32>
    %44 = vector.shape_cast %43 : vector<1x8x512xf32> to vector<8x512xf32>
    %45 = arith.truncf %36 : vector<8x128xf32> to vector<8x128xbf16>
    %c0_25 = arith.constant 0 : index
    %c0_26 = arith.constant 0 : index
    %46 = vector.load %arg4[%c0_25, %c0_26] : memref<128x512xbf16, #tpu.memory_space<vmem>>, vector<128x512xbf16>
    %cst_27 = arith.constant dense<0.000000e+00> : vector<8x512xf32>
    %47 = tpu.matmul %45, %46, %cst_27 {dimension_numbers = #tpu.dot_dimension_numbers<[1], [0], [0], [1], [0, 0, 1, 1], [], []>} : vector<8x128xbf16>, vector<128x512xbf16>, vector<8x512xf32> -> vector<8x512xf32>
    %48 = arith.addf %44, %47 : vector<8x512xf32>
    %49 = vector.extract_strided_slice %48 {offsets = [0, 0], sizes = [8, 384], strides = [1, 1]} : vector<8x512xf32> to vector<8x384xf32>
    %50 = arith.negf %49 : vector<8x384xf32>
    %51 = math.exp %50 : vector<8x384xf32>
    %cst_28 = arith.constant 1.000000e+00 : f32
    %52 = vector.broadcast %cst_28 : f32 to vector<8x384xf32>
    %53 = arith.addf %52, %51 : vector<8x384xf32>
    %54 = arith.divf %52, %53 : vector<8x384xf32>
    %55 = vector.extract_strided_slice %48 {offsets = [0, 384], sizes = [8, 128], strides = [1, 1]} : vector<8x512xf32> to vector<8x128xf32>
    %56 = math.tanh %55 : vector<8x128xf32>
    %57 = vector.extract_strided_slice %54 {offsets = [0, 0], sizes = [8, 128], strides = [1, 1]} : vector<8x384xf32> to vector<8x128xf32>
    %58 = vector.extract_strided_slice %54 {offsets = [0, 128], sizes = [8, 128], strides = [1, 1]} : vector<8x384xf32> to vector<8x128xf32>
    %59 = vector.extract_strided_slice %54 {offsets = [0, 256], sizes = [8, 128], strides = [1, 1]} : vector<8x384xf32> to vector<8x128xf32>
    %60 = arith.mulf %58, %34 : vector<8x128xf32>
    %61 = arith.mulf %57, %56 : vector<8x128xf32>
    %62 = arith.addf %60, %61 : vector<8x128xf32>
    %63 = math.tanh %62 : vector<8x128xf32>
    %64 = arith.mulf %59, %63 : vector<8x128xf32>
    %65 = arith.truncf %64 : vector<8x128xf32> to vector<8x128xbf16>
    %66 = arith.index_cast %c1_i32 : i32 to index
    %c0_29 = arith.constant 0 : index
    %c0_30 = arith.constant 0 : index
    %67 = vector.load %arg6[%66, %c0_29, %c0_30] : memref<8x8x128xbf16, #tpu.memory_space<vmem>>, vector<1x8x128xbf16>
    %68 = vector.shape_cast %67 : vector<1x8x128xbf16> to vector<8x128xbf16>
    %69 = vector.shape_cast %65 : vector<8x128xbf16> to vector<1x8x128xbf16>
    tpu.vector_store %arg6[%66, %c0_29, %c0_30], %69 {strides = array<i32>} : memref<8x8x128xbf16, #tpu.memory_space<vmem>>, vector<1x8x128xbf16>,
    %c2_i32 = arith.constant 2 : i32
    %70 = arith.index_cast %c2_i32 : i32 to index
    %c0_31 = arith.constant 0 : index
    %c0_32 = arith.constant 0 : index
    %71 = vector.load %arg9[%70, %c0_31, %c0_32] : memref<8x8x512xf32, #tpu.memory_space<vmem>>, vector<1x8x512xf32>
    %72 = vector.shape_cast %71 : vector<1x8x512xf32> to vector<8x512xf32>
    %73 = arith.truncf %64 : vector<8x128xf32> to vector<8x128xbf16>
    %c0_33 = arith.constant 0 : index
    %c0_34 = arith.constant 0 : index
    %74 = vector.load %arg4[%c0_33, %c0_34] : memref<128x512xbf16, #tpu.memory_space<vmem>>, vector<128x512xbf16>
    %cst_35 = arith.constant dense<0.000000e+00> : vector<8x512xf32>
    %75 = tpu.matmul %73, %74, %cst_35 {dimension_numbers = #tpu.dot_dimension_numbers<[1], [0], [0], [1], [0, 0, 1, 1], [], []>} : vector<8x128xbf16>, vector<128x512xbf16>, vector<8x512xf32> -> vector<8x512xf32>
    %76 = arith.addf %72, %75 : vector<8x512xf32>
    %77 = vector.extract_strided_slice %76 {offsets = [0, 0], sizes = [8, 384], strides = [1, 1]} : vector<8x512xf32> to vector<8x384xf32>
    %78 = arith.negf %77 : vector<8x384xf32>
    %79 = math.exp %78 : vector<8x384xf32>
    %cst_36 = arith.constant 1.000000e+00 : f32
    %80 = vector.broadcast %cst_36 : f32 to vector<8x384xf32>
    %81 = arith.addf %80, %79 : vector<8x384xf32>
    %82 = arith.divf %80, %81 : vector<8x384xf32>
    %83 = vector.extract_strided_slice %76 {offsets = [0, 384], sizes = [8, 128], strides = [1, 1]} : vector<8x512xf32> to vector<8x128xf32>
    %84 = math.tanh %83 : vector<8x128xf32>
    %85 = vector.extract_strided_slice %82 {offsets = [0, 0], sizes = [8, 128], strides = [1, 1]} : vector<8x384xf32> to vector<8x128xf32>
    %86 = vector.extract_strided_slice %82 {offsets = [0, 128], sizes = [8, 128], strides = [1, 1]} : vector<8x384xf32> to vector<8x128xf32>
    %87 = vector.extract_strided_slice %82 {offsets = [0, 256], sizes = [8, 128], strides = [1, 1]} : vector<8x384xf32> to vector<8x128xf32>
    %88 = arith.mulf %86, %62 : vector<8x128xf32>
    %89 = arith.mulf %85, %84 : vector<8x128xf32>
    %90 = arith.addf %88, %89 : vector<8x128xf32>
    %91 = math.tanh %90 : vector<8x128xf32>
    %92 = arith.mulf %87, %91 : vector<8x128xf32>
    %93 = arith.truncf %92 : vector<8x128xf32> to vector<8x128xbf16>
    %94 = arith.index_cast %c2_i32 : i32 to index
    %c0_37 = arith.constant 0 : index
    %c0_38 = arith.constant 0 : index
    %95 = vector.load %arg6[%94, %c0_37, %c0_38] : memref<8x8x128xbf16, #tpu.memory_space<vmem>>, vector<1x8x128xbf16>
    %96 = vector.shape_cast %95 : vector<1x8x128xbf16> to vector<8x128xbf16>
    %97 = vector.shape_cast %93 : vector<8x128xbf16> to vector<1x8x128xbf16>
    tpu.vector_store %arg6[%94, %c0_37, %c0_38], %97 {strides = array<i32>} : memref<8x8x128xbf16, #tpu.memory_space<vmem>>, vector<1x8x128xbf16>,
    %c3_i32 = arith.constant 3 : i32
    %98 = arith.index_cast %c3_i32 : i32 to index
    %c0_39 = arith.constant 0 : index
    %c0_40 = arith.constant 0 : index
    %99 = vector.load %arg9[%98, %c0_39, %c0_40] : memref<8x8x512xf32, #tpu.memory_space<vmem>>, vector<1x8x512xf32>
    %100 = vector.shape_cast %99 : vector<1x8x512xf32> to vector<8x512xf32>
    %101 = arith.truncf %92 : vector<8x128xf32> to vector<8x128xbf16>
    %c0_41 = arith.constant 0 : index
    %c0_42 = arith.constant 0 : index
    %102 = vector.load %arg4[%c0_41, %c0_42] : memref<128x512xbf16, #tpu.memory_space<vmem>>, vector<128x512xbf16>
    %cst_43 = arith.constant dense<0.000000e+00> : vector<8x512xf32>
    %103 = tpu.matmul %101, %102, %cst_43 {dimension_numbers = #tpu.dot_dimension_numbers<[1], [0], [0], [1], [0, 0, 1, 1], [], []>} : vector<8x128xbf16>, vector<128x512xbf16>, vector<8x512xf32> -> vector<8x512xf32>
    %104 = arith.addf %100, %103 : vector<8x512xf32>
    %105 = vector.extract_strided_slice %104 {offsets = [0, 0], sizes = [8, 384], strides = [1, 1]} : vector<8x512xf32> to vector<8x384xf32>
    %106 = arith.negf %105 : vector<8x384xf32>
    %107 = math.exp %106 : vector<8x384xf32>
    %cst_44 = arith.constant 1.000000e+00 : f32
    %108 = vector.broadcast %cst_44 : f32 to vector<8x384xf32>
    %109 = arith.addf %108, %107 : vector<8x384xf32>
    %110 = arith.divf %108, %109 : vector<8x384xf32>
    %111 = vector.extract_strided_slice %104 {offsets = [0, 384], sizes = [8, 128], strides = [1, 1]} : vector<8x512xf32> to vector<8x128xf32>
    %112 = math.tanh %111 : vector<8x128xf32>
    %113 = vector.extract_strided_slice %110 {offsets = [0, 0], sizes = [8, 128], strides = [1, 1]} : vector<8x384xf32> to vector<8x128xf32>
    %114 = vector.extract_strided_slice %110 {offsets = [0, 128], sizes = [8, 128], strides = [1, 1]} : vector<8x384xf32> to vector<8x128xf32>
    %115 = vector.extract_strided_slice %110 {offsets = [0, 256], sizes = [8, 128], strides = [1, 1]} : vector<8x384xf32> to vector<8x128xf32>
    %116 = arith.mulf %114, %90 : vector<8x128xf32>
    %117 = arith.mulf %113, %112 : vector<8x128xf32>
    %118 = arith.addf %116, %117 : vector<8x128xf32>
    %119 = math.tanh %118 : vector<8x128xf32>
    %120 = arith.mulf %115, %119 : vector<8x128xf32>
    %121 = arith.truncf %120 : vector<8x128xf32> to vector<8x128xbf16>
    %122 = arith.index_cast %c3_i32 : i32 to index
    %c0_45 = arith.constant 0 : index
    %c0_46 = arith.constant 0 : index
    %123 = vector.load %arg6[%122, %c0_45, %c0_46] : memref<8x8x128xbf16, #tpu.memory_space<vmem>>, vector<1x8x128xbf16>
    %124 = vector.shape_cast %123 : vector<1x8x128xbf16> to vector<8x128xbf16>
    %125 = vector.shape_cast %121 : vector<8x128xbf16> to vector<1x8x128xbf16>
    tpu.vector_store %arg6[%122, %c0_45, %c0_46], %125 {strides = array<i32>} : memref<8x8x128xbf16, #tpu.memory_space<vmem>>, vector<1x8x128xbf16>,
    %c4_i32 = arith.constant 4 : i32
    %126 = arith.index_cast %c4_i32 : i32 to index
    %c0_47 = arith.constant 0 : index
    %c0_48 = arith.constant 0 : index
    %127 = vector.load %arg9[%126, %c0_47, %c0_48] : memref<8x8x512xf32, #tpu.memory_space<vmem>>, vector<1x8x512xf32>
    %128 = vector.shape_cast %127 : vector<1x8x512xf32> to vector<8x512xf32>
    %129 = arith.truncf %120 : vector<8x128xf32> to vector<8x128xbf16>
    %c0_49 = arith.constant 0 : index
    %c0_50 = arith.constant 0 : index
    %130 = vector.load %arg4[%c0_49, %c0_50] : memref<128x512xbf16, #tpu.memory_space<vmem>>, vector<128x512xbf16>
    %cst_51 = arith.constant dense<0.000000e+00> : vector<8x512xf32>
    %131 = tpu.matmul %129, %130, %cst_51 {dimension_numbers = #tpu.dot_dimension_numbers<[1], [0], [0], [1], [0, 0, 1, 1], [], []>} : vector<8x128xbf16>, vector<128x512xbf16>, vector<8x512xf32> -> vector<8x512xf32>
    %132 = arith.addf %128, %131 : vector<8x512xf32>
    %133 = vector.extract_strided_slice %132 {offsets = [0, 0], sizes = [8, 384], strides = [1, 1]} : vector<8x512xf32> to vector<8x384xf32>
    %134 = arith.negf %133 : vector<8x384xf32>
    %135 = math.exp %134 : vector<8x384xf32>
    %cst_52 = arith.constant 1.000000e+00 : f32
    %136 = vector.broadcast %cst_52 : f32 to vector<8x384xf32>
    %137 = arith.addf %136, %135 : vector<8x384xf32>
    %138 = arith.divf %136, %137 : vector<8x384xf32>
    %139 = vector.extract_strided_slice %132 {offsets = [0, 384], sizes = [8, 128], strides = [1, 1]} : vector<8x512xf32> to vector<8x128xf32>
    %140 = math.tanh %139 : vector<8x128xf32>
    %141 = vector.extract_strided_slice %138 {offsets = [0, 0], sizes = [8, 128], strides = [1, 1]} : vector<8x384xf32> to vector<8x128xf32>
    %142 = vector.extract_strided_slice %138 {offsets = [0, 128], sizes = [8, 128], strides = [1, 1]} : vector<8x384xf32> to vector<8x128xf32>
    %143 = vector.extract_strided_slice %138 {offsets = [0, 256], sizes = [8, 128], strides = [1, 1]} : vector<8x384xf32> to vector<8x128xf32>
    %144 = arith.mulf %142, %118 : vector<8x128xf32>
    %145 = arith.mulf %141, %140 : vector<8x128xf32>
    %146 = arith.addf %144, %145 : vector<8x128xf32>
    %147 = math.tanh %146 : vector<8x128xf32>
    %148 = arith.mulf %143, %147 : vector<8x128xf32>
    %149 = arith.truncf %148 : vector<8x128xf32> to vector<8x128xbf16>
    %150 = arith.index_cast %c4_i32 : i32 to index
    %c0_53 = arith.constant 0 : index
    %c0_54 = arith.constant 0 : index
    %151 = vector.load %arg6[%150, %c0_53, %c0_54] : memref<8x8x128xbf16, #tpu.memory_space<vmem>>, vector<1x8x128xbf16>
    %152 = vector.shape_cast %151 : vector<1x8x128xbf16> to vector<8x128xbf16>
    %153 = vector.shape_cast %149 : vector<8x128xbf16> to vector<1x8x128xbf16>
    tpu.vector_store %arg6[%150, %c0_53, %c0_54], %153 {strides = array<i32>} : memref<8x8x128xbf16, #tpu.memory_space<vmem>>, vector<1x8x128xbf16>,
    %c5_i32 = arith.constant 5 : i32
    %154 = arith.index_cast %c5_i32 : i32 to index
    %c0_55 = arith.constant 0 : index
    %c0_56 = arith.constant 0 : index
    %155 = vector.load %arg9[%154, %c0_55, %c0_56] : memref<8x8x512xf32, #tpu.memory_space<vmem>>, vector<1x8x512xf32>
    %156 = vector.shape_cast %155 : vector<1x8x512xf32> to vector<8x512xf32>
    %157 = arith.truncf %148 : vector<8x128xf32> to vector<8x128xbf16>
    %c0_57 = arith.constant 0 : index
    %c0_58 = arith.constant 0 : index
    %158 = vector.load %arg4[%c0_57, %c0_58] : memref<128x512xbf16, #tpu.memory_space<vmem>>, vector<128x512xbf16>
    %cst_59 = arith.constant dense<0.000000e+00> : vector<8x512xf32>
    %159 = tpu.matmul %157, %158, %cst_59 {dimension_numbers = #tpu.dot_dimension_numbers<[1], [0], [0], [1], [0, 0, 1, 1], [], []>} : vector<8x128xbf16>, vector<128x512xbf16>, vector<8x512xf32> -> vector<8x512xf32>
    %160 = arith.addf %156, %159 : vector<8x512xf32>
    %161 = vector.extract_strided_slice %160 {offsets = [0, 0], sizes = [8, 384], strides = [1, 1]} : vector<8x512xf32> to vector<8x384xf32>
    %162 = arith.negf %161 : vector<8x384xf32>
    %163 = math.exp %162 : vector<8x384xf32>
    %cst_60 = arith.constant 1.000000e+00 : f32
    %164 = vector.broadcast %cst_60 : f32 to vector<8x384xf32>
    %165 = arith.addf %164, %163 : vector<8x384xf32>
    %166 = arith.divf %164, %165 : vector<8x384xf32>
    %167 = vector.extract_strided_slice %160 {offsets = [0, 384], sizes = [8, 128], strides = [1, 1]} : vector<8x512xf32> to vector<8x128xf32>
    %168 = math.tanh %167 : vector<8x128xf32>
    %169 = vector.extract_strided_slice %166 {offsets = [0, 0], sizes = [8, 128], strides = [1, 1]} : vector<8x384xf32> to vector<8x128xf32>
    %170 = vector.extract_strided_slice %166 {offsets = [0, 128], sizes = [8, 128], strides = [1, 1]} : vector<8x384xf32> to vector<8x128xf32>
    %171 = vector.extract_strided_slice %166 {offsets = [0, 256], sizes = [8, 128], strides = [1, 1]} : vector<8x384xf32> to vector<8x128xf32>
    %172 = arith.mulf %170, %146 : vector<8x128xf32>
    %173 = arith.mulf %169, %168 : vector<8x128xf32>
    %174 = arith.addf %172, %173 : vector<8x128xf32>
    %175 = math.tanh %174 : vector<8x128xf32>
    %176 = arith.mulf %171, %175 : vector<8x128xf32>
    %177 = arith.truncf %176 : vector<8x128xf32> to vector<8x128xbf16>
    %178 = arith.index_cast %c5_i32 : i32 to index
    %c0_61 = arith.constant 0 : index
    %c0_62 = arith.constant 0 : index
    %179 = vector.load %arg6[%178, %c0_61, %c0_62] : memref<8x8x128xbf16, #tpu.memory_space<vmem>>, vector<1x8x128xbf16>
    %180 = vector.shape_cast %179 : vector<1x8x128xbf16> to vector<8x128xbf16>
    %181 = vector.shape_cast %177 : vector<8x128xbf16> to vector<1x8x128xbf16>
    tpu.vector_store %arg6[%178, %c0_61, %c0_62], %181 {strides = array<i32>} : memref<8x8x128xbf16, #tpu.memory_space<vmem>>, vector<1x8x128xbf16>,
    %c6_i32 = arith.constant 6 : i32
    %182 = arith.index_cast %c6_i32 : i32 to index
    %c0_63 = arith.constant 0 : index
    %c0_64 = arith.constant 0 : index
    %183 = vector.load %arg9[%182, %c0_63, %c0_64] : memref<8x8x512xf32, #tpu.memory_space<vmem>>, vector<1x8x512xf32>
    %184 = vector.shape_cast %183 : vector<1x8x512xf32> to vector<8x512xf32>
    %185 = arith.truncf %176 : vector<8x128xf32> to vector<8x128xbf16>
    %c0_65 = arith.constant 0 : index
    %c0_66 = arith.constant 0 : index
    %186 = vector.load %arg4[%c0_65, %c0_66] : memref<128x512xbf16, #tpu.memory_space<vmem>>, vector<128x512xbf16>
    %cst_67 = arith.constant dense<0.000000e+00> : vector<8x512xf32>
    %187 = tpu.matmul %185, %186, %cst_67 {dimension_numbers = #tpu.dot_dimension_numbers<[1], [0], [0], [1], [0, 0, 1, 1], [], []>} : vector<8x128xbf16>, vector<128x512xbf16>, vector<8x512xf32> -> vector<8x512xf32>
    %188 = arith.addf %184, %187 : vector<8x512xf32>
    %189 = vector.extract_strided_slice %188 {offsets = [0, 0], sizes = [8, 384], strides = [1, 1]} : vector<8x512xf32> to vector<8x384xf32>
    %190 = arith.negf %189 : vector<8x384xf32>
    %191 = math.exp %190 : vector<8x384xf32>
    %cst_68 = arith.constant 1.000000e+00 : f32
    %192 = vector.broadcast %cst_68 : f32 to vector<8x384xf32>
    %193 = arith.addf %192, %191 : vector<8x384xf32>
    %194 = arith.divf %192, %193 : vector<8x384xf32>
    %195 = vector.extract_strided_slice %188 {offsets = [0, 384], sizes = [8, 128], strides = [1, 1]} : vector<8x512xf32> to vector<8x128xf32>
    %196 = math.tanh %195 : vector<8x128xf32>
    %197 = vector.extract_strided_slice %194 {offsets = [0, 0], sizes = [8, 128], strides = [1, 1]} : vector<8x384xf32> to vector<8x128xf32>
    %198 = vector.extract_strided_slice %194 {offsets = [0, 128], sizes = [8, 128], strides = [1, 1]} : vector<8x384xf32> to vector<8x128xf32>
    %199 = vector.extract_strided_slice %194 {offsets = [0, 256], sizes = [8, 128], strides = [1, 1]} : vector<8x384xf32> to vector<8x128xf32>
    %200 = arith.mulf %198, %174 : vector<8x128xf32>
    %201 = arith.mulf %197, %196 : vector<8x128xf32>
    %202 = arith.addf %200, %201 : vector<8x128xf32>
    %203 = math.tanh %202 : vector<8x128xf32>
    %204 = arith.mulf %199, %203 : vector<8x128xf32>
    %205 = arith.truncf %204 : vector<8x128xf32> to vector<8x128xbf16>
    %206 = arith.index_cast %c6_i32 : i32 to index
    %c0_69 = arith.constant 0 : index
    %c0_70 = arith.constant 0 : index
    %207 = vector.load %arg6[%206, %c0_69, %c0_70] : memref<8x8x128xbf16, #tpu.memory_space<vmem>>, vector<1x8x128xbf16>
    %208 = vector.shape_cast %207 : vector<1x8x128xbf16> to vector<8x128xbf16>
    %209 = vector.shape_cast %205 : vector<8x128xbf16> to vector<1x8x128xbf16>
    tpu.vector_store %arg6[%206, %c0_69, %c0_70], %209 {strides = array<i32>} : memref<8x8x128xbf16, #tpu.memory_space<vmem>>, vector<1x8x128xbf16>,
    %c7_i32 = arith.constant 7 : i32
    %210 = arith.index_cast %c7_i32 : i32 to index
    %c0_71 = arith.constant 0 : index
    %c0_72 = arith.constant 0 : index
    %211 = vector.load %arg9[%210, %c0_71, %c0_72] : memref<8x8x512xf32, #tpu.memory_space<vmem>>, vector<1x8x512xf32>
    %212 = vector.shape_cast %211 : vector<1x8x512xf32> to vector<8x512xf32>
    %213 = arith.truncf %204 : vector<8x128xf32> to vector<8x128xbf16>
    %c0_73 = arith.constant 0 : index
    %c0_74 = arith.constant 0 : index
    %214 = vector.load %arg4[%c0_73, %c0_74] : memref<128x512xbf16, #tpu.memory_space<vmem>>, vector<128x512xbf16>
    %cst_75 = arith.constant dense<0.000000e+00> : vector<8x512xf32>
    %215 = tpu.matmul %213, %214, %cst_75 {dimension_numbers = #tpu.dot_dimension_numbers<[1], [0], [0], [1], [0, 0, 1, 1], [], []>} : vector<8x128xbf16>, vector<128x512xbf16>, vector<8x512xf32> -> vector<8x512xf32>
    %216 = arith.addf %212, %215 : vector<8x512xf32>
    %217 = vector.extract_strided_slice %216 {offsets = [0, 0], sizes = [8, 384], strides = [1, 1]} : vector<8x512xf32> to vector<8x384xf32>
    %218 = arith.negf %217 : vector<8x384xf32>
    %219 = math.exp %218 : vector<8x384xf32>
    %cst_76 = arith.constant 1.000000e+00 : f32
    %220 = vector.broadcast %cst_76 : f32 to vector<8x384xf32>
    %221 = arith.addf %220, %219 : vector<8x384xf32>
    %222 = arith.divf %220, %221 : vector<8x384xf32>
    %223 = vector.extract_strided_slice %216 {offsets = [0, 384], sizes = [8, 128], strides = [1, 1]} : vector<8x512xf32> to vector<8x128xf32>
    %224 = math.tanh %223 : vector<8x128xf32>
    %225 = vector.extract_strided_slice %222 {offsets = [0, 0], sizes = [8, 128], strides = [1, 1]} : vector<8x384xf32> to vector<8x128xf32>
    %226 = vector.extract_strided_slice %222 {offsets = [0, 128], sizes = [8, 128], strides = [1, 1]} : vector<8x384xf32> to vector<8x128xf32>
    %227 = vector.extract_strided_slice %222 {offsets = [0, 256], sizes = [8, 128], strides = [1, 1]} : vector<8x384xf32> to vector<8x128xf32>
    %228 = arith.mulf %226, %202 : vector<8x128xf32>
    %229 = arith.mulf %225, %224 : vector<8x128xf32>
    %230 = arith.addf %228, %229 : vector<8x128xf32>
    %231 = math.tanh %230 : vector<8x128xf32>
    %232 = arith.mulf %227, %231 : vector<8x128xf32>
    %233 = arith.truncf %232 : vector<8x128xf32> to vector<8x128xbf16>
    %234 = arith.index_cast %c7_i32 : i32 to index
    %c0_77 = arith.constant 0 : index
    %c0_78 = arith.constant 0 : index
    %235 = vector.load %arg6[%234, %c0_77, %c0_78] : memref<8x8x128xbf16, #tpu.memory_space<vmem>>, vector<1x8x128xbf16>
    %236 = vector.shape_cast %235 : vector<1x8x128xbf16> to vector<8x128xbf16>
    %237 = vector.shape_cast %233 : vector<8x128xbf16> to vector<1x8x128xbf16>
    tpu.vector_store %arg6[%234, %c0_77, %c0_78], %237 {strides = array<i32>} : memref<8x8x128xbf16, #tpu.memory_space<vmem>>, vector<1x8x128xbf16>,
    %c8_i32 = arith.constant 8 : i32
    %c0_79 = arith.constant 0 : index
    %c0_80 = arith.constant 0 : index
    %238 = vector.load %arg7[%c0_79, %c0_80] : memref<8x128xf32, #tpu.memory_space<vmem>>, vector<8x128xf32>
    tpu.vector_store %arg7[%c0_79, %c0_80], %232 {strides = array<i32>} : memref<8x128xf32, #tpu.memory_space<vmem>>, vector<8x128xf32>,
    %c0_81 = arith.constant 0 : index
    %c0_82 = arith.constant 0 : index
    %239 = vector.load %arg8[%c0_81, %c0_82] : memref<8x128xf32, #tpu.memory_space<vmem>>, vector<8x128xf32>
    tpu.vector_store %arg8[%c0_81, %c0_82], %230 {strides = array<i32>} : memref<8x128xf32, #tpu.memory_space<vmem>>, vector<8x128xf32>,
    return
  }
  func.func @transform_0(%arg0: i32, %arg1: i32) -> (i32, i32, i32) {
    %c0_i32 = arith.constant 0 : i32
    %c0_i32_0 = arith.constant 0 : i32
    return %arg1, %arg0, %c0_i32 : i32, i32, i32
  }
  func.func @transform_1(%arg0: i32, %arg1: i32) -> (i32, i32) {
    %c0_i32 = arith.constant 0 : i32
    %c0_i32_0 = arith.constant 0 : i32
    %c0_i32_1 = arith.constant 0 : i32
    return %c0_i32, %c0_i32_0 : i32, i32
  }
  func.func @transform_2(%arg0: i32, %arg1: i32) -> (i32, i32) {
    %c0_i32 = arith.constant 0 : i32
    %c0_i32_0 = arith.constant 0 : i32
    %c0_i32_1 = arith.constant 0 : i32
    return %c0_i32, %c0_i32_0 : i32, i32
  }
  func.func @transform_3(%arg0: i32, %arg1: i32) -> (i32, i32) {
    %c0_i32 = arith.constant 0 : i32
    %c0_i32_0 = arith.constant 0 : i32
    %c0_i32_1 = arith.constant 0 : i32
    return %c0_i32, %c0_i32_0 : i32, i32
  }
  func.func @transform_4(%arg0: i32, %arg1: i32) -> (i32, i32, i32) {
    %c0_i32 = arith.constant 0 : i32
    %c0_i32_0 = arith.constant 0 : i32
    return %arg1, %arg0, %c0_i32 : i32, i32, i32
  }
}

</mosaic_0001>

<llo_original>
// kernel: tk_stacked_lstm_forward.3
$region0: #{tk_stacked_lstm_forward.3}
  #allocation0 [shape = 'u32[]', space=smem, size = 0x4, offset = 0x4, fixed_abs, tag = 'smem constant byte address 0x4 - core index']
  #allocation1 [shape = 'u32[72,128]{1,0:T(1,128)}', space=vmem, size = 0x9000, scoped, tag = 'internal scratch']
  #allocation2 [shape = 'f32[8,128]{1,0:T(8,128)}', space=vmem, size = 0x1000, scoped, tag = 'scratch operand']
  #allocation3 [shape = 'f32[8,128]{1,0:T(8,128)}', space=vmem, size = 0x1000, scoped, tag = 'scratch operand']
  #allocation4 [shape = 'f32[8,8,512]{2,1,0:T(8,128)}', space=vmem, size = 0x20000, scoped, tag = 'scratch operand']
  %s0 = inlined_call_operand.vmem [shape: bf16[8,8,128], index: 0, kind: input, shape index: {}]
  %s1 = inlined_call_operand.hbm [shape: bf16[128,512], index: 1, kind: input, shape index: {}]
  %s2 = inlined_call_operand.hbm [shape: bf16[128,512], index: 2, kind: input, shape index: {}]
  %s3 = inlined_call_operand.vmem [shape: f32[1,512], index: 3, kind: input, shape index: {}]
  %s4 = inlined_call_operand.vmem [shape: f32[8,128], index: 4, kind: output, shape index: {}]
  %s5 = sld [smem:[#allocation0]]
  $region70: #{tk_stacked_lstm_forward.3} parent=0
    _
  %s7 = ssub.s32 1, %s5
  %s8 = scalar_select 0, %s7, %s5
  $region1: #{tk_stacked_lstm_forward.3} parent=0
    #allocation5 [shape = 'u8[131072]{0}', space=vmem, size = 0x20000, scoped, tag = 'input window, operand 1, single buffered']
    #allocation6 [shape = 's32[1]{0}', space=sflag, size = 0x4, scoped, tag = 'scoped memory for tk_stacked_lstm_forward.3']
    #allocation7 [shape = 'u8[131072]{0}', space=vmem, size = 0x20000, scoped, tag = 'input window, operand 2, single buffered']
    #allocation8 [shape = 's32[1]{0}', space=sflag, size = 0x4, scoped, tag = 'scoped memory for tk_stacked_lstm_forward.3']
    %9 = vsyncpa [#allocation6], 0
    %10 = vsyncpa [#allocation8], 0
    // Predicated region
    $region2: #{tk_stacked_lstm_forward.3} parent=1 // pred_check
      _
    $region3: #{tk_stacked_lstm_forward.3} parent=1 // pred_check_branch
      %12 = sbr.rel (0) target = $region5
    $region4: #{tk_stacked_lstm_forward.3} parent=1 // pred_region
      _
    $region5: #{tk_stacked_lstm_forward.3} parent=1 // pred_fallthru
      _
    // Predicated region
    $region6: #{tk_stacked_lstm_forward.3} parent=1 // pred_check
      _
    $region7: #{tk_stacked_lstm_forward.3} parent=1 // pred_check_branch
      %14 = sbr.rel (0) target = $region9
    $region8: #{tk_stacked_lstm_forward.3} parent=1 // pred_region
      %16 = vsyncadd [#allocation6], 0
      %s17 = sshll.u32 %s1, 4
      %s18 = int_to_ptr.hbm [resolvable:$true] %s17
      %s19 = sshll.u32 [#allocation5], 4
      %s20 = int_to_ptr.vmem [resolvable:$true] %s19
      %25 = dma.hbm_to_vmem [thread:$0]  %s18, 4096, %s20, [#allocation6], 256, 256, 16
    $region9: #{tk_stacked_lstm_forward.3} parent=1 // pred_fallthru
      _
    // Predicated region
    $region10: #{tk_stacked_lstm_forward.3} parent=1 // pred_check
      _
    $region11: #{tk_stacked_lstm_forward.3} parent=1 // pred_check_branch
      %27 = sbr.rel (0) target = $region13
    $region12: #{tk_stacked_lstm_forward.3} parent=1 // pred_region
      %29 = vsyncadd [#allocation8], 0
      %s30 = sshll.u32 %s2, 4
      %s31 = int_to_ptr.hbm [resolvable:$true] %s30
      %s32 = sshll.u32 [#allocation7], 4
      %s33 = int_to_ptr.vmem [resolvable:$true] %s32
      %38 = dma.hbm_to_vmem [thread:$0]  %s31, 4096, %s33, [#allocation8], 256, 256, 16
    $region13: #{tk_stacked_lstm_forward.3} parent=1 // pred_fallthru
      _
    // Predicated region
    $region14: #{tk_stacked_lstm_forward.3} parent=1 // pred_check
      _
    $region15: #{tk_stacked_lstm_forward.3} parent=1 // pred_check_branch
      %40 = sbr.rel (0) target = $region17
    $region16: #{tk_stacked_lstm_forward.3} parent=1 // pred_region
      _
    $region17: #{tk_stacked_lstm_forward.3} parent=1 // pred_fallthru
      _
    // Predicated region
    $region18: #{tk_stacked_lstm_forward.3} parent=1 // pred_check
      _
    $region19: #{tk_stacked_lstm_forward.3} parent=1 // pred_check_branch
      %42 = sbr.rel (0) target = $region21
    $region20: #{tk_stacked_lstm_forward.3} parent=1 // pred_region
      %44 = dma.done [#allocation6], 4096
    $region21: #{tk_stacked_lstm_forward.3} parent=1 // pred_fallthru
      _
    // Predicated region
    $region22: #{tk_stacked_lstm_forward.3} parent=1 // pred_check
      _
    $region23: #{tk_stacked_lstm_forward.3} parent=1 // pred_check_branch
      %46 = sbr.rel (0) target = $region25
    $region24: #{tk_stacked_lstm_forward.3} parent=1 // pred_region
      %48 = dma.done [#allocation8], 4096
    $region25: #{tk_stacked_lstm_forward.3} parent=1 // pred_fallthru
      _
    %p49 = scmp.eq.s32.totalorder 0, 0
    // Predicated region
    $region26: #{tk_stacked_lstm_forward.3} parent=1 // pred_check
      %p50 = pneg %p49
    $region27: #{tk_stacked_lstm_forward.3} parent=1 // pred_check_branch
      %52 = sbr.rel (%p50) target = $region29
    $region28: #{tk_stacked_lstm_forward.3} parent=1 // pred_region
      %53 = vst [vmem:[#allocation2] sm:$0xff] 0.0
      %54 = vst [vmem:[#allocation3] sm:$0xff] 0.0
    $region29: #{tk_stacked_lstm_forward.3} parent=1 // pred_fallthru
      _
    %v55 = vld [vmem:[%s0] sm:$0xf]
    %v56 = vld [vmem:[%s0 + $0x4] sm:$0xf]
    %v57 = vld [vmem:[%s0 + $0x8] sm:$0xf]
    %v58 = vld [vmem:[%s0 + $0xc] sm:$0xf]
    %v59 = vld [vmem:[%s0 + $0x10] sm:$0xf]
    %v60 = vld [vmem:[%s0 + $0x14] sm:$0xf]
    %v61 = vld [vmem:[%s0 + $0x18] sm:$0xf]
    %v62 = vld [vmem:[%s0 + $0x1c] sm:$0xf]
    %v63 = vld [vmem:[#allocation5] sm:$0xff]
    %v64 = vld [vmem:[#allocation5 + $0x8] sm:$0xff]
    %v65 = vld [vmem:[#allocation5 + $0x10] sm:$0xff]
    %v66 = vld [vmem:[#allocation5 + $0x18] sm:$0xff]
    %v67 = vld [vmem:[#allocation5 + $0x20] sm:$0xff]
    %v68 = vld [vmem:[#allocation5 + $0x28] sm:$0xff]
    %v69 = vld [vmem:[#allocation5 + $0x30] sm:$0xff]
    %v70 = vld [vmem:[#allocation5 + $0x38] sm:$0xff]
    %v71 = vld [vmem:[#allocation5 + $0x40] sm:$0xff]
    %v72 = vld [vmem:[#allocation5 + $0x48] sm:$0xff]
    %v73 = vld [vmem:[#allocation5 + $0x50] sm:$0xff]
    %v74 = vld [vmem:[#allocation5 + $0x58] sm:$0xff]
    %v75 = vld [vmem:[#allocation5 + $0x60] sm:$0xff]
    %v76 = vld [vmem:[#allocation5 + $0x68] sm:$0xff]
    %v77 = vld [vmem:[#allocation5 + $0x70] sm:$0xff]
    %v78 = vld [vmem:[#allocation5 + $0x78] sm:$0xff]
    %v79 = vld [vmem:[#allocation5 + $0x80] sm:$0xff]
    %v80 = vld [vmem:[#allocation5 + $0x88] sm:$0xff]
    %v81 = vld [vmem:[#allocation5 + $0x90] sm:$0xff]
    %v82 = vld [vmem:[#allocation5 + $0x98] sm:$0xff]
    %v83 = vld [vmem:[#allocation5 + $0xa0] sm:$0xff]
    %v84 = vld [vmem:[#allocation5 + $0xa8] sm:$0xff]
    %v85 = vld [vmem:[#allocation5 + $0xb0] sm:$0xff]
    %v86 = vld [vmem:[#allocation5 + $0xb8] sm:$0xff]
    %v87 = vld [vmem:[#allocation5 + $0xc0] sm:$0xff]
    %v88 = vld [vmem:[#allocation5 + $0xc8] sm:$0xff]
    %v89 = vld [vmem:[#allocation5 + $0xd0] sm:$0xff]
    %v90 = vld [vmem:[#allocation5 + $0xd8] sm:$0xff]
    %v91 = vld [vmem:[#allocation5 + $0xe0] sm:$0xff]
    %v92 = vld [vmem:[#allocation5 + $0xe8] sm:$0xff]
    %v93 = vld [vmem:[#allocation5 + $0xf0] sm:$0xff]
    %v94 = vld [vmem:[#allocation5 + $0xf8] sm:$0xff]
    %v95 = vld [vmem:[%s3] sm:$0xf]
    %v97 = vperm.slane %v95, 0
    %v98 = vperm.slane %v95, 1
    %v99 = vperm.slane %v95, 2
    %v100 = vperm.slane %v95, 3
    %v113 = vunpack.c.l.b16 %v55
    %v114 = vunpack.c.l.b16 %v56
    %v115 = vunpack.c.l.b16 %v57
    %v116 = vunpack.c.l.b16 %v58
    %v117 = vunpack.c.l.b16 %v59
    %v118 = vunpack.c.l.b16 %v60
    %v119 = vunpack.c.l.b16 %v61
    %v120 = vunpack.c.l.b16 %v62
    %v121 = vpack.c.b16 %v114, %v113
    %v122 = vpack.c.b16 %v116, %v115
    %v123 = vpack.c.b16 %v118, %v117
    %v124 = vpack.c.b16 %v120, %v119
    %v161 = vunpack.c.l.b16 %v63
    %v162 = vunpack.c.h.b16 %v63
    %v163 = vunpack.c.l.b16 %v64
    %v164 = vunpack.c.h.b16 %v64
    %v165 = vunpack.c.l.b16 %v65
    %v166 = vunpack.c.h.b16 %v65
    %v167 = vunpack.c.l.b16 %v66
    %v168 = vunpack.c.h.b16 %v66
    %v169 = vunpack.c.l.b16 %v67
    %v170 = vunpack.c.h.b16 %v67
    %v171 = vunpack.c.l.b16 %v68
    %v172 = vunpack.c.h.b16 %v68
    %v173 = vunpack.c.l.b16 %v69
    %v174 = vunpack.c.h.b16 %v69
    %v175 = vunpack.c.l.b16 %v70
    %v176 = vunpack.c.h.b16 %v70
    %v177 = vunpack.c.l.b16 %v71
    %v178 = vunpack.c.h.b16 %v71
    %v179 = vunpack.c.l.b16 %v72
    %v180 = vunpack.c.h.b16 %v72
    %v181 = vunpack.c.l.b16 %v73
    %v182 = vunpack.c.h.b16 %v73
    %v183 = vunpack.c.l.b16 %v74
    %v184 = vunpack.c.h.b16 %v74
    %v185 = vunpack.c.l.b16 %v75
    %v186 = vunpack.c.h.b16 %v75
    %v187 = vunpack.c.l.b16 %v76
    %v188 = vunpack.c.h.b16 %v76
    %v189 = vunpack.c.l.b16 %v77
    %v190 = vunpack.c.h.b16 %v77
    %v191 = vunpack.c.l.b16 %v78
    %v192 = vunpack.c.h.b16 %v78
    %v193 = vunpack.c.l.b16 %v79
    %v194 = vunpack.c.h.b16 %v79
    %v195 = vunpack.c.l.b16 %v80
    %v196 = vunpack.c.h.b16 %v80
    %v197 = vunpack.c.l.b16 %v81
    %v198 = vunpack.c.h.b16 %v81
    %v199 = vunpack.c.l.b16 %v82
    %v200 = vunpack.c.h.b16 %v82
    %v201 = vunpack.c.l.b16 %v83
    %v202 = vunpack.c.h.b16 %v83
    %v203 = vunpack.c.l.b16 %v84
    %v204 = vunpack.c.h.b16 %v84
    %v205 = vunpack.c.l.b16 %v85
    %v206 = vunpack.c.h.b16 %v85
    %v207 = vunpack.c.l.b16 %v86
    %v208 = vunpack.c.h.b16 %v86
    %v209 = vunpack.c.l.b16 %v87
    %v210 = vunpack.c.h.b16 %v87
    %v211 = vunpack.c.l.b16 %v88
    %v212 = vunpack.c.h.b16 %v88
    %v213 = vunpack.c.l.b16 %v89
    %v214 = vunpack.c.h.b16 %v89
    %v215 = vunpack.c.l.b16 %v90
    %v216 = vunpack.c.h.b16 %v90
    %v217 = vunpack.c.l.b16 %v91
    %v218 = vunpack.c.h.b16 %v91
    %v219 = vunpack.c.l.b16 %v92
    %v220 = vunpack.c.h.b16 %v92
    %v221 = vunpack.c.l.b16 %v93
    %v222 = vunpack.c.h.b16 %v93
    %v223 = vunpack.c.l.b16 %v94
    %v224 = vunpack.c.h.b16 %v94
    %v225 = vpack.c.b16 %v165, %v161
    %v226 = vpack.c.b16 %v166, %v162
    %v227 = vpack.c.b16 %v167, %v163
    %v228 = vpack.c.b16 %v168, %v164
    %v229 = vpack.c.b16 %v173, %v169
    %v230 = vpack.c.b16 %v174, %v170
    %v231 = vpack.c.b16 %v175, %v171
    %v232 = vpack.c.b16 %v176, %v172
    %v233 = vpack.c.b16 %v181, %v177
    %v234 = vpack.c.b16 %v182, %v178
    %v235 = vpack.c.b16 %v183, %v179
    %v236 = vpack.c.b16 %v184, %v180
    %v237 = vpack.c.b16 %v189, %v185
    %v238 = vpack.c.b16 %v190, %v186
    %v239 = vpack.c.b16 %v191, %v187
    %v240 = vpack.c.b16 %v192, %v188
    %v241 = vpack.c.b16 %v197, %v193
    %v242 = vpack.c.b16 %v198, %v194
    %v243 = vpack.c.b16 %v199, %v195
    %v244 = vpack.c.b16 %v200, %v196
    %v245 = vpack.c.b16 %v205, %v201
    %v246 = vpack.c.b16 %v206, %v202
    %v247 = vpack.c.b16 %v207, %v203
    %v248 = vpack.c.b16 %v208, %v204
    %v249 = vpack.c.b16 %v213, %v209
    %v250 = vpack.c.b16 %v214, %v210
    %v251 = vpack.c.b16 %v215, %v211
    %v252 = vpack.c.b16 %v216, %v212
    %v253 = vpack.c.b16 %v221, %v217
    %v254 = vpack.c.b16 %v222, %v218
    %v255 = vpack.c.b16 %v223, %v219
    %v256 = vpack.c.b16 %v224, %v220
    %289 = vmatpush.bf16.msra.mxu0 %v253
    %290 = vmatpush.bf16.msra.mxu0 %v249
    %291 = vmatpush.bf16.msra.mxu0 %v245
    %292 = vmatpush.bf16.msra.mxu0 %v241
    %293 = vmatpush.bf16.msra.mxu0 %v237
    %294 = vmatpush.bf16.msra.mxu0 %v233
    %295 = vmatpush.bf16.msra.mxu0 %v229
    %296 = vmatpush.bf16.msra.mxu0 %v225
    %297 = vmatmul.bf16.gmra.mxu0 %v121
    %v298 = vpop.f32.mrf.mxu0
    %v299 = vadd.f32 %v97, %v298
    %v300 = vpop.f32.mrf.mxu0
    %v301 = vadd.f32 %v97, %v300
    %302 = vmatmul.bf16.gmra.mxu0 %v122
    %v303 = vpop.f32.mrf.mxu0
    %v304 = vadd.f32 %v97, %v303
    %v305 = vpop.f32.mrf.mxu0
    %v306 = vadd.f32 %v97, %v305
    %307 = vmatmul.bf16.gmra.mxu0 %v123
    %v308 = vpop.f32.mrf.mxu0
    %v309 = vadd.f32 %v97, %v308
    %v310 = vpop.f32.mrf.mxu0
    %v311 = vadd.f32 %v97, %v310
    %312 = vmatmul.bf16.gmra.mxu0 %v124
    %v313 = vpop.f32.mrf.mxu0
    %v314 = vadd.f32 %v97, %v313
    %v315 = vpop.f32.mrf.mxu0
    %v316 = vadd.f32 %v97, %v315
    %317 = vdwg.mxu0
    %318 = vmatpush.bf16.msra.mxu0 %v254
    %319 = vmatpush.bf16.msra.mxu0 %v250
    %320 = vmatpush.bf16.msra.mxu0 %v246
    %321 = vmatpush.bf16.msra.mxu0 %v242
    %322 = vmatpush.bf16.msra.mxu0 %v238
    %323 = vmatpush.bf16.msra.mxu0 %v234
    %324 = vmatpush.bf16.msra.mxu0 %v230
    %325 = vmatpush.bf16.msra.mxu0 %v226
    %326 = vmatmul.bf16.gmra.mxu0 %v121
    %v327 = vpop.f32.mrf.mxu0
    %v328 = vadd.f32 %v98, %v327
    %v329 = vpop.f32.mrf.mxu0
    %v330 = vadd.f32 %v98, %v329
    %331 = vmatmul.bf16.gmra.mxu0 %v122
    %v332 = vpop.f32.mrf.mxu0
    %v333 = vadd.f32 %v98, %v332
    %v334 = vpop.f32.mrf.mxu0
    %v335 = vadd.f32 %v98, %v334
    %336 = vmatmul.bf16.gmra.mxu0 %v123
    %v337 = vpop.f32.mrf.mxu0
    %v338 = vadd.f32 %v98, %v337
    %v339 = vpop.f32.mrf.mxu0
    %v340 = vadd.f32 %v98, %v339
    %341 = vmatmul.bf16.gmra.mxu0 %v124
    %v342 = vpop.f32.mrf.mxu0
    %v343 = vadd.f32 %v98, %v342
    %v344 = vpop.f32.mrf.mxu0
    %v345 = vadd.f32 %v98, %v344
    %346 = vdwg.mxu0
    %347 = vmatpush.bf16.msra.mxu0 %v255
    %348 = vmatpush.bf16.msra.mxu0 %v251
    %349 = vmatpush.bf16.msra.mxu0 %v247
    %350 = vmatpush.bf16.msra.mxu0 %v243
    %351 = vmatpush.bf16.msra.mxu0 %v239
    %352 = vmatpush.bf16.msra.mxu0 %v235
    %353 = vmatpush.bf16.msra.mxu0 %v231
    %354 = vmatpush.bf16.msra.mxu0 %v227
    %355 = vmatmul.bf16.gmra.mxu0 %v121
    %v356 = vpop.f32.mrf.mxu0
    %v357 = vadd.f32 %v99, %v356
    %v358 = vpop.f32.mrf.mxu0
    %v359 = vadd.f32 %v99, %v358
    %360 = vmatmul.bf16.gmra.mxu0 %v122
    %v361 = vpop.f32.mrf.mxu0
    %v362 = vadd.f32 %v99, %v361
    %v363 = vpop.f32.mrf.mxu0
    %v364 = vadd.f32 %v99, %v363
    %365 = vmatmul.bf16.gmra.mxu0 %v123
    %v366 = vpop.f32.mrf.mxu0
    %v367 = vadd.f32 %v99, %v366
    %v368 = vpop.f32.mrf.mxu0
    %v369 = vadd.f32 %v99, %v368
    %370 = vmatmul.bf16.gmra.mxu0 %v124
    %v371 = vpop.f32.mrf.mxu0
    %v372 = vadd.f32 %v99, %v371
    %v373 = vpop.f32.mrf.mxu0
    %v374 = vadd.f32 %v99, %v373
    %375 = vdwg.mxu0
    %376 = vmatpush.bf16.msra.mxu0 %v256
    %377 = vmatpush.bf16.msra.mxu0 %v252
    %378 = vmatpush.bf16.msra.mxu0 %v248
    %379 = vmatpush.bf16.msra.mxu0 %v244
    %380 = vmatpush.bf16.msra.mxu0 %v240
    %381 = vmatpush.bf16.msra.mxu0 %v236
    %382 = vmatpush.bf16.msra.mxu0 %v232
    %383 = vmatpush.bf16.msra.mxu0 %v228
    %384 = vmatmul.bf16.gmra.mxu0 %v121
    %v385 = vpop.f32.mrf.mxu0
    %v386 = vadd.f32 %v100, %v385
    %v387 = vpop.f32.mrf.mxu0
    %v388 = vadd.f32 %v100, %v387
    %389 = vmatmul.bf16.gmra.mxu0 %v122
    %v390 = vpop.f32.mrf.mxu0
    %v391 = vadd.f32 %v100, %v390
    %v392 = vpop.f32.mrf.mxu0
    %v393 = vadd.f32 %v100, %v392
    %394 = vmatmul.bf16.gmra.mxu0 %v123
    %v395 = vpop.f32.mrf.mxu0
    %v396 = vadd.f32 %v100, %v395
    %v397 = vpop.f32.mrf.mxu0
    %v398 = vadd.f32 %v100, %v397
    %399 = vmatmul.bf16.gmra.mxu0 %v124
    %v400 = vpop.f32.mrf.mxu0
    %v401 = vadd.f32 %v100, %v400
    %v402 = vpop.f32.mrf.mxu0
    %v403 = vadd.f32 %v100, %v402
    %404 = vdwg.mxu0
    %405 = vst [vmem:[#allocation4] sm:$0xff] %v299
    %406 = vst [vmem:[#allocation4 + $0x8] sm:$0xff] %v328
    %407 = vst [vmem:[#allocation4 + $0x10] sm:$0xff] %v357
    %408 = vst [vmem:[#allocation4 + $0x18] sm:$0xff] %v386
    %409 = vst [vmem:[#allocation4 + $0x20] sm:$0xff] %v301
    %410 = vst [vmem:[#allocation4 + $0x28] sm:$0xff] %v330
    %411 = vst [vmem:[#allocation4 + $0x30] sm:$0xff] %v359
    %412 = vst [vmem:[#allocation4 + $0x38] sm:$0xff] %v388
    %413 = vst [vmem:[#allocation4 + $0x40] sm:$0xff] %v304
    %414 = vst [vmem:[#allocation4 + $0x48] sm:$0xff] %v333
    %415 = vst [vmem:[#allocation4 + $0x50] sm:$0xff] %v362
    %416 = vst [vmem:[#allocation4 + $0x58] sm:$0xff] %v391
    %417 = vst [vmem:[#allocation4 + $0x60] sm:$0xff] %v306
    %418 = vst [vmem:[#allocation4 + $0x68] sm:$0xff] %v335
    %419 = vst [vmem:[#allocation4 + $0x70] sm:$0xff] %v364
    %420 = vst [vmem:[#allocation4 + $0x78] sm:$0xff] %v393
    %421 = vst [vmem:[#allocation4 + $0x80] sm:$0xff] %v309
    %422 = vst [vmem:[#allocation4 + $0x88] sm:$0xff] %v338
    %423 = vst [vmem:[#allocation4 + $0x90] sm:$0xff] %v367
    %424 = vst [vmem:[#allocation4 + $0x98] sm:$0xff] %v396
    %425 = vst [vmem:[#allocation4 + $0xa0] sm:$0xff] %v311
    %426 = vst [vmem:[#allocation4 + $0xa8] sm:$0xff] %v340
    %427 = vst [vmem:[#allocation4 + $0xb0] sm:$0xff] %v369
    %428 = vst [vmem:[#allocation4 + $0xb8] sm:$0xff] %v398
    %429 = vst [vmem:[#allocation4 + $0xc0] sm:$0xff] %v314
    %430 = vst [vmem:[#allocation4 + $0xc8] sm:$0xff] %v343
    %431 = vst [vmem:[#allocation4 + $0xd0] sm:$0xff] %v372
    %432 = vst [vmem:[#allocation4 + $0xd8] sm:$0xff] %v401
    %433 = vst [vmem:[#allocation4 + $0xe0] sm:$0xff] %v316
    %434 = vst [vmem:[#allocation4 + $0xe8] sm:$0xff] %v345
    %435 = vst [vmem:[#allocation4 + $0xf0] sm:$0xff] %v374
    %436 = vst [vmem:[#allocation4 + $0xf8] sm:$0xff] %v403
    %s437 = smul.u32 0, 8
    %v438 = vld [vmem:[#allocation2] sm:$0xff]
    %v439 = vld [vmem:[#allocation3] sm:$0xff]
    %v440 = vld [vmem:[#allocation4] sm:$0xff]
    %v441 = vld [vmem:[#allocation4 + $0x8] sm:$0xff]
    %v442 = vld [vmem:[#allocation4 + $0x10] sm:$0xff]
    %v443 = vld [vmem:[#allocation4 + $0x18] sm:$0xff]
    %v444 = vpack.c.bf16 %v438, %v438
    %v445 = vld [vmem:[#allocation7] sm:$0xff]
    %v446 = vld [vmem:[#allocation7 + $0x8] sm:$0xff]
    %v447 = vld [vmem:[#allocation7 + $0x10] sm:$0xff]
    %v448 = vld [vmem:[#allocation7 + $0x18] sm:$0xff]
    %v449 = vld [vmem:[#allocation7 + $0x20] sm:$0xff]
    %v450 = vld [vmem:[#allocation7 + $0x28] sm:$0xff]
    %v451 = vld [vmem:[#allocation7 + $0x30] sm:$0xff]
    %v452 = vld [vmem:[#allocation7 + $0x38] sm:$0xff]
    %v453 = vld [vmem:[#allocation7 + $0x40] sm:$0xff]
    %v454 = vld [vmem:[#allocation7 + $0x48] sm:$0xff]
    %v455 = vld [vmem:[#allocation7 + $0x50] sm:$0xff]
    %v456 = vld [vmem:[#allocation7 + $0x58] sm:$0xff]
    %v457 = vld [vmem:[#allocation7 + $0x60] sm:$0xff]
    %v458 = vld [vmem:[#allocation7 + $0x68] sm:$0xff]
    %v459 = vld [vmem:[#allocation7 + $0x70] sm:$0xff]
    %v460 = vld [vmem:[#allocation7 + $0x78] sm:$0xff]
    %v461 = vld [vmem:[#allocation7 + $0x80] sm:$0xff]
    %v462 = vld [vmem:[#allocation7 + $0x88] sm:$0xff]
    %v463 = vld [vmem:[#allocation7 + $0x90] sm:$0xff]
    %v464 = vld [vmem:[#allocation7 + $0x98] sm:$0xff]
    %v465 = vld [vmem:[#allocation7 + $0xa0] sm:$0xff]
    %v466 = vld [vmem:[#allocation7 + $0xa8] sm:$0xff]
    %v467 = vld [vmem:[#allocation7 + $0xb0] sm:$0xff]
    %v468 = vld [vmem:[#allocation7 + $0xb8] sm:$0xff]
    %v469 = vld [vmem:[#allocation7 + $0xc0] sm:$0xff]
    %v470 = vld [vmem:[#allocation7 + $0xc8] sm:$0xff]
    %v471 = vld [vmem:[#allocation7 + $0xd0] sm:$0xff]
    %v472 = vld [vmem:[#allocation7 + $0xd8] sm:$0xff]
    %v473 = vld [vmem:[#allocation7 + $0xe0] sm:$0xff]
    %v474 = vld [vmem:[#allocation7 + $0xe8] sm:$0xff]
    %v475 = vld [vmem:[#allocation7 + $0xf0] sm:$0xff]
    %v476 = vld [vmem:[#allocation7 + $0xf8] sm:$0xff]
    %v509 = vunpack.c.l.b16 %v445
    %v510 = vunpack.c.h.b16 %v445
    %v511 = vunpack.c.l.b16 %v446
    %v512 = vunpack.c.h.b16 %v446
    %v513 = vunpack.c.l.b16 %v447
    %v514 = vunpack.c.h.b16 %v447
    %v515 = vunpack.c.l.b16 %v448
    %v516 = vunpack.c.h.b16 %v448
    %v517 = vunpack.c.l.b16 %v449
    %v518 = vunpack.c.h.b16 %v449
    %v519 = vunpack.c.l.b16 %v450
    %v520 = vunpack.c.h.b16 %v450
    %v521 = vunpack.c.l.b16 %v451
    %v522 = vunpack.c.h.b16 %v451
    %v523 = vunpack.c.l.b16 %v452
    %v524 = vunpack.c.h.b16 %v452
    %v525 = vunpack.c.l.b16 %v453
    %v526 = vunpack.c.h.b16 %v453
    %v527 = vunpack.c.l.b16 %v454
    %v528 = vunpack.c.h.b16 %v454
    %v529 = vunpack.c.l.b16 %v455
    %v530 = vunpack.c.h.b16 %v455
    %v531 = vunpack.c.l.b16 %v456
    %v532 = vunpack.c.h.b16 %v456
    %v533 = vunpack.c.l.b16 %v457
    %v534 = vunpack.c.h.b16 %v457
    %v535 = vunpack.c.l.b16 %v458
    %v536 = vunpack.c.h.b16 %v458
    %v537 = vunpack.c.l.b16 %v459
    %v538 = vunpack.c.h.b16 %v459
    %v539 = vunpack.c.l.b16 %v460
    %v540 = vunpack.c.h.b16 %v460
    %v541 = vunpack.c.l.b16 %v461
    %v542 = vunpack.c.h.b16 %v461
    %v543 = vunpack.c.l.b16 %v462
    %v544 = vunpack.c.h.b16 %v462
    %v545 = vunpack.c.l.b16 %v463
    %v546 = vunpack.c.h.b16 %v463
    %v547 = vunpack.c.l.b16 %v464
    %v548 = vunpack.c.h.b16 %v464
    %v549 = vunpack.c.l.b16 %v465
    %v550 = vunpack.c.h.b16 %v465
    %v551 = vunpack.c.l.b16 %v466
    %v552 = vunpack.c.h.b16 %v466
    %v553 = vunpack.c.l.b16 %v467
    %v554 = vunpack.c.h.b16 %v467
    %v555 = vunpack.c.l.b16 %v468
    %v556 = vunpack.c.h.b16 %v468
    %v557 = vunpack.c.l.b16 %v469
    %v558 = vunpack.c.h.b16 %v469
    %v559 = vunpack.c.l.b16 %v470
    %v560 = vunpack.c.h.b16 %v470
    %v561 = vunpack.c.l.b16 %v471
    %v562 = vunpack.c.h.b16 %v471
    %v563 = vunpack.c.l.b16 %v472
    %v564 = vunpack.c.h.b16 %v472
    %v565 = vunpack.c.l.b16 %v473
    %v566 = vunpack.c.h.b16 %v473
    %v567 = vunpack.c.l.b16 %v474
    %v568 = vunpack.c.h.b16 %v474
    %v569 = vunpack.c.l.b16 %v475
    %v570 = vunpack.c.h.b16 %v475
    %v571 = vunpack.c.l.b16 %v476
    %v572 = vunpack.c.h.b16 %v476
    %v573 = vpack.c.b16 %v513, %v509
    %v574 = vpack.c.b16 %v514, %v510
    %v575 = vpack.c.b16 %v515, %v511
    %v576 = vpack.c.b16 %v516, %v512
    %v577 = vpack.c.b16 %v521, %v517
    %v578 = vpack.c.b16 %v522, %v518
    %v579 = vpack.c.b16 %v523, %v519
    %v580 = vpack.c.b16 %v524, %v520
    %v581 = vpack.c.b16 %v529, %v525
    %v582 = vpack.c.b16 %v530, %v526
    %v583 = vpack.c.b16 %v531, %v527
    %v584 = vpack.c.b16 %v532, %v528
    %v585 = vpack.c.b16 %v537, %v533
    %v586 = vpack.c.b16 %v538, %v534
    %v587 = vpack.c.b16 %v539, %v535
    %v588 = vpack.c.b16 %v540, %v536
    %v589 = vpack.c.b16 %v545, %v541
    %v590 = vpack.c.b16 %v546, %v542
    %v591 = vpack.c.b16 %v547, %v543
    %v592 = vpack.c.b16 %v548, %v544
    %v593 = vpack.c.b16 %v553, %v549
    %v594 = vpack.c.b16 %v554, %v550
    %v595 = vpack.c.b16 %v555, %v551
    %v596 = vpack.c.b16 %v556, %v552
    %v597 = vpack.c.b16 %v561, %v557
    %v598 = vpack.c.b16 %v562, %v558
    %v599 = vpack.c.b16 %v563, %v559
    %v600 = vpack.c.b16 %v564, %v560
    %v601 = vpack.c.b16 %v569, %v565
    %v602 = vpack.c.b16 %v570, %v566
    %v603 = vpack.c.b16 %v571, %v567
    %v604 = vpack.c.b16 %v572, %v568
    %637 = vmatpush.bf16.msra.mxu0 %v601
    %638 = vmatpush.bf16.msra.mxu0 %v597
    %639 = vmatpush.bf16.msra.mxu0 %v593
    %640 = vmatpush.bf16.msra.mxu0 %v589
    %641 = vmatpush.bf16.msra.mxu0 %v585
    %642 = vmatpush.bf16.msra.mxu0 %v581
    %643 = vmatpush.bf16.msra.mxu0 %v577
    %644 = vmatpush.bf16.msra.mxu0 %v573
    %645 = vmatmul.bf16.gmra.mxu0 %v444
    %v646 = vpop.f32.mrf.mxu0
    %v647 = vadd.f32 0.0, %v646
    %v648 = vpop.f32.mrf.mxu0
    %649 = vdwg.mxu0
    %650 = vmatpush.bf16.msra.mxu0 %v602
    %651 = vmatpush.bf16.msra.mxu0 %v598
    %652 = vmatpush.bf16.msra.mxu0 %v594
    %653 = vmatpush.bf16.msra.mxu0 %v590
    %654 = vmatpush.bf16.msra.mxu0 %v586
    %655 = vmatpush.bf16.msra.mxu0 %v582
    %656 = vmatpush.bf16.msra.mxu0 %v578
    %657 = vmatpush.bf16.msra.mxu0 %v574
    %658 = vmatmul.bf16.gmra.mxu0 %v444
    %v659 = vpop.f32.mrf.mxu0
    %v660 = vadd.f32 0.0, %v659
    %v661 = vpop.f32.mrf.mxu0
    %662 = vdwg.mxu0
    %663 = vmatpush.bf16.msra.mxu0 %v603
    %664 = vmatpush.bf16.msra.mxu0 %v599
    %665 = vmatpush.bf16.msra.mxu0 %v595
    %666 = vmatpush.bf16.msra.mxu0 %v591
    %667 = vmatpush.bf16.msra.mxu0 %v587
    %668 = vmatpush.bf16.msra.mxu0 %v583
    %669 = vmatpush.bf16.msra.mxu0 %v579
    %670 = vmatpush.bf16.msra.mxu0 %v575
    %671 = vmatmul.bf16.gmra.mxu0 %v444
    %v672 = vpop.f32.mrf.mxu0
    %v673 = vadd.f32 0.0, %v672
    %v674 = vpop.f32.mrf.mxu0
    %675 = vdwg.mxu0
    %676 = vmatpush.bf16.msra.mxu0 %v604
    %677 = vmatpush.bf16.msra.mxu0 %v600
    %678 = vmatpush.bf16.msra.mxu0 %v596
    %679 = vmatpush.bf16.msra.mxu0 %v592
    %680 = vmatpush.bf16.msra.mxu0 %v588
    %681 = vmatpush.bf16.msra.mxu0 %v584
    %682 = vmatpush.bf16.msra.mxu0 %v580
    %683 = vmatpush.bf16.msra.mxu0 %v576
    %684 = vmatmul.bf16.gmra.mxu0 %v444
    %v685 = vpop.f32.mrf.mxu0
    %v686 = vadd.f32 0.0, %v685
    %v687 = vpop.f32.mrf.mxu0
    %688 = vdwg.mxu0
    %v689 = vadd.f32 %v440, %v647
    %v690 = vadd.f32 %v441, %v660
    %v691 = vadd.f32 %v442, %v673
    %v692 = vadd.f32 %v443, %v686
    %v693 = vxor.u32 %v689, 2147483648
    %v694 = vxor.u32 %v690, 2147483648
    %v695 = vxor.u32 %v691, 2147483648
    %v696 = vmul.f32 %v693, 1.442695
    %v697 = vpow.pop %v696
    %v698 = vmul.f32 %v694, 1.442695
    %v699 = vpow.pop %v698
    %v700 = vmul.f32 %v695, 1.442695
    %v701 = vpow.pop %v700
    %v702 = vadd.f32 %v697, 1.0
    %v703 = vadd.f32 %v699, 1.0
    %v704 = vadd.f32 %v701, 1.0
    %v705 = vrcp.pop %v702
    %v706 = vmul.f32 %v702, %v705
    %v707 = vsub.f32 1.0, %v706
    %v708 = vmul.f32 %v705, %v707
    %v709 = vadd.f32 %v705, %v708
    %vm710 = vweird.f32 %v702
    %vm711 = vweird.f32 %v705
    %vm712 = vmor %vm710, %vm711
    %v713 = vsel %vm712, %v705, %v709
    %v714 = vand.u32 2147483647, %v702
    %vm715 = vcmp.eq.f32.partialorder %v714, 8.507059e+37
    %v716 = vand.u32 %v702, 2147483648
    %v717 = vor.u32 1.1754944e-38, %v716
    %v718 = vsel %vm715, %v717, %v713
    %v719 = vmul.f32 1.0, %v718
    %v720 = vrcp.pop %v703
    %v721 = vmul.f32 %v703, %v720
    %v722 = vsub.f32 1.0, %v721
    %v723 = vmul.f32 %v720, %v722
    %v724 = vadd.f32 %v720, %v723
    %vm725 = vweird.f32 %v703
    %vm726 = vweird.f32 %v720
    %vm727 = vmor %vm725, %vm726
    %v728 = vsel %vm727, %v720, %v724
    %v729 = vand.u32 2147483647, %v703
    %vm730 = vcmp.eq.f32.partialorder %v729, 8.507059e+37
    %v731 = vand.u32 %v703, 2147483648
    %v732 = vor.u32 1.1754944e-38, %v731
    %v733 = vsel %vm730, %v732, %v728
    %v734 = vmul.f32 1.0, %v733
    %v735 = vrcp.pop %v704
    %v736 = vmul.f32 %v704, %v735
    %v737 = vsub.f32 1.0, %v736
    %v738 = vmul.f32 %v735, %v737
    %v739 = vadd.f32 %v735, %v738
    %vm740 = vweird.f32 %v704
    %vm741 = vweird.f32 %v735
    %vm742 = vmor %vm740, %vm741
    %v743 = vsel %vm742, %v735, %v739
    %v744 = vand.u32 2147483647, %v704
    %vm745 = vcmp.eq.f32.partialorder %v744, 8.507059e+37
    %v746 = vand.u32 %v704, 2147483648
    %v747 = vor.u32 1.1754944e-38, %v746
    %v748 = vsel %vm745, %v747, %v743
    %v749 = vmul.f32 1.0, %v748
    %v750 = vtanh.pop %v692
    %v751 = vmul.f32 %v734, %v439
    %v752 = vmul.f32 %v719, %v750
    %v753 = vadd.f32 %v751, %v752
    %v754 = vtanh.pop %v753
    %v755 = vmul.f32 %v749, %v754
    %p756 = scmp.eq.s32.totalorder %s437, 7
    // Predicated region
    $region30: #{tk_stacked_lstm_forward.3} parent=1 // pred_check
      %p757 = pneg %p756
    $region31: #{tk_stacked_lstm_forward.3} parent=1 // pred_check_branch
      %759 = sbr.rel (%p757) target = $region33
    $region32: #{tk_stacked_lstm_forward.3} parent=1 // pred_region
      %760 = vst [vmem:[%s4] sm:$0xff] %v755
    $region33: #{tk_stacked_lstm_forward.3} parent=1 // pred_fallthru
      _
    %s761 = scalar_lea.vmem [#allocation4], 32
    %v762 = vld [vmem:[%s761] sm:$0xff]
    %v763 = vld [vmem:[%s761 + $0x8] sm:$0xff]
    %v764 = vld [vmem:[%s761 + $0x10] sm:$0xff]
    %v765 = vld [vmem:[%s761 + $0x18] sm:$0xff]
    %v766 = vpack.c.bf16 %v755, %v755
    %v767 = vld [vmem:[#allocation7] sm:$0xff]
    %v768 = vld [vmem:[#allocation7 + $0x8] sm:$0xff]
    %v769 = vld [vmem:[#allocation7 + $0x10] sm:$0xff]
    %v770 = vld [vmem:[#allocation7 + $0x18] sm:$0xff]
    %v771 = vld [vmem:[#allocation7 + $0x20] sm:$0xff]
    %v772 = vld [vmem:[#allocation7 + $0x28] sm:$0xff]
    %v773 = vld [vmem:[#allocation7 + $0x30] sm:$0xff]
    %v774 = vld [vmem:[#allocation7 + $0x38] sm:$0xff]
    %v775 = vld [vmem:[#allocation7 + $0x40] sm:$0xff]
    %v776 = vld [vmem:[#allocation7 + $0x48] sm:$0xff]
    %v777 = vld [vmem:[#allocation7 + $0x50] sm:$0xff]
    %v778 = vld [vmem:[#allocation7 + $0x58] sm:$0xff]
    %v779 = vld [vmem:[#allocation7 + $0x60] sm:$0xff]
    %v780 = vld [vmem:[#allocation7 + $0x68] sm:$0xff]
    %v781 = vld [vmem:[#allocation7 + $0x70] sm:$0xff]
    %v782 = vld [vmem:[#allocation7 + $0x78] sm:$0xff]
    %v783 = vld [vmem:[#allocation7 + $0x80] sm:$0xff]
    %v784 = vld [vmem:[#allocation7 + $0x88] sm:$0xff]
    %v785 = vld [vmem:[#allocation7 + $0x90] sm:$0xff]
    %v786 = vld [vmem:[#allocation7 + $0x98] sm:$0xff]
    %v787 = vld [vmem:[#allocation7 + $0xa0] sm:$0xff]
    %v788 = vld [vmem:[#allocation7 + $0xa8] sm:$0xff]
    %v789 = vld [vmem:[#allocation7 + $0xb0] sm:$0xff]
    %v790 = vld [vmem:[#allocation7 + $0xb8] sm:$0xff]
    %v791 = vld [vmem:[#allocation7 + $0xc0] sm:$0xff]
    %v792 = vld [vmem:[#allocation7 + $0xc8] sm:$0xff]
    %v793 = vld [vmem:[#allocation7 + $0xd0] sm:$0xff]
    %v794 = vld [vmem:[#allocation7 + $0xd8] sm:$0xff]
    %v795 = vld [vmem:[#allocation7 + $0xe0] sm:$0xff]
    %v796 = vld [vmem:[#allocation7 + $0xe8] sm:$0xff]
    %v797 = vld [vmem:[#allocation7 + $0xf0] sm:$0xff]
    %v798 = vld [vmem:[#allocation7 + $0xf8] sm:$0xff]
    %v831 = vunpack.c.l.b16 %v767
    %v832 = vunpack.c.h.b16 %v767
    %v833 = vunpack.c.l.b16 %v768
    %v834 = vunpack.c.h.b16 %v768
    %v835 = vunpack.c.l.b16 %v769
    %v836 = vunpack.c.h.b16 %v769
    %v837 = vunpack.c.l.b16 %v770
    %v838 = vunpack.c.h.b16 %v770
    %v839 = vunpack.c.l.b16 %v771
    %v840 = vunpack.c.h.b16 %v771
    %v841 = vunpack.c.l.b16 %v772
    %v842 = vunpack.c.h.b16 %v772
    %v843 = vunpack.c.l.b16 %v773
    %v844 = vunpack.c.h.b16 %v773
    %v845 = vunpack.c.l.b16 %v774
    %v846 = vunpack.c.h.b16 %v774
    %v847 = vunpack.c.l.b16 %v775
    %v848 = vunpack.c.h.b16 %v775
    %v849 = vunpack.c.l.b16 %v776
    %v850 = vunpack.c.h.b16 %v776
    %v851 = vunpack.c.l.b16 %v777
    %v852 = vunpack.c.h.b16 %v777
    %v853 = vunpack.c.l.b16 %v778
    %v854 = vunpack.c.h.b16 %v778
    %v855 = vunpack.c.l.b16 %v779
    %v856 = vunpack.c.h.b16 %v779
    %v857 = vunpack.c.l.b16 %v780
    %v858 = vunpack.c.h.b16 %v780
    %v859 = vunpack.c.l.b16 %v781
    %v860 = vunpack.c.h.b16 %v781
    %v861 = vunpack.c.l.b16 %v782
    %v862 = vunpack.c.h.b16 %v782
    %v863 = vunpack.c.l.b16 %v783
    %v864 = vunpack.c.h.b16 %v783
    %v865 = vunpack.c.l.b16 %v784
    %v866 = vunpack.c.h.b16 %v784
    %v867 = vunpack.c.l.b16 %v785
    %v868 = vunpack.c.h.b16 %v785
    %v869 = vunpack.c.l.b16 %v786
    %v870 = vunpack.c.h.b16 %v786
    %v871 = vunpack.c.l.b16 %v787
    %v872 = vunpack.c.h.b16 %v787
    %v873 = vunpack.c.l.b16 %v788
    %v874 = vunpack.c.h.b16 %v788
    %v875 = vunpack.c.l.b16 %v789
    %v876 = vunpack.c.h.b16 %v789
    %v877 = vunpack.c.l.b16 %v790
    %v878 = vunpack.c.h.b16 %v790
    %v879 = vunpack.c.l.b16 %v791
    %v880 = vunpack.c.h.b16 %v791
    %v881 = vunpack.c.l.b16 %v792
    %v882 = vunpack.c.h.b16 %v792
    %v883 = vunpack.c.l.b16 %v793
    %v884 = vunpack.c.h.b16 %v793
    %v885 = vunpack.c.l.b16 %v794
    %v886 = vunpack.c.h.b16 %v794
    %v887 = vunpack.c.l.b16 %v795
    %v888 = vunpack.c.h.b16 %v795
    %v889 = vunpack.c.l.b16 %v796
    %v890 = vunpack.c.h.b16 %v796
    %v891 = vunpack.c.l.b16 %v797
    %v892 = vunpack.c.h.b16 %v797
    %v893 = vunpack.c.l.b16 %v798
    %v894 = vunpack.c.h.b16 %v798
    %v895 = vpack.c.b16 %v835, %v831
    %v896 = vpack.c.b16 %v836, %v832
    %v897 = vpack.c.b16 %v837, %v833
    %v898 = vpack.c.b16 %v838, %v834
    %v899 = vpack.c.b16 %v843, %v839
    %v900 = vpack.c.b16 %v844, %v840
    %v901 = vpack.c.b16 %v845, %v841
    %v902 = vpack.c.b16 %v846, %v842
    %v903 = vpack.c.b16 %v851, %v847
    %v904 = vpack.c.b16 %v852, %v848
    %v905 = vpack.c.b16 %v853, %v849
    %v906 = vpack.c.b16 %v854, %v850
    %v907 = vpack.c.b16 %v859, %v855
    %v908 = vpack.c.b16 %v860, %v856
    %v909 = vpack.c.b16 %v861, %v857
    %v910 = vpack.c.b16 %v862, %v858
    %v911 = vpack.c.b16 %v867, %v863
    %v912 = vpack.c.b16 %v868, %v864
    %v913 = vpack.c.b16 %v869, %v865
    %v914 = vpack.c.b16 %v870, %v866
    %v915 = vpack.c.b16 %v875, %v871
    %v916 = vpack.c.b16 %v876, %v872
    %v917 = vpack.c.b16 %v877, %v873
    %v918 = vpack.c.b16 %v878, %v874
    %v919 = vpack.c.b16 %v883, %v879
    %v920 = vpack.c.b16 %v884, %v880
    %v921 = vpack.c.b16 %v885, %v881
    %v922 = vpack.c.b16 %v886, %v882
    %v923 = vpack.c.b16 %v891, %v887
    %v924 = vpack.c.b16 %v892, %v888
    %v925 = vpack.c.b16 %v893, %v889
    %v926 = vpack.c.b16 %v894, %v890
    %959 = vmatpush.bf16.msra.mxu0 %v923
    %960 = vmatpush.bf16.msra.mxu0 %v919
    %961 = vmatpush.bf16.msra.mxu0 %v915
    %962 = vmatpush.bf16.msra.mxu0 %v911
    %963 = vmatpush.bf16.msra.mxu0 %v907
    %964 = vmatpush.bf16.msra.mxu0 %v903
    %965 = vmatpush.bf16.msra.mxu0 %v899
    %966 = vmatpush.bf16.msra.mxu0 %v895
    %967 = vmatmul.bf16.gmra.mxu0 %v766
    %v968 = vpop.f32.mrf.mxu0
    %v969 = vadd.f32 0.0, %v968
    %v970 = vpop.f32.mrf.mxu0
    %971 = vdwg.mxu0
    %972 = vmatpush.bf16.msra.mxu0 %v924
    %973 = vmatpush.bf16.msra.mxu0 %v920
    %974 = vmatpush.bf16.msra.mxu0 %v916
    %975 = vmatpush.bf16.msra.mxu0 %v912
    %976 = vmatpush.bf16.msra.mxu0 %v908
    %977 = vmatpush.bf16.msra.mxu0 %v904
    %978 = vmatpush.bf16.msra.mxu0 %v900
    %979 = vmatpush.bf16.msra.mxu0 %v896
    %980 = vmatmul.bf16.gmra.mxu0 %v766
    %v981 = vpop.f32.mrf.mxu0
    %v982 = vadd.f32 0.0, %v981
    %v983 = vpop.f32.mrf.mxu0
    %984 = vdwg.mxu0
    %985 = vmatpush.bf16.msra.mxu0 %v925
    %986 = vmatpush.bf16.msra.mxu0 %v921
    %987 = vmatpush.bf16.msra.mxu0 %v917
    %988 = vmatpush.bf16.msra.mxu0 %v913
    %989 = vmatpush.bf16.msra.mxu0 %v909
    %990 = vmatpush.bf16.msra.mxu0 %v905
    %991 = vmatpush.bf16.msra.mxu0 %v901
    %992 = vmatpush.bf16.msra.mxu0 %v897
    %993 = vmatmul.bf16.gmra.mxu0 %v766
    %v994 = vpop.f32.mrf.mxu0
    %v995 = vadd.f32 0.0, %v994
    %v996 = vpop.f32.mrf.mxu0
    %997 = vdwg.mxu0
    %998 = vmatpush.bf16.msra.mxu0 %v926
    %999 = vmatpush.bf16.msra.mxu0 %v922
    %1000 = vmatpush.bf16.msra.mxu0 %v918
    %1001 = vmatpush.bf16.msra.mxu0 %v914
    %1002 = vmatpush.bf16.msra.mxu0 %v910
    %1003 = vmatpush.bf16.msra.mxu0 %v906
    %1004 = vmatpush.bf16.msra.mxu0 %v902
    %1005 = vmatpush.bf16.msra.mxu0 %v898
    %1006 = vmatmul.bf16.gmra.mxu0 %v766
    %v1007 = vpop.f32.mrf.mxu0
    %v1008 = vadd.f32 0.0, %v1007
    %v1009 = vpop.f32.mrf.mxu0
    %1010 = vdwg.mxu0
    %v1011 = vadd.f32 %v762, %v969
    %v1012 = vadd.f32 %v763, %v982
    %v1013 = vadd.f32 %v764, %v995
    %v1014 = vadd.f32 %v765, %v1008
    %v1015 = vxor.u32 %v1011, 2147483648
    %v1016 = vxor.u32 %v1012, 2147483648
    %v1017 = vxor.u32 %v1013, 2147483648
    %v1018 = vmul.f32 %v1015, 1.442695
    %v1019 = vpow.pop %v1018
    %v1020 = vmul.f32 %v1016, 1.442695
    %v1021 = vpow.pop %v1020
    %v1022 = vmul.f32 %v1017, 1.442695
    %v1023 = vpow.pop %v1022
    %v1024 = vadd.f32 %v1019, 1.0
    %v1025 = vadd.f32 %v1021, 1.0
    %v1026 = vadd.f32 %v1023, 1.0
    %v1027 = vrcp.pop %v1024
    %v1028 = vmul.f32 %v1024, %v1027
    %v1029 = vsub.f32 1.0, %v1028
    %v1030 = vmul.f32 %v1027, %v1029
    %v1031 = vadd.f32 %v1027, %v1030
    %vm1032 = vweird.f32 %v1024
    %vm1033 = vweird.f32 %v1027
    %vm1034 = vmor %vm1032, %vm1033
    %v1035 = vsel %vm1034, %v1027, %v1031
    %v1036 = vand.u32 2147483647, %v1024
    %vm1037 = vcmp.eq.f32.partialorder %v1036, 8.507059e+37
    %v1038 = vand.u32 %v1024, 2147483648
    %v1039 = vor.u32 1.1754944e-38, %v1038
    %v1040 = vsel %vm1037, %v1039, %v1035
    %v1041 = vmul.f32 1.0, %v1040
    %v1042 = vrcp.pop %v1025
    %v1043 = vmul.f32 %v1025, %v1042
    %v1044 = vsub.f32 1.0, %v1043
    %v1045 = vmul.f32 %v1042, %v1044
    %v1046 = vadd.f32 %v1042, %v1045
    %vm1047 = vweird.f32 %v1025
    %vm1048 = vweird.f32 %v1042
    %vm1049 = vmor %vm1047, %vm1048
    %v1050 = vsel %vm1049, %v1042, %v1046
    %v1051 = vand.u32 2147483647, %v1025
    %vm1052 = vcmp.eq.f32.partialorder %v1051, 8.507059e+37
    %v1053 = vand.u32 %v1025, 2147483648
    %v1054 = vor.u32 1.1754944e-38, %v1053
    %v1055 = vsel %vm1052, %v1054, %v1050
    %v1056 = vmul.f32 1.0, %v1055
    %v1057 = vrcp.pop %v1026
    %v1058 = vmul.f32 %v1026, %v1057
    %v1059 = vsub.f32 1.0, %v1058
    %v1060 = vmul.f32 %v1057, %v1059
    %v1061 = vadd.f32 %v1057, %v1060
    %vm1062 = vweird.f32 %v1026
    %vm1063 = vweird.f32 %v1057
    %vm1064 = vmor %vm1062, %vm1063
    %v1065 = vsel %vm1064, %v1057, %v1061
    %v1066 = vand.u32 2147483647, %v1026
    %vm1067 = vcmp.eq.f32.partialorder %v1066, 8.507059e+37
    %v1068 = vand.u32 %v1026, 2147483648
    %v1069 = vor.u32 1.1754944e-38, %v1068
    %v1070 = vsel %vm1067, %v1069, %v1065
    %v1071 = vmul.f32 1.0, %v1070
    %v1072 = vtanh.pop %v1014
    %v1073 = vmul.f32 %v1056, %v753
    %v1074 = vmul.f32 %v1041, %v1072
    %v1075 = vadd.f32 %v1073, %v1074
    %v1076 = vtanh.pop %v1075
    %v1077 = vmul.f32 %v1071, %v1076
    %s1078 = sadd.s32 %s437, 1
    %p1079 = scmp.eq.s32.totalorder %s1078, 7
    // Predicated region
    $region34: #{tk_stacked_lstm_forward.3} parent=1 // pred_check
      %p1080 = pneg %p1079
    $region35: #{tk_stacked_lstm_forward.3} parent=1 // pred_check_branch
      %1082 = sbr.rel (%p1080) target = $region37
    $region36: #{tk_stacked_lstm_forward.3} parent=1 // pred_region
      %1083 = vst [vmem:[%s4] sm:$0xff] %v1077
    $region37: #{tk_stacked_lstm_forward.3} parent=1 // pred_fallthru
      _
    %s1084 = scalar_lea.vmem [#allocation4], 64
    %v1085 = vld [vmem:[%s1084] sm:$0xff]
    %v1086 = vld [vmem:[%s1084 + $0x8] sm:$0xff]
    %v1087 = vld [vmem:[%s1084 + $0x10] sm:$0xff]
    %v1088 = vld [vmem:[%s1084 + $0x18] sm:$0xff]
    %v1089 = vpack.c.bf16 %v1077, %v1077
    %v1090 = vld [vmem:[#allocation7] sm:$0xff]
    %v1091 = vld [vmem:[#allocation7 + $0x8] sm:$0xff]
    %v1092 = vld [vmem:[#allocation7 + $0x10] sm:$0xff]
    %v1093 = vld [vmem:[#allocation7 + $0x18] sm:$0xff]
    %v1094 = vld [vmem:[#allocation7 + $0x20] sm:$0xff]
    %v1095 = vld [vmem:[#allocation7 + $0x28] sm:$0xff]
    %v1096 = vld [vmem:[#allocation7 + $0x30] sm:$0xff]
    %v1097 = vld [vmem:[#allocation7 + $0x38] sm:$0xff]
    %v1098 = vld [vmem:[#allocation7 + $0x40] sm:$0xff]
    %v1099 = vld [vmem:[#allocation7 + $0x48] sm:$0xff]
    %v1100 = vld [vmem:[#allocation7 + $0x50] sm:$0xff]
    %v1101 = vld [vmem:[#allocation7 + $0x58] sm:$0xff]
    %v1102 = vld [vmem:[#allocation7 + $0x60] sm:$0xff]
    %v1103 = vld [vmem:[#allocation7 + $0x68] sm:$0xff]
    %v1104 = vld [vmem:[#allocation7 + $0x70] sm:$0xff]
    %v1105 = vld [vmem:[#allocation7 + $0x78] sm:$0xff]
    %v1106 = vld [vmem:[#allocation7 + $0x80] sm:$0xff]
    %v1107 = vld [vmem:[#allocation7 + $0x88] sm:$0xff]
    %v1108 = vld [vmem:[#allocation7 + $0x90] sm:$0xff]
    %v1109 = vld [vmem:[#allocation7 + $0x98] sm:$0xff]
    %v1110 = vld [vmem:[#allocation7 + $0xa0] sm:$0xff]
    %v1111 = vld [vmem:[#allocation7 + $0xa8] sm:$0xff]
    %v1112 = vld [vmem:[#allocation7 + $0xb0] sm:$0xff]
    %v1113 = vld [vmem:[#allocation7 + $0xb8] sm:$0xff]
    %v1114 = vld [vmem:[#allocation7 + $0xc0] sm:$0xff]
    %v1115 = vld [vmem:[#allocation7 + $0xc8] sm:$0xff]
    %v1116 = vld [vmem:[#allocation7 + $0xd0] sm:$0xff]
    %v1117 = vld [vmem:[#allocation7 + $0xd8] sm:$0xff]
    %v1118 = vld [vmem:[#allocation7 + $0xe0] sm:$0xff]
    %v1119 = vld [vmem:[#allocation7 + $0xe8] sm:$0xff]
    %v1120 = vld [vmem:[#allocation7 + $0xf0] sm:$0xff]
    %v1121 = vld [vmem:[#allocation7 + $0xf8] sm:$0xff]
    %v1154 = vunpack.c.l.b16 %v1090
    %v1155 = vunpack.c.h.b16 %v1090
    %v1156 = vunpack.c.l.b16 %v1091
    %v1157 = vunpack.c.h.b16 %v1091
    %v1158 = vunpack.c.l.b16 %v1092
    %v1159 = vunpack.c.h.b16 %v1092
    %v1160 = vunpack.c.l.b16 %v1093
    %v1161 = vunpack.c.h.b16 %v1093
    %v1162 = vunpack.c.l.b16 %v1094
    %v1163 = vunpack.c.h.b16 %v1094
    %v1164 = vunpack.c.l.b16 %v1095
    %v1165 = vunpack.c.h.b16 %v1095
    %v1166 = vunpack.c.l.b16 %v1096
    %v1167 = vunpack.c.h.b16 %v1096
    %v1168 = vunpack.c.l.b16 %v1097
    %v1169 = vunpack.c.h.b16 %v1097
    %v1170 = vunpack.c.l.b16 %v1098
    %v1171 = vunpack.c.h.b16 %v1098
    %v1172 = vunpack.c.l.b16 %v1099
    %v1173 = vunpack.c.h.b16 %v1099
    %v1174 = vunpack.c.l.b16 %v1100
    %v1175 = vunpack.c.h.b16 %v1100
    %v1176 = vunpack.c.l.b16 %v1101
    %v1177 = vunpack.c.h.b16 %v1101
    %v1178 = vunpack.c.l.b16 %v1102
    %v1179 = vunpack.c.h.b16 %v1102
    %v1180 = vunpack.c.l.b16 %v1103
    %v1181 = vunpack.c.h.b16 %v1103
    %v1182 = vunpack.c.l.b16 %v1104
    %v1183 = vunpack.c.h.b16 %v1104
    %v1184 = vunpack.c.l.b16 %v1105
    %v1185 = vunpack.c.h.b16 %v1105
    %v1186 = vunpack.c.l.b16 %v1106
    %v1187 = vunpack.c.h.b16 %v1106
    %v1188 = vunpack.c.l.b16 %v1107
    %v1189 = vunpack.c.h.b16 %v1107
    %v1190 = vunpack.c.l.b16 %v1108
    %v1191 = vunpack.c.h.b16 %v1108
    %v1192 = vunpack.c.l.b16 %v1109
    %v1193 = vunpack.c.h.b16 %v1109
    %v1194 = vunpack.c.l.b16 %v1110
    %v1195 = vunpack.c.h.b16 %v1110
    %v1196 = vunpack.c.l.b16 %v1111
    %v1197 = vunpack.c.h.b16 %v1111
    %v1198 = vunpack.c.l.b16 %v1112
    %v1199 = vunpack.c.h.b16 %v1112
    %v1200 = vunpack.c.l.b16 %v1113
    %v1201 = vunpack.c.h.b16 %v1113
    %v1202 = vunpack.c.l.b16 %v1114
    %v1203 = vunpack.c.h.b16 %v1114
    %v1204 = vunpack.c.l.b16 %v1115
    %v1205 = vunpack.c.h.b16 %v1115
    %v1206 = vunpack.c.l.b16 %v1116
    %v1207 = vunpack.c.h.b16 %v1116
    %v1208 = vunpack.c.l.b16 %v1117
    %v1209 = vunpack.c.h.b16 %v1117
    %v1210 = vunpack.c.l.b16 %v1118
    %v1211 = vunpack.c.h.b16 %v1118
    %v1212 = vunpack.c.l.b16 %v1119
    %v1213 = vunpack.c.h.b16 %v1119
    %v1214 = vunpack.c.l.b16 %v1120
    %v1215 = vunpack.c.h.b16 %v1120
    %v1216 = vunpack.c.l.b16 %v1121
    %v1217 = vunpack.c.h.b16 %v1121
    %v1218 = vpack.c.b16 %v1158, %v1154
    %v1219 = vpack.c.b16 %v1159, %v1155
    %v1220 = vpack.c.b16 %v1160, %v1156
    %v1221 = vpack.c.b16 %v1161, %v1157
    %v1222 = vpack.c.b16 %v1166, %v1162
    %v1223 = vpack.c.b16 %v1167, %v1163
    %v1224 = vpack.c.b16 %v1168, %v1164
    %v1225 = vpack.c.b16 %v1169, %v1165
    %v1226 = vpack.c.b16 %v1174, %v1170
    %v1227 = vpack.c.b16 %v1175, %v1171
    %v1228 = vpack.c.b16 %v1176, %v1172
    %v1229 = vpack.c.b16 %v1177, %v1173
    %v1230 = vpack.c.b16 %v1182, %v1178
    %v1231 = vpack.c.b16 %v1183, %v1179
    %v1232 = vpack.c.b16 %v1184, %v1180
    %v1233 = vpack.c.b16 %v1185, %v1181
    %v1234 = vpack.c.b16 %v1190, %v1186
    %v1235 = vpack.c.b16 %v1191, %v1187
    %v1236 = vpack.c.b16 %v1192, %v1188
    %v1237 = vpack.c.b16 %v1193, %v1189
    %v1238 = vpack.c.b16 %v1198, %v1194
    %v1239 = vpack.c.b16 %v1199, %v1195
    %v1240 = vpack.c.b16 %v1200, %v1196
    %v1241 = vpack.c.b16 %v1201, %v1197
    %v1242 = vpack.c.b16 %v1206, %v1202
    %v1243 = vpack.c.b16 %v1207, %v1203
    %v1244 = vpack.c.b16 %v1208, %v1204
    %v1245 = vpack.c.b16 %v1209, %v1205
    %v1246 = vpack.c.b16 %v1214, %v1210
    %v1247 = vpack.c.b16 %v1215, %v1211
    %v1248 = vpack.c.b16 %v1216, %v1212
    %v1249 = vpack.c.b16 %v1217, %v1213
    %1282 = vmatpush.bf16.msra.mxu0 %v1246
    %1283 = vmatpush.bf16.msra.mxu0 %v1242
    %1284 = vmatpush.bf16.msra.mxu0 %v1238
    %1285 = vmatpush.bf16.msra.mxu0 %v1234
    %1286 = vmatpush.bf16.msra.mxu0 %v1230
    %1287 = vmatpush.bf16.msra.mxu0 %v1226
    %1288 = vmatpush.bf16.msra.mxu0 %v1222
    %1289 = vmatpush.bf16.msra.mxu0 %v1218
    %1290 = vmatmul.bf16.gmra.mxu0 %v1089
    %v1291 = vpop.f32.mrf.mxu0
    %v1292 = vadd.f32 0.0, %v1291
    %v1293 = vpop.f32.mrf.mxu0
    %1294 = vdwg.mxu0
    %1295 = vmatpush.bf16.msra.mxu0 %v1247
    %1296 = vmatpush.bf16.msra.mxu0 %v1243
    %1297 = vmatpush.bf16.msra.mxu0 %v1239
    %1298 = vmatpush.bf16.msra.mxu0 %v1235
    %1299 = vmatpush.bf16.msra.mxu0 %v1231
    %1300 = vmatpush.bf16.msra.mxu0 %v1227
    %1301 = vmatpush.bf16.msra.mxu0 %v1223
    %1302 = vmatpush.bf16.msra.mxu0 %v1219
    %1303 = vmatmul.bf16.gmra.mxu0 %v1089
    %v1304 = vpop.f32.mrf.mxu0
    %v1305 = vadd.f32 0.0, %v1304
    %v1306 = vpop.f32.mrf.mxu0
    %1307 = vdwg.mxu0
    %1308 = vmatpush.bf16.msra.mxu0 %v1248
    %1309 = vmatpush.bf16.msra.mxu0 %v1244
    %1310 = vmatpush.bf16.msra.mxu0 %v1240
    %1311 = vmatpush.bf16.msra.mxu0 %v1236
    %1312 = vmatpush.bf16.msra.mxu0 %v1232
    %1313 = vmatpush.bf16.msra.mxu0 %v1228
    %1314 = vmatpush.bf16.msra.mxu0 %v1224
    %1315 = vmatpush.bf16.msra.mxu0 %v1220
    %1316 = vmatmul.bf16.gmra.mxu0 %v1089
    %v1317 = vpop.f32.mrf.mxu0
    %v1318 = vadd.f32 0.0, %v1317
    %v1319 = vpop.f32.mrf.mxu0
    %1320 = vdwg.mxu0
    %1321 = vmatpush.bf16.msra.mxu0 %v1249
    %1322 = vmatpush.bf16.msra.mxu0 %v1245
    %1323 = vmatpush.bf16.msra.mxu0 %v1241
    %1324 = vmatpush.bf16.msra.mxu0 %v1237
    %1325 = vmatpush.bf16.msra.mxu0 %v1233
    %1326 = vmatpush.bf16.msra.mxu0 %v1229
    %1327 = vmatpush.bf16.msra.mxu0 %v1225
    %1328 = vmatpush.bf16.msra.mxu0 %v1221
    %1329 = vmatmul.bf16.gmra.mxu0 %v1089
    %v1330 = vpop.f32.mrf.mxu0
    %v1331 = vadd.f32 0.0, %v1330
    %v1332 = vpop.f32.mrf.mxu0
    %1333 = vdwg.mxu0
    %v1334 = vadd.f32 %v1085, %v1292
    %v1335 = vadd.f32 %v1086, %v1305
    %v1336 = vadd.f32 %v1087, %v1318
    %v1337 = vadd.f32 %v1088, %v1331
    %v1338 = vxor.u32 %v1334, 2147483648
    %v1339 = vxor.u32 %v1335, 2147483648
    %v1340 = vxor.u32 %v1336, 2147483648
    %v1341 = vmul.f32 %v1338, 1.442695
    %v1342 = vpow.pop %v1341
    %v1343 = vmul.f32 %v1339, 1.442695
    %v1344 = vpow.pop %v1343
    %v1345 = vmul.f32 %v1340, 1.442695
    %v1346 = vpow.pop %v1345
    %v1347 = vadd.f32 %v1342, 1.0
    %v1348 = vadd.f32 %v1344, 1.0
    %v1349 = vadd.f32 %v1346, 1.0
    %v1350 = vrcp.pop %v1347
    %v1351 = vmul.f32 %v1347, %v1350
    %v1352 = vsub.f32 1.0, %v1351
    %v1353 = vmul.f32 %v1350, %v1352
    %v1354 = vadd.f32 %v1350, %v1353
    %vm1355 = vweird.f32 %v1347
    %vm1356 = vweird.f32 %v1350
    %vm1357 = vmor %vm1355, %vm1356
    %v1358 = vsel %vm1357, %v1350, %v1354
    %v1359 = vand.u32 2147483647, %v1347
    %vm1360 = vcmp.eq.f32.partialorder %v1359, 8.507059e+37
    %v1361 = vand.u32 %v1347, 2147483648
    %v1362 = vor.u32 1.1754944e-38, %v1361
    %v1363 = vsel %vm1360, %v1362, %v1358
    %v1364 = vmul.f32 1.0, %v1363
    %v1365 = vrcp.pop %v1348
    %v1366 = vmul.f32 %v1348, %v1365
    %v1367 = vsub.f32 1.0, %v1366
    %v1368 = vmul.f32 %v1365, %v1367
    %v1369 = vadd.f32 %v1365, %v1368
    %vm1370 = vweird.f32 %v1348
    %vm1371 = vweird.f32 %v1365
    %vm1372 = vmor %vm1370, %vm1371
    %v1373 = vsel %vm1372, %v1365, %v1369
    %v1374 = vand.u32 2147483647, %v1348
    %vm1375 = vcmp.eq.f32.partialorder %v1374, 8.507059e+37
    %v1376 = vand.u32 %v1348, 2147483648
    %v1377 = vor.u32 1.1754944e-38, %v1376
    %v1378 = vsel %vm1375, %v1377, %v1373
    %v1379 = vmul.f32 1.0, %v1378
    %v1380 = vrcp.pop %v1349
    %v1381 = vmul.f32 %v1349, %v1380
    %v1382 = vsub.f32 1.0, %v1381
    %v1383 = vmul.f32 %v1380, %v1382
    %v1384 = vadd.f32 %v1380, %v1383
    %vm1385 = vweird.f32 %v1349
    %vm1386 = vweird.f32 %v1380
    %vm1387 = vmor %vm1385, %vm1386
    %v1388 = vsel %vm1387, %v1380, %v1384
    %v1389 = vand.u32 2147483647, %v1349
    %vm1390 = vcmp.eq.f32.partialorder %v1389, 8.507059e+37
    %v1391 = vand.u32 %v1349, 2147483648
    %v1392 = vor.u32 1.1754944e-38, %v1391
    %v1393 = vsel %vm1390, %v1392, %v1388
    %v1394 = vmul.f32 1.0, %v1393
    %v1395 = vtanh.pop %v1337
    %v1396 = vmul.f32 %v1379, %v1075
    %v1397 = vmul.f32 %v1364, %v1395
    %v1398 = vadd.f32 %v1396, %v1397
    %v1399 = vtanh.pop %v1398
    %v1400 = vmul.f32 %v1394, %v1399
    %s1401 = sadd.s32 %s437, 2
    %p1402 = scmp.eq.s32.totalorder %s1401, 7
    // Predicated region
    $region38: #{tk_stacked_lstm_forward.3} parent=1 // pred_check
      %p1403 = pneg %p1402
    $region39: #{tk_stacked_lstm_forward.3} parent=1 // pred_check_branch
      %1405 = sbr.rel (%p1403) target = $region41
    $region40: #{tk_stacked_lstm_forward.3} parent=1 // pred_region
      %1406 = vst [vmem:[%s4] sm:$0xff] %v1400
    $region41: #{tk_stacked_lstm_forward.3} parent=1 // pred_fallthru
      _
    %s1407 = scalar_lea.vmem [#allocation4], 96
    %v1408 = vld [vmem:[%s1407] sm:$0xff]
    %v1409 = vld [vmem:[%s1407 + $0x8] sm:$0xff]
    %v1410 = vld [vmem:[%s1407 + $0x10] sm:$0xff]
    %v1411 = vld [vmem:[%s1407 + $0x18] sm:$0xff]
    %v1412 = vpack.c.bf16 %v1400, %v1400
    %v1413 = vld [vmem:[#allocation7] sm:$0xff]
    %v1414 = vld [vmem:[#allocation7 + $0x8] sm:$0xff]
    %v1415 = vld [vmem:[#allocation7 + $0x10] sm:$0xff]
    %v1416 = vld [vmem:[#allocation7 + $0x18] sm:$0xff]
    %v1417 = vld [vmem:[#allocation7 + $0x20] sm:$0xff]
    %v1418 = vld [vmem:[#allocation7 + $0x28] sm:$0xff]
    %v1419 = vld [vmem:[#allocation7 + $0x30] sm:$0xff]
    %v1420 = vld [vmem:[#allocation7 + $0x38] sm:$0xff]
    %v1421 = vld [vmem:[#allocation7 + $0x40] sm:$0xff]
    %v1422 = vld [vmem:[#allocation7 + $0x48] sm:$0xff]
    %v1423 = vld [vmem:[#allocation7 + $0x50] sm:$0xff]
    %v1424 = vld [vmem:[#allocation7 + $0x58] sm:$0xff]
    %v1425 = vld [vmem:[#allocation7 + $0x60] sm:$0xff]
    %v1426 = vld [vmem:[#allocation7 + $0x68] sm:$0xff]
    %v1427 = vld [vmem:[#allocation7 + $0x70] sm:$0xff]
    %v1428 = vld [vmem:[#allocation7 + $0x78] sm:$0xff]
    %v1429 = vld [vmem:[#allocation7 + $0x80] sm:$0xff]
    %v1430 = vld [vmem:[#allocation7 + $0x88] sm:$0xff]
    %v1431 = vld [vmem:[#allocation7 + $0x90] sm:$0xff]
    %v1432 = vld [vmem:[#allocation7 + $0x98] sm:$0xff]
    %v1433 = vld [vmem:[#allocation7 + $0xa0] sm:$0xff]
    %v1434 = vld [vmem:[#allocation7 + $0xa8] sm:$0xff]
    %v1435 = vld [vmem:[#allocation7 + $0xb0] sm:$0xff]
    %v1436 = vld [vmem:[#allocation7 + $0xb8] sm:$0xff]
    %v1437 = vld [vmem:[#allocation7 + $0xc0] sm:$0xff]
    %v1438 = vld [vmem:[#allocation7 + $0xc8] sm:$0xff]
    %v1439 = vld [vmem:[#allocation7 + $0xd0] sm:$0xff]
    %v1440 = vld [vmem:[#allocation7 + $0xd8] sm:$0xff]
    %v1441 = vld [vmem:[#allocation7 + $0xe0] sm:$0xff]
    %v1442 = vld [vmem:[#allocation7 + $0xe8] sm:$0xff]
    %v1443 = vld [vmem:[#allocation7 + $0xf0] sm:$0xff]
    %v1444 = vld [vmem:[#allocation7 + $0xf8] sm:$0xff]
    %v1477 = vunpack.c.l.b16 %v1413
    %v1478 = vunpack.c.h.b16 %v1413
    %v1479 = vunpack.c.l.b16 %v1414
    %v1480 = vunpack.c.h.b16 %v1414
    %v1481 = vunpack.c.l.b16 %v1415
    %v1482 = vunpack.c.h.b16 %v1415
    %v1483 = vunpack.c.l.b16 %v1416
    %v1484 = vunpack.c.h.b16 %v1416
    %v1485 = vunpack.c.l.b16 %v1417
    %v1486 = vunpack.c.h.b16 %v1417
    %v1487 = vunpack.c.l.b16 %v1418
    %v1488 = vunpack.c.h.b16 %v1418
    %v1489 = vunpack.c.l.b16 %v1419
    %v1490 = vunpack.c.h.b16 %v1419
    %v1491 = vunpack.c.l.b16 %v1420
    %v1492 = vunpack.c.h.b16 %v1420
    %v1493 = vunpack.c.l.b16 %v1421
    %v1494 = vunpack.c.h.b16 %v1421
    %v1495 = vunpack.c.l.b16 %v1422
    %v1496 = vunpack.c.h.b16 %v1422
    %v1497 = vunpack.c.l.b16 %v1423
    %v1498 = vunpack.c.h.b16 %v1423
    %v1499 = vunpack.c.l.b16 %v1424
    %v1500 = vunpack.c.h.b16 %v1424
    %v1501 = vunpack.c.l.b16 %v1425
    %v1502 = vunpack.c.h.b16 %v1425
    %v1503 = vunpack.c.l.b16 %v1426
    %v1504 = vunpack.c.h.b16 %v1426
    %v1505 = vunpack.c.l.b16 %v1427
    %v1506 = vunpack.c.h.b16 %v1427
    %v1507 = vunpack.c.l.b16 %v1428
    %v1508 = vunpack.c.h.b16 %v1428
    %v1509 = vunpack.c.l.b16 %v1429
    %v1510 = vunpack.c.h.b16 %v1429
    %v1511 = vunpack.c.l.b16 %v1430
    %v1512 = vunpack.c.h.b16 %v1430
    %v1513 = vunpack.c.l.b16 %v1431
    %v1514 = vunpack.c.h.b16 %v1431
    %v1515 = vunpack.c.l.b16 %v1432
    %v1516 = vunpack.c.h.b16 %v1432
    %v1517 = vunpack.c.l.b16 %v1433
    %v1518 = vunpack.c.h.b16 %v1433
    %v1519 = vunpack.c.l.b16 %v1434
    %v1520 = vunpack.c.h.b16 %v1434
    %v1521 = vunpack.c.l.b16 %v1435
    %v1522 = vunpack.c.h.b16 %v1435
    %v1523 = vunpack.c.l.b16 %v1436
    %v1524 = vunpack.c.h.b16 %v1436
    %v1525 = vunpack.c.l.b16 %v1437
    %v1526 = vunpack.c.h.b16 %v1437
    %v1527 = vunpack.c.l.b16 %v1438
    %v1528 = vunpack.c.h.b16 %v1438
    %v1529 = vunpack.c.l.b16 %v1439
    %v1530 = vunpack.c.h.b16 %v1439
    %v1531 = vunpack.c.l.b16 %v1440
    %v1532 = vunpack.c.h.b16 %v1440
    %v1533 = vunpack.c.l.b16 %v1441
    %v1534 = vunpack.c.h.b16 %v1441
    %v1535 = vunpack.c.l.b16 %v1442
    %v1536 = vunpack.c.h.b16 %v1442
    %v1537 = vunpack.c.l.b16 %v1443
    %v1538 = vunpack.c.h.b16 %v1443
    %v1539 = vunpack.c.l.b16 %v1444
    %v1540 = vunpack.c.h.b16 %v1444
    %v1541 = vpack.c.b16 %v1481, %v1477
    %v1542 = vpack.c.b16 %v1482, %v1478
    %v1543 = vpack.c.b16 %v1483, %v1479
    %v1544 = vpack.c.b16 %v1484, %v1480
    %v1545 = vpack.c.b16 %v1489, %v1485
    %v1546 = vpack.c.b16 %v1490, %v1486
    %v1547 = vpack.c.b16 %v1491, %v1487
    %v1548 = vpack.c.b16 %v1492, %v1488
    %v1549 = vpack.c.b16 %v1497, %v1493
    %v1550 = vpack.c.b16 %v1498, %v1494
    %v1551 = vpack.c.b16 %v1499, %v1495
    %v1552 = vpack.c.b16 %v1500, %v1496
    %v1553 = vpack.c.b16 %v1505, %v1501
    %v1554 = vpack.c.b16 %v1506, %v1502
    %v1555 = vpack.c.b16 %v1507, %v1503
    %v1556 = vpack.c.b16 %v1508, %v1504
    %v1557 = vpack.c.b16 %v1513, %v1509
    %v1558 = vpack.c.b16 %v1514, %v1510
    %v1559 = vpack.c.b16 %v1515, %v1511
    %v1560 = vpack.c.b16 %v1516, %v1512
    %v1561 = vpack.c.b16 %v1521, %v1517
    %v1562 = vpack.c.b16 %v1522, %v1518
    %v1563 = vpack.c.b16 %v1523, %v1519
    %v1564 = vpack.c.b16 %v1524, %v1520
    %v1565 = vpack.c.b16 %v1529, %v1525
    %v1566 = vpack.c.b16 %v1530, %v1526
    %v1567 = vpack.c.b16 %v1531, %v1527
    %v1568 = vpack.c.b16 %v1532, %v1528
    %v1569 = vpack.c.b16 %v1537, %v1533
    %v1570 = vpack.c.b16 %v1538, %v1534
    %v1571 = vpack.c.b16 %v1539, %v1535
    %v1572 = vpack.c.b16 %v1540, %v1536
    %1605 = vmatpush.bf16.msra.mxu0 %v1569
    %1606 = vmatpush.bf16.msra.mxu0 %v1565
    %1607 = vmatpush.bf16.msra.mxu0 %v1561
    %1608 = vmatpush.bf16.msra.mxu0 %v1557
    %1609 = vmatpush.bf16.msra.mxu0 %v1553
    %1610 = vmatpush.bf16.msra.mxu0 %v1549
    %1611 = vmatpush.bf16.msra.mxu0 %v1545
    %1612 = vmatpush.bf16.msra.mxu0 %v1541
    %1613 = vmatmul.bf16.gmra.mxu0 %v1412
    %v1614 = vpop.f32.mrf.mxu0
    %v1615 = vadd.f32 0.0, %v1614
    %v1616 = vpop.f32.mrf.mxu0
    %1617 = vdwg.mxu0
    %1618 = vmatpush.bf16.msra.mxu0 %v1570
    %1619 = vmatpush.bf16.msra.mxu0 %v1566
    %1620 = vmatpush.bf16.msra.mxu0 %v1562
    %1621 = vmatpush.bf16.msra.mxu0 %v1558
    %1622 = vmatpush.bf16.msra.mxu0 %v1554
    %1623 = vmatpush.bf16.msra.mxu0 %v1550
    %1624 = vmatpush.bf16.msra.mxu0 %v1546
    %1625 = vmatpush.bf16.msra.mxu0 %v1542
    %1626 = vmatmul.bf16.gmra.mxu0 %v1412
    %v1627 = vpop.f32.mrf.mxu0
    %v1628 = vadd.f32 0.0, %v1627
    %v1629 = vpop.f32.mrf.mxu0
    %1630 = vdwg.mxu0
    %1631 = vmatpush.bf16.msra.mxu0 %v1571
    %1632 = vmatpush.bf16.msra.mxu0 %v1567
    %1633 = vmatpush.bf16.msra.mxu0 %v1563
    %1634 = vmatpush.bf16.msra.mxu0 %v1559
    %1635 = vmatpush.bf16.msra.mxu0 %v1555
    %1636 = vmatpush.bf16.msra.mxu0 %v1551
    %1637 = vmatpush.bf16.msra.mxu0 %v1547
    %1638 = vmatpush.bf16.msra.mxu0 %v1543
    %1639 = vmatmul.bf16.gmra.mxu0 %v1412
    %v1640 = vpop.f32.mrf.mxu0
    %v1641 = vadd.f32 0.0, %v1640
    %v1642 = vpop.f32.mrf.mxu0
    %1643 = vdwg.mxu0
    %1644 = vmatpush.bf16.msra.mxu0 %v1572
    %1645 = vmatpush.bf16.msra.mxu0 %v1568
    %1646 = vmatpush.bf16.msra.mxu0 %v1564
    %1647 = vmatpush.bf16.msra.mxu0 %v1560
    %1648 = vmatpush.bf16.msra.mxu0 %v1556
    %1649 = vmatpush.bf16.msra.mxu0 %v1552
    %1650 = vmatpush.bf16.msra.mxu0 %v1548
    %1651 = vmatpush.bf16.msra.mxu0 %v1544
    %1652 = vmatmul.bf16.gmra.mxu0 %v1412
    %v1653 = vpop.f32.mrf.mxu0
    %v1654 = vadd.f32 0.0, %v1653
    %v1655 = vpop.f32.mrf.mxu0
    %1656 = vdwg.mxu0
    %v1657 = vadd.f32 %v1408, %v1615
    %v1658 = vadd.f32 %v1409, %v1628
    %v1659 = vadd.f32 %v1410, %v1641
    %v1660 = vadd.f32 %v1411, %v1654
    %v1661 = vxor.u32 %v1657, 2147483648
    %v1662 = vxor.u32 %v1658, 2147483648
    %v1663 = vxor.u32 %v1659, 2147483648
    %v1664 = vmul.f32 %v1661, 1.442695
    %v1665 = vpow.pop %v1664
    %v1666 = vmul.f32 %v1662, 1.442695
    %v1667 = vpow.pop %v1666
    %v1668 = vmul.f32 %v1663, 1.442695
    %v1669 = vpow.pop %v1668
    %v1670 = vadd.f32 %v1665, 1.0
    %v1671 = vadd.f32 %v1667, 1.0
    %v1672 = vadd.f32 %v1669, 1.0
    %v1673 = vrcp.pop %v1670
    %v1674 = vmul.f32 %v1670, %v1673
    %v1675 = vsub.f32 1.0, %v1674
    %v1676 = vmul.f32 %v1673, %v1675
    %v1677 = vadd.f32 %v1673, %v1676
    %vm1678 = vweird.f32 %v1670
    %vm1679 = vweird.f32 %v1673
    %vm1680 = vmor %vm1678, %vm1679
    %v1681 = vsel %vm1680, %v1673, %v1677
    %v1682 = vand.u32 2147483647, %v1670
    %vm1683 = vcmp.eq.f32.partialorder %v1682, 8.507059e+37
    %v1684 = vand.u32 %v1670, 2147483648
    %v1685 = vor.u32 1.1754944e-38, %v1684
    %v1686 = vsel %vm1683, %v1685, %v1681
    %v1687 = vmul.f32 1.0, %v1686
    %v1688 = vrcp.pop %v1671
    %v1689 = vmul.f32 %v1671, %v1688
    %v1690 = vsub.f32 1.0, %v1689
    %v1691 = vmul.f32 %v1688, %v1690
    %v1692 = vadd.f32 %v1688, %v1691
    %vm1693 = vweird.f32 %v1671
    %vm1694 = vweird.f32 %v1688
    %vm1695 = vmor %vm1693, %vm1694
    %v1696 = vsel %vm1695, %v1688, %v1692
    %v1697 = vand.u32 2147483647, %v1671
    %vm1698 = vcmp.eq.f32.partialorder %v1697, 8.507059e+37
    %v1699 = vand.u32 %v1671, 2147483648
    %v1700 = vor.u32 1.1754944e-38, %v1699
    %v1701 = vsel %vm1698, %v1700, %v1696
    %v1702 = vmul.f32 1.0, %v1701
    %v1703 = vrcp.pop %v1672
    %v1704 = vmul.f32 %v1672, %v1703
    %v1705 = vsub.f32 1.0, %v1704
    %v1706 = vmul.f32 %v1703, %v1705
    %v1707 = vadd.f32 %v1703, %v1706
    %vm1708 = vweird.f32 %v1672
    %vm1709 = vweird.f32 %v1703
    %vm1710 = vmor %vm1708, %vm1709
    %v1711 = vsel %vm1710, %v1703, %v1707
    %v1712 = vand.u32 2147483647, %v1672
    %vm1713 = vcmp.eq.f32.partialorder %v1712, 8.507059e+37
    %v1714 = vand.u32 %v1672, 2147483648
    %v1715 = vor.u32 1.1754944e-38, %v1714
    %v1716 = vsel %vm1713, %v1715, %v1711
    %v1717 = vmul.f32 1.0, %v1716
    %v1718 = vtanh.pop %v1660
    %v1719 = vmul.f32 %v1702, %v1398
    %v1720 = vmul.f32 %v1687, %v1718
    %v1721 = vadd.f32 %v1719, %v1720
    %v1722 = vtanh.pop %v1721
    %v1723 = vmul.f32 %v1717, %v1722
    %s1724 = sadd.s32 %s437, 3
    %p1725 = scmp.eq.s32.totalorder %s1724, 7
    // Predicated region
    $region42: #{tk_stacked_lstm_forward.3} parent=1 // pred_check
      %p1726 = pneg %p1725
    $region43: #{tk_stacked_lstm_forward.3} parent=1 // pred_check_branch
      %1728 = sbr.rel (%p1726) target = $region45
    $region44: #{tk_stacked_lstm_forward.3} parent=1 // pred_region
      %1729 = vst [vmem:[%s4] sm:$0xff] %v1723
    $region45: #{tk_stacked_lstm_forward.3} parent=1 // pred_fallthru
      _
    %s1730 = scalar_lea.vmem [#allocation4], 128
    %v1731 = vld [vmem:[%s1730] sm:$0xff]
    %v1732 = vld [vmem:[%s1730 + $0x8] sm:$0xff]
    %v1733 = vld [vmem:[%s1730 + $0x10] sm:$0xff]
    %v1734 = vld [vmem:[%s1730 + $0x18] sm:$0xff]
    %v1735 = vpack.c.bf16 %v1723, %v1723
    %v1736 = vld [vmem:[#allocation7] sm:$0xff]
    %v1737 = vld [vmem:[#allocation7 + $0x8] sm:$0xff]
    %v1738 = vld [vmem:[#allocation7 + $0x10] sm:$0xff]
    %v1739 = vld [vmem:[#allocation7 + $0x18] sm:$0xff]
    %v1740 = vld [vmem:[#allocation7 + $0x20] sm:$0xff]
    %v1741 = vld [vmem:[#allocation7 + $0x28] sm:$0xff]
    %v1742 = vld [vmem:[#allocation7 + $0x30] sm:$0xff]
    %v1743 = vld [vmem:[#allocation7 + $0x38] sm:$0xff]
    %v1744 = vld [vmem:[#allocation7 + $0x40] sm:$0xff]
    %v1745 = vld [vmem:[#allocation7 + $0x48] sm:$0xff]
    %v1746 = vld [vmem:[#allocation7 + $0x50] sm:$0xff]
    %v1747 = vld [vmem:[#allocation7 + $0x58] sm:$0xff]
    %v1748 = vld [vmem:[#allocation7 + $0x60] sm:$0xff]
    %v1749 = vld [vmem:[#allocation7 + $0x68] sm:$0xff]
    %v1750 = vld [vmem:[#allocation7 + $0x70] sm:$0xff]
    %v1751 = vld [vmem:[#allocation7 + $0x78] sm:$0xff]
    %v1752 = vld [vmem:[#allocation7 + $0x80] sm:$0xff]
    %v1753 = vld [vmem:[#allocation7 + $0x88] sm:$0xff]
    %v1754 = vld [vmem:[#allocation7 + $0x90] sm:$0xff]
    %v1755 = vld [vmem:[#allocation7 + $0x98] sm:$0xff]
    %v1756 = vld [vmem:[#allocation7 + $0xa0] sm:$0xff]
    %v1757 = vld [vmem:[#allocation7 + $0xa8] sm:$0xff]
    %v1758 = vld [vmem:[#allocation7 + $0xb0] sm:$0xff]
    %v1759 = vld [vmem:[#allocation7 + $0xb8] sm:$0xff]
    %v1760 = vld [vmem:[#allocation7 + $0xc0] sm:$0xff]
    %v1761 = vld [vmem:[#allocation7 + $0xc8] sm:$0xff]
    %v1762 = vld [vmem:[#allocation7 + $0xd0] sm:$0xff]
    %v1763 = vld [vmem:[#allocation7 + $0xd8] sm:$0xff]
    %v1764 = vld [vmem:[#allocation7 + $0xe0] sm:$0xff]
    %v1765 = vld [vmem:[#allocation7 + $0xe8] sm:$0xff]
    %v1766 = vld [vmem:[#allocation7 + $0xf0] sm:$0xff]
    %v1767 = vld [vmem:[#allocation7 + $0xf8] sm:$0xff]
    %v1800 = vunpack.c.l.b16 %v1736
    %v1801 = vunpack.c.h.b16 %v1736
    %v1802 = vunpack.c.l.b16 %v1737
    %v1803 = vunpack.c.h.b16 %v1737
    %v1804 = vunpack.c.l.b16 %v1738
    %v1805 = vunpack.c.h.b16 %v1738
    %v1806 = vunpack.c.l.b16 %v1739
    %v1807 = vunpack.c.h.b16 %v1739
    %v1808 = vunpack.c.l.b16 %v1740
    %v1809 = vunpack.c.h.b16 %v1740
    %v1810 = vunpack.c.l.b16 %v1741
    %v1811 = vunpack.c.h.b16 %v1741
    %v1812 = vunpack.c.l.b16 %v1742
    %v1813 = vunpack.c.h.b16 %v1742
    %v1814 = vunpack.c.l.b16 %v1743
    %v1815 = vunpack.c.h.b16 %v1743
    %v1816 = vunpack.c.l.b16 %v1744
    %v1817 = vunpack.c.h.b16 %v1744
    %v1818 = vunpack.c.l.b16 %v1745
    %v1819 = vunpack.c.h.b16 %v1745
    %v1820 = vunpack.c.l.b16 %v1746
    %v1821 = vunpack.c.h.b16 %v1746
    %v1822 = vunpack.c.l.b16 %v1747
    %v1823 = vunpack.c.h.b16 %v1747
    %v1824 = vunpack.c.l.b16 %v1748
    %v1825 = vunpack.c.h.b16 %v1748
    %v1826 = vunpack.c.l.b16 %v1749
    %v1827 = vunpack.c.h.b16 %v1749
    %v1828 = vunpack.c.l.b16 %v1750
    %v1829 = vunpack.c.h.b16 %v1750
    %v1830 = vunpack.c.l.b16 %v1751
    %v1831 = vunpack.c.h.b16 %v1751
    %v1832 = vunpack.c.l.b16 %v1752
    %v1833 = vunpack.c.h.b16 %v1752
    %v1834 = vunpack.c.l.b16 %v1753
    %v1835 = vunpack.c.h.b16 %v1753
    %v1836 = vunpack.c.l.b16 %v1754
    %v1837 = vunpack.c.h.b16 %v1754
    %v1838 = vunpack.c.l.b16 %v1755
    %v1839 = vunpack.c.h.b16 %v1755
    %v1840 = vunpack.c.l.b16 %v1756
    %v1841 = vunpack.c.h.b16 %v1756
    %v1842 = vunpack.c.l.b16 %v1757
    %v1843 = vunpack.c.h.b16 %v1757
    %v1844 = vunpack.c.l.b16 %v1758
    %v1845 = vunpack.c.h.b16 %v1758
    %v1846 = vunpack.c.l.b16 %v1759
    %v1847 = vunpack.c.h.b16 %v1759
    %v1848 = vunpack.c.l.b16 %v1760
    %v1849 = vunpack.c.h.b16 %v1760
    %v1850 = vunpack.c.l.b16 %v1761
    %v1851 = vunpack.c.h.b16 %v1761
    %v1852 = vunpack.c.l.b16 %v1762
    %v1853 = vunpack.c.h.b16 %v1762
    %v1854 = vunpack.c.l.b16 %v1763
    %v1855 = vunpack.c.h.b16 %v1763
    %v1856 = vunpack.c.l.b16 %v1764
    %v1857 = vunpack.c.h.b16 %v1764
    %v1858 = vunpack.c.l.b16 %v1765
    %v1859 = vunpack.c.h.b16 %v1765
    %v1860 = vunpack.c.l.b16 %v1766
    %v1861 = vunpack.c.h.b16 %v1766
    %v1862 = vunpack.c.l.b16 %v1767
    %v1863 = vunpack.c.h.b16 %v1767
    %v1864 = vpack.c.b16 %v1804, %v1800
    %v1865 = vpack.c.b16 %v1805, %v1801
    %v1866 = vpack.c.b16 %v1806, %v1802
    %v1867 = vpack.c.b16 %v1807, %v1803
    %v1868 = vpack.c.b16 %v1812, %v1808
    %v1869 = vpack.c.b16 %v1813, %v1809
    %v1870 = vpack.c.b16 %v1814, %v1810
    %v1871 = vpack.c.b16 %v1815, %v1811
    %v1872 = vpack.c.b16 %v1820, %v1816
    %v1873 = vpack.c.b16 %v1821, %v1817
    %v1874 = vpack.c.b16 %v1822, %v1818
    %v1875 = vpack.c.b16 %v1823, %v1819
    %v1876 = vpack.c.b16 %v1828, %v1824
    %v1877 = vpack.c.b16 %v1829, %v1825
    %v1878 = vpack.c.b16 %v1830, %v1826
    %v1879 = vpack.c.b16 %v1831, %v1827
    %v1880 = vpack.c.b16 %v1836, %v1832
    %v1881 = vpack.c.b16 %v1837, %v1833
    %v1882 = vpack.c.b16 %v1838, %v1834
    %v1883 = vpack.c.b16 %v1839, %v1835
    %v1884 = vpack.c.b16 %v1844, %v1840
    %v1885 = vpack.c.b16 %v1845, %v1841
    %v1886 = vpack.c.b16 %v1846, %v1842
    %v1887 = vpack.c.b16 %v1847, %v1843
    %v1888 = vpack.c.b16 %v1852, %v1848
    %v1889 = vpack.c.b16 %v1853, %v1849
    %v1890 = vpack.c.b16 %v1854, %v1850
    %v1891 = vpack.c.b16 %v1855, %v1851
    %v1892 = vpack.c.b16 %v1860, %v1856
    %v1893 = vpack.c.b16 %v1861, %v1857
    %v1894 = vpack.c.b16 %v1862, %v1858
    %v1895 = vpack.c.b16 %v1863, %v1859
    %1928 = vmatpush.bf16.msra.mxu0 %v1892
    %1929 = vmatpush.bf16.msra.mxu0 %v1888
    %1930 = vmatpush.bf16.msra.mxu0 %v1884
    %1931 = vmatpush.bf16.msra.mxu0 %v1880
    %1932 = vmatpush.bf16.msra.mxu0 %v1876
    %1933 = vmatpush.bf16.msra.mxu0 %v1872
    %1934 = vmatpush.bf16.msra.mxu0 %v1868
    %1935 = vmatpush.bf16.msra.mxu0 %v1864
    %1936 = vmatmul.bf16.gmra.mxu0 %v1735
    %v1937 = vpop.f32.mrf.mxu0
    %v1938 = vadd.f32 0.0, %v1937
    %v1939 = vpop.f32.mrf.mxu0
    %1940 = vdwg.mxu0
    %1941 = vmatpush.bf16.msra.mxu0 %v1893
    %1942 = vmatpush.bf16.msra.mxu0 %v1889
    %1943 = vmatpush.bf16.msra.mxu0 %v1885
    %1944 = vmatpush.bf16.msra.mxu0 %v1881
    %1945 = vmatpush.bf16.msra.mxu0 %v1877
    %1946 = vmatpush.bf16.msra.mxu0 %v1873
    %1947 = vmatpush.bf16.msra.mxu0 %v1869
    %1948 = vmatpush.bf16.msra.mxu0 %v1865
    %1949 = vmatmul.bf16.gmra.mxu0 %v1735
    %v1950 = vpop.f32.mrf.mxu0
    %v1951 = vadd.f32 0.0, %v1950
    %v1952 = vpop.f32.mrf.mxu0
    %1953 = vdwg.mxu0
    %1954 = vmatpush.bf16.msra.mxu0 %v1894
    %1955 = vmatpush.bf16.msra.mxu0 %v1890
    %1956 = vmatpush.bf16.msra.mxu0 %v1886
    %1957 = vmatpush.bf16.msra.mxu0 %v1882
    %1958 = vmatpush.bf16.msra.mxu0 %v1878
    %1959 = vmatpush.bf16.msra.mxu0 %v1874
    %1960 = vmatpush.bf16.msra.mxu0 %v1870
    %1961 = vmatpush.bf16.msra.mxu0 %v1866
    %1962 = vmatmul.bf16.gmra.mxu0 %v1735
    %v1963 = vpop.f32.mrf.mxu0
    %v1964 = vadd.f32 0.0, %v1963
    %v1965 = vpop.f32.mrf.mxu0
    %1966 = vdwg.mxu0
    %1967 = vmatpush.bf16.msra.mxu0 %v1895
    %1968 = vmatpush.bf16.msra.mxu0 %v1891
    %1969 = vmatpush.bf16.msra.mxu0 %v1887
    %1970 = vmatpush.bf16.msra.mxu0 %v1883
    %1971 = vmatpush.bf16.msra.mxu0 %v1879
    %1972 = vmatpush.bf16.msra.mxu0 %v1875
    %1973 = vmatpush.bf16.msra.mxu0 %v1871
    %1974 = vmatpush.bf16.msra.mxu0 %v1867
    %1975 = vmatmul.bf16.gmra.mxu0 %v1735
    %v1976 = vpop.f32.mrf.mxu0
    %v1977 = vadd.f32 0.0, %v1976
    %v1978 = vpop.f32.mrf.mxu0
    %1979 = vdwg.mxu0
    %v1980 = vadd.f32 %v1731, %v1938
    %v1981 = vadd.f32 %v1732, %v1951
    %v1982 = vadd.f32 %v1733, %v1964
    %v1983 = vadd.f32 %v1734, %v1977
    %v1984 = vxor.u32 %v1980, 2147483648
    %v1985 = vxor.u32 %v1981, 2147483648
    %v1986 = vxor.u32 %v1982, 2147483648
    %v1987 = vmul.f32 %v1984, 1.442695
    %v1988 = vpow.pop %v1987
    %v1989 = vmul.f32 %v1985, 1.442695
    %v1990 = vpow.pop %v1989
    %v1991 = vmul.f32 %v1986, 1.442695
    %v1992 = vpow.pop %v1991
    %v1993 = vadd.f32 %v1988, 1.0
    %v1994 = vadd.f32 %v1990, 1.0
    %v1995 = vadd.f32 %v1992, 1.0
    %v1996 = vrcp.pop %v1993
    %v1997 = vmul.f32 %v1993, %v1996
    %v1998 = vsub.f32 1.0, %v1997
    %v1999 = vmul.f32 %v1996, %v1998
    %v2000 = vadd.f32 %v1996, %v1999
    %vm2001 = vweird.f32 %v1993
    %vm2002 = vweird.f32 %v1996
    %vm2003 = vmor %vm2001, %vm2002
    %v2004 = vsel %vm2003, %v1996, %v2000
    %v2005 = vand.u32 2147483647, %v1993
    %vm2006 = vcmp.eq.f32.partialorder %v2005, 8.507059e+37
    %v2007 = vand.u32 %v1993, 2147483648
    %v2008 = vor.u32 1.1754944e-38, %v2007
    %v2009 = vsel %vm2006, %v2008, %v2004
    %v2010 = vmul.f32 1.0, %v2009
    %v2011 = vrcp.pop %v1994
    %v2012 = vmul.f32 %v1994, %v2011
    %v2013 = vsub.f32 1.0, %v2012
    %v2014 = vmul.f32 %v2011, %v2013
    %v2015 = vadd.f32 %v2011, %v2014
    %vm2016 = vweird.f32 %v1994
    %vm2017 = vweird.f32 %v2011
    %vm2018 = vmor %vm2016, %vm2017
    %v2019 = vsel %vm2018, %v2011, %v2015
    %v2020 = vand.u32 2147483647, %v1994
    %vm2021 = vcmp.eq.f32.partialorder %v2020, 8.507059e+37
    %v2022 = vand.u32 %v1994, 2147483648
    %v2023 = vor.u32 1.1754944e-38, %v2022
    %v2024 = vsel %vm2021, %v2023, %v2019
    %v2025 = vmul.f32 1.0, %v2024
    %v2026 = vrcp.pop %v1995
    %v2027 = vmul.f32 %v1995, %v2026
    %v2028 = vsub.f32 1.0, %v2027
    %v2029 = vmul.f32 %v2026, %v2028
    %v2030 = vadd.f32 %v2026, %v2029
    %vm2031 = vweird.f32 %v1995
    %vm2032 = vweird.f32 %v2026
    %vm2033 = vmor %vm2031, %vm2032
    %v2034 = vsel %vm2033, %v2026, %v2030
    %v2035 = vand.u32 2147483647, %v1995
    %vm2036 = vcmp.eq.f32.partialorder %v2035, 8.507059e+37
    %v2037 = vand.u32 %v1995, 2147483648
    %v2038 = vor.u32 1.1754944e-38, %v2037
    %v2039 = vsel %vm2036, %v2038, %v2034
    %v2040 = vmul.f32 1.0, %v2039
    %v2041 = vtanh.pop %v1983
    %v2042 = vmul.f32 %v2025, %v1721
    %v2043 = vmul.f32 %v2010, %v2041
    %v2044 = vadd.f32 %v2042, %v2043
    %v2045 = vtanh.pop %v2044
    %v2046 = vmul.f32 %v2040, %v2045
    %s2047 = sadd.s32 %s437, 4
    %p2048 = scmp.eq.s32.totalorder %s2047, 7
    // Predicated region
    $region46: #{tk_stacked_lstm_forward.3} parent=1 // pred_check
      %p2049 = pneg %p2048
    $region47: #{tk_stacked_lstm_forward.3} parent=1 // pred_check_branch
      %2051 = sbr.rel (%p2049) target = $region49
    $region48: #{tk_stacked_lstm_forward.3} parent=1 // pred_region
      %2052 = vst [vmem:[%s4] sm:$0xff] %v2046
    $region49: #{tk_stacked_lstm_forward.3} parent=1 // pred_fallthru
      _
    %s2053 = scalar_lea.vmem [#allocation4], 160
    %v2054 = vld [vmem:[%s2053] sm:$0xff]
    %v2055 = vld [vmem:[%s2053 + $0x8] sm:$0xff]
    %v2056 = vld [vmem:[%s2053 + $0x10] sm:$0xff]
    %v2057 = vld [vmem:[%s2053 + $0x18] sm:$0xff]
    %v2058 = vpack.c.bf16 %v2046, %v2046
    %v2059 = vld [vmem:[#allocation7] sm:$0xff]
    %v2060 = vld [vmem:[#allocation7 + $0x8] sm:$0xff]
    %v2061 = vld [vmem:[#allocation7 + $0x10] sm:$0xff]
    %v2062 = vld [vmem:[#allocation7 + $0x18] sm:$0xff]
    %v2063 = vld [vmem:[#allocation7 + $0x20] sm:$0xff]
    %v2064 = vld [vmem:[#allocation7 + $0x28] sm:$0xff]
    %v2065 = vld [vmem:[#allocation7 + $0x30] sm:$0xff]
    %v2066 = vld [vmem:[#allocation7 + $0x38] sm:$0xff]
    %v2067 = vld [vmem:[#allocation7 + $0x40] sm:$0xff]
    %v2068 = vld [vmem:[#allocation7 + $0x48] sm:$0xff]
    %v2069 = vld [vmem:[#allocation7 + $0x50] sm:$0xff]
    %v2070 = vld [vmem:[#allocation7 + $0x58] sm:$0xff]
    %v2071 = vld [vmem:[#allocation7 + $0x60] sm:$0xff]
    %v2072 = vld [vmem:[#allocation7 + $0x68] sm:$0xff]
    %v2073 = vld [vmem:[#allocation7 + $0x70] sm:$0xff]
    %v2074 = vld [vmem:[#allocation7 + $0x78] sm:$0xff]
    %v2075 = vld [vmem:[#allocation7 + $0x80] sm:$0xff]
    %v2076 = vld [vmem:[#allocation7 + $0x88] sm:$0xff]
    %v2077 = vld [vmem:[#allocation7 + $0x90] sm:$0xff]
    %v2078 = vld [vmem:[#allocation7 + $0x98] sm:$0xff]
    %v2079 = vld [vmem:[#allocation7 + $0xa0] sm:$0xff]
    %v2080 = vld [vmem:[#allocation7 + $0xa8] sm:$0xff]
    %v2081 = vld [vmem:[#allocation7 + $0xb0] sm:$0xff]
    %v2082 = vld [vmem:[#allocation7 + $0xb8] sm:$0xff]
    %v2083 = vld [vmem:[#allocation7 + $0xc0] sm:$0xff]
    %v2084 = vld [vmem:[#allocation7 + $0xc8] sm:$0xff]
    %v2085 = vld [vmem:[#allocation7 + $0xd0] sm:$0xff]
    %v2086 = vld [vmem:[#allocation7 + $0xd8] sm:$0xff]
    %v2087 = vld [vmem:[#allocation7 + $0xe0] sm:$0xff]
    %v2088 = vld [vmem:[#allocation7 + $0xe8] sm:$0xff]
    %v2089 = vld [vmem:[#allocation7 + $0xf0] sm:$0xff]
    %v2090 = vld [vmem:[#allocation7 + $0xf8] sm:$0xff]
    %v2123 = vunpack.c.l.b16 %v2059
    %v2124 = vunpack.c.h.b16 %v2059
    %v2125 = vunpack.c.l.b16 %v2060
    %v2126 = vunpack.c.h.b16 %v2060
    %v2127 = vunpack.c.l.b16 %v2061
    %v2128 = vunpack.c.h.b16 %v2061
    %v2129 = vunpack.c.l.b16 %v2062
    %v2130 = vunpack.c.h.b16 %v2062
    %v2131 = vunpack.c.l.b16 %v2063
    %v2132 = vunpack.c.h.b16 %v2063
    %v2133 = vunpack.c.l.b16 %v2064
    %v2134 = vunpack.c.h.b16 %v2064
    %v2135 = vunpack.c.l.b16 %v2065
    %v2136 = vunpack.c.h.b16 %v2065
    %v2137 = vunpack.c.l.b16 %v2066
    %v2138 = vunpack.c.h.b16 %v2066
    %v2139 = vunpack.c.l.b16 %v2067
    %v2140 = vunpack.c.h.b16 %v2067
    %v2141 = vunpack.c.l.b16 %v2068
    %v2142 = vunpack.c.h.b16 %v2068
    %v2143 = vunpack.c.l.b16 %v2069
    %v2144 = vunpack.c.h.b16 %v2069
    %v2145 = vunpack.c.l.b16 %v2070
    %v2146 = vunpack.c.h.b16 %v2070
    %v2147 = vunpack.c.l.b16 %v2071
    %v2148 = vunpack.c.h.b16 %v2071
    %v2149 = vunpack.c.l.b16 %v2072
    %v2150 = vunpack.c.h.b16 %v2072
    %v2151 = vunpack.c.l.b16 %v2073
    %v2152 = vunpack.c.h.b16 %v2073
    %v2153 = vunpack.c.l.b16 %v2074
    %v2154 = vunpack.c.h.b16 %v2074
    %v2155 = vunpack.c.l.b16 %v2075
    %v2156 = vunpack.c.h.b16 %v2075
    %v2157 = vunpack.c.l.b16 %v2076
    %v2158 = vunpack.c.h.b16 %v2076
    %v2159 = vunpack.c.l.b16 %v2077
    %v2160 = vunpack.c.h.b16 %v2077
    %v2161 = vunpack.c.l.b16 %v2078
    %v2162 = vunpack.c.h.b16 %v2078
    %v2163 = vunpack.c.l.b16 %v2079
    %v2164 = vunpack.c.h.b16 %v2079
    %v2165 = vunpack.c.l.b16 %v2080
    %v2166 = vunpack.c.h.b16 %v2080
    %v2167 = vunpack.c.l.b16 %v2081
    %v2168 = vunpack.c.h.b16 %v2081
    %v2169 = vunpack.c.l.b16 %v2082
    %v2170 = vunpack.c.h.b16 %v2082
    %v2171 = vunpack.c.l.b16 %v2083
    %v2172 = vunpack.c.h.b16 %v2083
    %v2173 = vunpack.c.l.b16 %v2084
    %v2174 = vunpack.c.h.b16 %v2084
    %v2175 = vunpack.c.l.b16 %v2085
    %v2176 = vunpack.c.h.b16 %v2085
    %v2177 = vunpack.c.l.b16 %v2086
    %v2178 = vunpack.c.h.b16 %v2086
    %v2179 = vunpack.c.l.b16 %v2087
    %v2180 = vunpack.c.h.b16 %v2087
    %v2181 = vunpack.c.l.b16 %v2088
    %v2182 = vunpack.c.h.b16 %v2088
    %v2183 = vunpack.c.l.b16 %v2089
    %v2184 = vunpack.c.h.b16 %v2089
    %v2185 = vunpack.c.l.b16 %v2090
    %v2186 = vunpack.c.h.b16 %v2090
    %v2187 = vpack.c.b16 %v2127, %v2123
    %v2188 = vpack.c.b16 %v2128, %v2124
    %v2189 = vpack.c.b16 %v2129, %v2125
    %v2190 = vpack.c.b16 %v2130, %v2126
    %v2191 = vpack.c.b16 %v2135, %v2131
    %v2192 = vpack.c.b16 %v2136, %v2132
    %v2193 = vpack.c.b16 %v2137, %v2133
    %v2194 = vpack.c.b16 %v2138, %v2134
    %v2195 = vpack.c.b16 %v2143, %v2139
    %v2196 = vpack.c.b16 %v2144, %v2140
    %v2197 = vpack.c.b16 %v2145, %v2141
    %v2198 = vpack.c.b16 %v2146, %v2142
    %v2199 = vpack.c.b16 %v2151, %v2147
    %v2200 = vpack.c.b16 %v2152, %v2148
    %v2201 = vpack.c.b16 %v2153, %v2149
    %v2202 = vpack.c.b16 %v2154, %v2150
    %v2203 = vpack.c.b16 %v2159, %v2155
    %v2204 = vpack.c.b16 %v2160, %v2156
    %v2205 = vpack.c.b16 %v2161, %v2157
    %v2206 = vpack.c.b16 %v2162, %v2158
    %v2207 = vpack.c.b16 %v2167, %v2163
    %v2208 = vpack.c.b16 %v2168, %v2164
    %v2209 = vpack.c.b16 %v2169, %v2165
    %v2210 = vpack.c.b16 %v2170, %v2166
    %v2211 = vpack.c.b16 %v2175, %v2171
    %v2212 = vpack.c.b16 %v2176, %v2172
    %v2213 = vpack.c.b16 %v2177, %v2173
    %v2214 = vpack.c.b16 %v2178, %v2174
    %v2215 = vpack.c.b16 %v2183, %v2179
    %v2216 = vpack.c.b16 %v2184, %v2180
    %v2217 = vpack.c.b16 %v2185, %v2181
    %v2218 = vpack.c.b16 %v2186, %v2182
    %2251 = vmatpush.bf16.msra.mxu0 %v2215
    %2252 = vmatpush.bf16.msra.mxu0 %v2211
    %2253 = vmatpush.bf16.msra.mxu0 %v2207
    %2254 = vmatpush.bf16.msra.mxu0 %v2203
    %2255 = vmatpush.bf16.msra.mxu0 %v2199
    %2256 = vmatpush.bf16.msra.mxu0 %v2195
    %2257 = vmatpush.bf16.msra.mxu0 %v2191
    %2258 = vmatpush.bf16.msra.mxu0 %v2187
    %2259 = vmatmul.bf16.gmra.mxu0 %v2058
    %v2260 = vpop.f32.mrf.mxu0
    %v2261 = vadd.f32 0.0, %v2260
    %v2262 = vpop.f32.mrf.mxu0
    %2263 = vdwg.mxu0
    %2264 = vmatpush.bf16.msra.mxu0 %v2216
    %2265 = vmatpush.bf16.msra.mxu0 %v2212
    %2266 = vmatpush.bf16.msra.mxu0 %v2208
    %2267 = vmatpush.bf16.msra.mxu0 %v2204
    %2268 = vmatpush.bf16.msra.mxu0 %v2200
    %2269 = vmatpush.bf16.msra.mxu0 %v2196
    %2270 = vmatpush.bf16.msra.mxu0 %v2192
    %2271 = vmatpush.bf16.msra.mxu0 %v2188
    %2272 = vmatmul.bf16.gmra.mxu0 %v2058
    %v2273 = vpop.f32.mrf.mxu0
    %v2274 = vadd.f32 0.0, %v2273
    %v2275 = vpop.f32.mrf.mxu0
    %2276 = vdwg.mxu0
    %2277 = vmatpush.bf16.msra.mxu0 %v2217
    %2278 = vmatpush.bf16.msra.mxu0 %v2213
    %2279 = vmatpush.bf16.msra.mxu0 %v2209
    %2280 = vmatpush.bf16.msra.mxu0 %v2205
    %2281 = vmatpush.bf16.msra.mxu0 %v2201
    %2282 = vmatpush.bf16.msra.mxu0 %v2197
    %2283 = vmatpush.bf16.msra.mxu0 %v2193
    %2284 = vmatpush.bf16.msra.mxu0 %v2189
    %2285 = vmatmul.bf16.gmra.mxu0 %v2058
    %v2286 = vpop.f32.mrf.mxu0
    %v2287 = vadd.f32 0.0, %v2286
    %v2288 = vpop.f32.mrf.mxu0
    %2289 = vdwg.mxu0
    %2290 = vmatpush.bf16.msra.mxu0 %v2218
    %2291 = vmatpush.bf16.msra.mxu0 %v2214
    %2292 = vmatpush.bf16.msra.mxu0 %v2210
    %2293 = vmatpush.bf16.msra.mxu0 %v2206
    %2294 = vmatpush.bf16.msra.mxu0 %v2202
    %2295 = vmatpush.bf16.msra.mxu0 %v2198
    %2296 = vmatpush.bf16.msra.mxu0 %v2194
    %2297 = vmatpush.bf16.msra.mxu0 %v2190
    %2298 = vmatmul.bf16.gmra.mxu0 %v2058
    %v2299 = vpop.f32.mrf.mxu0
    %v2300 = vadd.f32 0.0, %v2299
    %v2301 = vpop.f32.mrf.mxu0
    %2302 = vdwg.mxu0
    %v2303 = vadd.f32 %v2054, %v2261
    %v2304 = vadd.f32 %v2055, %v2274
    %v2305 = vadd.f32 %v2056, %v2287
    %v2306 = vadd.f32 %v2057, %v2300
    %v2307 = vxor.u32 %v2303, 2147483648
    %v2308 = vxor.u32 %v2304, 2147483648
    %v2309 = vxor.u32 %v2305, 2147483648
    %v2310 = vmul.f32 %v2307, 1.442695
    %v2311 = vpow.pop %v2310
    %v2312 = vmul.f32 %v2308, 1.442695
    %v2313 = vpow.pop %v2312
    %v2314 = vmul.f32 %v2309, 1.442695
    %v2315 = vpow.pop %v2314
    %v2316 = vadd.f32 %v2311, 1.0
    %v2317 = vadd.f32 %v2313, 1.0
    %v2318 = vadd.f32 %v2315, 1.0
    %v2319 = vrcp.pop %v2316
    %v2320 = vmul.f32 %v2316, %v2319
    %v2321 = vsub.f32 1.0, %v2320
    %v2322 = vmul.f32 %v2319, %v2321
    %v2323 = vadd.f32 %v2319, %v2322
    %vm2324 = vweird.f32 %v2316
    %vm2325 = vweird.f32 %v2319
    %vm2326 = vmor %vm2324, %vm2325
    %v2327 = vsel %vm2326, %v2319, %v2323
    %v2328 = vand.u32 2147483647, %v2316
    %vm2329 = vcmp.eq.f32.partialorder %v2328, 8.507059e+37
    %v2330 = vand.u32 %v2316, 2147483648
    %v2331 = vor.u32 1.1754944e-38, %v2330
    %v2332 = vsel %vm2329, %v2331, %v2327
    %v2333 = vmul.f32 1.0, %v2332
    %v2334 = vrcp.pop %v2317
    %v2335 = vmul.f32 %v2317, %v2334
    %v2336 = vsub.f32 1.0, %v2335
    %v2337 = vmul.f32 %v2334, %v2336
    %v2338 = vadd.f32 %v2334, %v2337
    %vm2339 = vweird.f32 %v2317
    %vm2340 = vweird.f32 %v2334
    %vm2341 = vmor %vm2339, %vm2340
    %v2342 = vsel %vm2341, %v2334, %v2338
    %v2343 = vand.u32 2147483647, %v2317
    %vm2344 = vcmp.eq.f32.partialorder %v2343, 8.507059e+37
    %v2345 = vand.u32 %v2317, 2147483648
    %v2346 = vor.u32 1.1754944e-38, %v2345
    %v2347 = vsel %vm2344, %v2346, %v2342
    %v2348 = vmul.f32 1.0, %v2347
    %v2349 = vrcp.pop %v2318
    %v2350 = vmul.f32 %v2318, %v2349
    %v2351 = vsub.f32 1.0, %v2350
    %v2352 = vmul.f32 %v2349, %v2351
    %v2353 = vadd.f32 %v2349, %v2352
    %vm2354 = vweird.f32 %v2318
    %vm2355 = vweird.f32 %v2349
    %vm2356 = vmor %vm2354, %vm2355
    %v2357 = vsel %vm2356, %v2349, %v2353
    %v2358 = vand.u32 2147483647, %v2318
    %vm2359 = vcmp.eq.f32.partialorder %v2358, 8.507059e+37
    %v2360 = vand.u32 %v2318, 2147483648
    %v2361 = vor.u32 1.1754944e-38, %v2360
    %v2362 = vsel %vm2359, %v2361, %v2357
    %v2363 = vmul.f32 1.0, %v2362
    %v2364 = vtanh.pop %v2306
    %v2365 = vmul.f32 %v2348, %v2044
    %v2366 = vmul.f32 %v2333, %v2364
    %v2367 = vadd.f32 %v2365, %v2366
    %v2368 = vtanh.pop %v2367
    %v2369 = vmul.f32 %v2363, %v2368
    %s2370 = sadd.s32 %s437, 5
    %p2371 = scmp.eq.s32.totalorder %s2370, 7
    // Predicated region
    $region50: #{tk_stacked_lstm_forward.3} parent=1 // pred_check
      %p2372 = pneg %p2371
    $region51: #{tk_stacked_lstm_forward.3} parent=1 // pred_check_branch
      %2374 = sbr.rel (%p2372) target = $region53
    $region52: #{tk_stacked_lstm_forward.3} parent=1 // pred_region
      %2375 = vst [vmem:[%s4] sm:$0xff] %v2369
    $region53: #{tk_stacked_lstm_forward.3} parent=1 // pred_fallthru
      _
    %s2376 = scalar_lea.vmem [#allocation4], 192
    %v2377 = vld [vmem:[%s2376] sm:$0xff]
    %v2378 = vld [vmem:[%s2376 + $0x8] sm:$0xff]
    %v2379 = vld [vmem:[%s2376 + $0x10] sm:$0xff]
    %v2380 = vld [vmem:[%s2376 + $0x18] sm:$0xff]
    %v2381 = vpack.c.bf16 %v2369, %v2369
    %v2382 = vld [vmem:[#allocation7] sm:$0xff]
    %v2383 = vld [vmem:[#allocation7 + $0x8] sm:$0xff]
    %v2384 = vld [vmem:[#allocation7 + $0x10] sm:$0xff]
    %v2385 = vld [vmem:[#allocation7 + $0x18] sm:$0xff]
    %v2386 = vld [vmem:[#allocation7 + $0x20] sm:$0xff]
    %v2387 = vld [vmem:[#allocation7 + $0x28] sm:$0xff]
    %v2388 = vld [vmem:[#allocation7 + $0x30] sm:$0xff]
    %v2389 = vld [vmem:[#allocation7 + $0x38] sm:$0xff]
    %v2390 = vld [vmem:[#allocation7 + $0x40] sm:$0xff]
    %v2391 = vld [vmem:[#allocation7 + $0x48] sm:$0xff]
    %v2392 = vld [vmem:[#allocation7 + $0x50] sm:$0xff]
    %v2393 = vld [vmem:[#allocation7 + $0x58] sm:$0xff]
    %v2394 = vld [vmem:[#allocation7 + $0x60] sm:$0xff]
    %v2395 = vld [vmem:[#allocation7 + $0x68] sm:$0xff]
    %v2396 = vld [vmem:[#allocation7 + $0x70] sm:$0xff]
    %v2397 = vld [vmem:[#allocation7 + $0x78] sm:$0xff]
    %v2398 = vld [vmem:[#allocation7 + $0x80] sm:$0xff]
    %v2399 = vld [vmem:[#allocation7 + $0x88] sm:$0xff]
    %v2400 = vld [vmem:[#allocation7 + $0x90] sm:$0xff]
    %v2401 = vld [vmem:[#allocation7 + $0x98] sm:$0xff]
    %v2402 = vld [vmem:[#allocation7 + $0xa0] sm:$0xff]
    %v2403 = vld [vmem:[#allocation7 + $0xa8] sm:$0xff]
    %v2404 = vld [vmem:[#allocation7 + $0xb0] sm:$0xff]
    %v2405 = vld [vmem:[#allocation7 + $0xb8] sm:$0xff]
    %v2406 = vld [vmem:[#allocation7 + $0xc0] sm:$0xff]
    %v2407 = vld [vmem:[#allocation7 + $0xc8] sm:$0xff]
    %v2408 = vld [vmem:[#allocation7 + $0xd0] sm:$0xff]
    %v2409 = vld [vmem:[#allocation7 + $0xd8] sm:$0xff]
    %v2410 = vld [vmem:[#allocation7 + $0xe0] sm:$0xff]
    %v2411 = vld [vmem:[#allocation7 + $0xe8] sm:$0xff]
    %v2412 = vld [vmem:[#allocation7 + $0xf0] sm:$0xff]
    %v2413 = vld [vmem:[#allocation7 + $0xf8] sm:$0xff]
    %v2446 = vunpack.c.l.b16 %v2382
    %v2447 = vunpack.c.h.b16 %v2382
    %v2448 = vunpack.c.l.b16 %v2383
    %v2449 = vunpack.c.h.b16 %v2383
    %v2450 = vunpack.c.l.b16 %v2384
    %v2451 = vunpack.c.h.b16 %v2384
    %v2452 = vunpack.c.l.b16 %v2385
    %v2453 = vunpack.c.h.b16 %v2385
    %v2454 = vunpack.c.l.b16 %v2386
    %v2455 = vunpack.c.h.b16 %v2386
    %v2456 = vunpack.c.l.b16 %v2387
    %v2457 = vunpack.c.h.b16 %v2387
    %v2458 = vunpack.c.l.b16 %v2388
    %v2459 = vunpack.c.h.b16 %v2388
    %v2460 = vunpack.c.l.b16 %v2389
    %v2461 = vunpack.c.h.b16 %v2389
    %v2462 = vunpack.c.l.b16 %v2390
    %v2463 = vunpack.c.h.b16 %v2390
    %v2464 = vunpack.c.l.b16 %v2391
    %v2465 = vunpack.c.h.b16 %v2391
    %v2466 = vunpack.c.l.b16 %v2392
    %v2467 = vunpack.c.h.b16 %v2392
    %v2468 = vunpack.c.l.b16 %v2393
    %v2469 = vunpack.c.h.b16 %v2393
    %v2470 = vunpack.c.l.b16 %v2394
    %v2471 = vunpack.c.h.b16 %v2394
    %v2472 = vunpack.c.l.b16 %v2395
    %v2473 = vunpack.c.h.b16 %v2395
    %v2474 = vunpack.c.l.b16 %v2396
    %v2475 = vunpack.c.h.b16 %v2396
    %v2476 = vunpack.c.l.b16 %v2397
    %v2477 = vunpack.c.h.b16 %v2397
    %v2478 = vunpack.c.l.b16 %v2398
    %v2479 = vunpack.c.h.b16 %v2398
    %v2480 = vunpack.c.l.b16 %v2399
    %v2481 = vunpack.c.h.b16 %v2399
    %v2482 = vunpack.c.l.b16 %v2400
    %v2483 = vunpack.c.h.b16 %v2400
    %v2484 = vunpack.c.l.b16 %v2401
    %v2485 = vunpack.c.h.b16 %v2401
    %v2486 = vunpack.c.l.b16 %v2402
    %v2487 = vunpack.c.h.b16 %v2402
    %v2488 = vunpack.c.l.b16 %v2403
    %v2489 = vunpack.c.h.b16 %v2403
    %v2490 = vunpack.c.l.b16 %v2404
    %v2491 = vunpack.c.h.b16 %v2404
    %v2492 = vunpack.c.l.b16 %v2405
    %v2493 = vunpack.c.h.b16 %v2405
    %v2494 = vunpack.c.l.b16 %v2406
    %v2495 = vunpack.c.h.b16 %v2406
    %v2496 = vunpack.c.l.b16 %v2407
    %v2497 = vunpack.c.h.b16 %v2407
    %v2498 = vunpack.c.l.b16 %v2408
    %v2499 = vunpack.c.h.b16 %v2408
    %v2500 = vunpack.c.l.b16 %v2409
    %v2501 = vunpack.c.h.b16 %v2409
    %v2502 = vunpack.c.l.b16 %v2410
    %v2503 = vunpack.c.h.b16 %v2410
    %v2504 = vunpack.c.l.b16 %v2411
    %v2505 = vunpack.c.h.b16 %v2411
    %v2506 = vunpack.c.l.b16 %v2412
    %v2507 = vunpack.c.h.b16 %v2412
    %v2508 = vunpack.c.l.b16 %v2413
    %v2509 = vunpack.c.h.b16 %v2413
    %v2510 = vpack.c.b16 %v2450, %v2446
    %v2511 = vpack.c.b16 %v2451, %v2447
    %v2512 = vpack.c.b16 %v2452, %v2448
    %v2513 = vpack.c.b16 %v2453, %v2449
    %v2514 = vpack.c.b16 %v2458, %v2454
    %v2515 = vpack.c.b16 %v2459, %v2455
    %v2516 = vpack.c.b16 %v2460, %v2456
    %v2517 = vpack.c.b16 %v2461, %v2457
    %v2518 = vpack.c.b16 %v2466, %v2462
    %v2519 = vpack.c.b16 %v2467, %v2463
    %v2520 = vpack.c.b16 %v2468, %v2464
    %v2521 = vpack.c.b16 %v2469, %v2465
    %v2522 = vpack.c.b16 %v2474, %v2470
    %v2523 = vpack.c.b16 %v2475, %v2471
    %v2524 = vpack.c.b16 %v2476, %v2472
    %v2525 = vpack.c.b16 %v2477, %v2473
    %v2526 = vpack.c.b16 %v2482, %v2478
    %v2527 = vpack.c.b16 %v2483, %v2479
    %v2528 = vpack.c.b16 %v2484, %v2480
    %v2529 = vpack.c.b16 %v2485, %v2481
    %v2530 = vpack.c.b16 %v2490, %v2486
    %v2531 = vpack.c.b16 %v2491, %v2487
    %v2532 = vpack.c.b16 %v2492, %v2488
    %v2533 = vpack.c.b16 %v2493, %v2489
    %v2534 = vpack.c.b16 %v2498, %v2494
    %v2535 = vpack.c.b16 %v2499, %v2495
    %v2536 = vpack.c.b16 %v2500, %v2496
    %v2537 = vpack.c.b16 %v2501, %v2497
    %v2538 = vpack.c.b16 %v2506, %v2502
    %v2539 = vpack.c.b16 %v2507, %v2503
    %v2540 = vpack.c.b16 %v2508, %v2504
    %v2541 = vpack.c.b16 %v2509, %v2505
    %2574 = vmatpush.bf16.msra.mxu0 %v2538
    %2575 = vmatpush.bf16.msra.mxu0 %v2534
    %2576 = vmatpush.bf16.msra.mxu0 %v2530
    %2577 = vmatpush.bf16.msra.mxu0 %v2526
    %2578 = vmatpush.bf16.msra.mxu0 %v2522
    %2579 = vmatpush.bf16.msra.mxu0 %v2518
    %2580 = vmatpush.bf16.msra.mxu0 %v2514
    %2581 = vmatpush.bf16.msra.mxu0 %v2510
    %2582 = vmatmul.bf16.gmra.mxu0 %v2381
    %v2583 = vpop.f32.mrf.mxu0
    %v2584 = vadd.f32 0.0, %v2583
    %v2585 = vpop.f32.mrf.mxu0
    %2586 = vdwg.mxu0
    %2587 = vmatpush.bf16.msra.mxu0 %v2539
    %2588 = vmatpush.bf16.msra.mxu0 %v2535
    %2589 = vmatpush.bf16.msra.mxu0 %v2531
    %2590 = vmatpush.bf16.msra.mxu0 %v2527
    %2591 = vmatpush.bf16.msra.mxu0 %v2523
    %2592 = vmatpush.bf16.msra.mxu0 %v2519
    %2593 = vmatpush.bf16.msra.mxu0 %v2515
    %2594 = vmatpush.bf16.msra.mxu0 %v2511
    %2595 = vmatmul.bf16.gmra.mxu0 %v2381
    %v2596 = vpop.f32.mrf.mxu0
    %v2597 = vadd.f32 0.0, %v2596
    %v2598 = vpop.f32.mrf.mxu0
    %2599 = vdwg.mxu0
    %2600 = vmatpush.bf16.msra.mxu0 %v2540
    %2601 = vmatpush.bf16.msra.mxu0 %v2536
    %2602 = vmatpush.bf16.msra.mxu0 %v2532
    %2603 = vmatpush.bf16.msra.mxu0 %v2528
    %2604 = vmatpush.bf16.msra.mxu0 %v2524
    %2605 = vmatpush.bf16.msra.mxu0 %v2520
    %2606 = vmatpush.bf16.msra.mxu0 %v2516
    %2607 = vmatpush.bf16.msra.mxu0 %v2512
    %2608 = vmatmul.bf16.gmra.mxu0 %v2381
    %v2609 = vpop.f32.mrf.mxu0
    %v2610 = vadd.f32 0.0, %v2609
    %v2611 = vpop.f32.mrf.mxu0
    %2612 = vdwg.mxu0
    %2613 = vmatpush.bf16.msra.mxu0 %v2541
    %2614 = vmatpush.bf16.msra.mxu0 %v2537
    %2615 = vmatpush.bf16.msra.mxu0 %v2533
    %2616 = vmatpush.bf16.msra.mxu0 %v2529
    %2617 = vmatpush.bf16.msra.mxu0 %v2525
    %2618 = vmatpush.bf16.msra.mxu0 %v2521
    %2619 = vmatpush.bf16.msra.mxu0 %v2517
    %2620 = vmatpush.bf16.msra.mxu0 %v2513
    %2621 = vmatmul.bf16.gmra.mxu0 %v2381
    %v2622 = vpop.f32.mrf.mxu0
    %v2623 = vadd.f32 0.0, %v2622
    %v2624 = vpop.f32.mrf.mxu0
    %2625 = vdwg.mxu0
    %v2626 = vadd.f32 %v2377, %v2584
    %v2627 = vadd.f32 %v2378, %v2597
    %v2628 = vadd.f32 %v2379, %v2610
    %v2629 = vadd.f32 %v2380, %v2623
    %v2630 = vxor.u32 %v2626, 2147483648
    %v2631 = vxor.u32 %v2627, 2147483648
    %v2632 = vxor.u32 %v2628, 2147483648
    %v2633 = vmul.f32 %v2630, 1.442695
    %v2634 = vpow.pop %v2633
    %v2635 = vmul.f32 %v2631, 1.442695
    %v2636 = vpow.pop %v2635
    %v2637 = vmul.f32 %v2632, 1.442695
    %v2638 = vpow.pop %v2637
    %v2639 = vadd.f32 %v2634, 1.0
    %v2640 = vadd.f32 %v2636, 1.0
    %v2641 = vadd.f32 %v2638, 1.0
    %v2642 = vrcp.pop %v2639
    %v2643 = vmul.f32 %v2639, %v2642
    %v2644 = vsub.f32 1.0, %v2643
    %v2645 = vmul.f32 %v2642, %v2644
    %v2646 = vadd.f32 %v2642, %v2645
    %vm2647 = vweird.f32 %v2639
    %vm2648 = vweird.f32 %v2642
    %vm2649 = vmor %vm2647, %vm2648
    %v2650 = vsel %vm2649, %v2642, %v2646
    %v2651 = vand.u32 2147483647, %v2639
    %vm2652 = vcmp.eq.f32.partialorder %v2651, 8.507059e+37
    %v2653 = vand.u32 %v2639, 2147483648
    %v2654 = vor.u32 1.1754944e-38, %v2653
    %v2655 = vsel %vm2652, %v2654, %v2650
    %v2656 = vmul.f32 1.0, %v2655
    %v2657 = vrcp.pop %v2640
    %v2658 = vmul.f32 %v2640, %v2657
    %v2659 = vsub.f32 1.0, %v2658
    %v2660 = vmul.f32 %v2657, %v2659
    %v2661 = vadd.f32 %v2657, %v2660
    %vm2662 = vweird.f32 %v2640
    %vm2663 = vweird.f32 %v2657
    %vm2664 = vmor %vm2662, %vm2663
    %v2665 = vsel %vm2664, %v2657, %v2661
    %v2666 = vand.u32 2147483647, %v2640
    %vm2667 = vcmp.eq.f32.partialorder %v2666, 8.507059e+37
    %v2668 = vand.u32 %v2640, 2147483648
    %v2669 = vor.u32 1.1754944e-38, %v2668
    %v2670 = vsel %vm2667, %v2669, %v2665
    %v2671 = vmul.f32 1.0, %v2670
    %v2672 = vrcp.pop %v2641
    %v2673 = vmul.f32 %v2641, %v2672
    %v2674 = vsub.f32 1.0, %v2673
    %v2675 = vmul.f32 %v2672, %v2674
    %v2676 = vadd.f32 %v2672, %v2675
    %vm2677 = vweird.f32 %v2641
    %vm2678 = vweird.f32 %v2672
    %vm2679 = vmor %vm2677, %vm2678
    %v2680 = vsel %vm2679, %v2672, %v2676
    %v2681 = vand.u32 2147483647, %v2641
    %vm2682 = vcmp.eq.f32.partialorder %v2681, 8.507059e+37
    %v2683 = vand.u32 %v2641, 2147483648
    %v2684 = vor.u32 1.1754944e-38, %v2683
    %v2685 = vsel %vm2682, %v2684, %v2680
    %v2686 = vmul.f32 1.0, %v2685
    %v2687 = vtanh.pop %v2629
    %v2688 = vmul.f32 %v2671, %v2367
    %v2689 = vmul.f32 %v2656, %v2687
    %v2690 = vadd.f32 %v2688, %v2689
    %v2691 = vtanh.pop %v2690
    %v2692 = vmul.f32 %v2686, %v2691
    %s2693 = sadd.s32 %s437, 6
    %p2694 = scmp.eq.s32.totalorder %s2693, 7
    // Predicated region
    $region54: #{tk_stacked_lstm_forward.3} parent=1 // pred_check
      %p2695 = pneg %p2694
    $region55: #{tk_stacked_lstm_forward.3} parent=1 // pred_check_branch
      %2697 = sbr.rel (%p2695) target = $region57
    $region56: #{tk_stacked_lstm_forward.3} parent=1 // pred_region
      %2698 = vst [vmem:[%s4] sm:$0xff] %v2692
    $region57: #{tk_stacked_lstm_forward.3} parent=1 // pred_fallthru
      _
    %s2699 = scalar_lea.vmem [#allocation4], 224
    %v2700 = vld [vmem:[%s2699] sm:$0xff]
    %v2701 = vld [vmem:[%s2699 + $0x8] sm:$0xff]
    %v2702 = vld [vmem:[%s2699 + $0x10] sm:$0xff]
    %v2703 = vld [vmem:[%s2699 + $0x18] sm:$0xff]
    %v2704 = vpack.c.bf16 %v2692, %v2692
    %v2705 = vld [vmem:[#allocation7] sm:$0xff]
    %v2706 = vld [vmem:[#allocation7 + $0x8] sm:$0xff]
    %v2707 = vld [vmem:[#allocation7 + $0x10] sm:$0xff]
    %v2708 = vld [vmem:[#allocation7 + $0x18] sm:$0xff]
    %v2709 = vld [vmem:[#allocation7 + $0x20] sm:$0xff]
    %v2710 = vld [vmem:[#allocation7 + $0x28] sm:$0xff]
    %v2711 = vld [vmem:[#allocation7 + $0x30] sm:$0xff]
    %v2712 = vld [vmem:[#allocation7 + $0x38] sm:$0xff]
    %v2713 = vld [vmem:[#allocation7 + $0x40] sm:$0xff]
    %v2714 = vld [vmem:[#allocation7 + $0x48] sm:$0xff]
    %v2715 = vld [vmem:[#allocation7 + $0x50] sm:$0xff]
    %v2716 = vld [vmem:[#allocation7 + $0x58] sm:$0xff]
    %v2717 = vld [vmem:[#allocation7 + $0x60] sm:$0xff]
    %v2718 = vld [vmem:[#allocation7 + $0x68] sm:$0xff]
    %v2719 = vld [vmem:[#allocation7 + $0x70] sm:$0xff]
    %v2720 = vld [vmem:[#allocation7 + $0x78] sm:$0xff]
    %v2721 = vld [vmem:[#allocation7 + $0x80] sm:$0xff]
    %v2722 = vld [vmem:[#allocation7 + $0x88] sm:$0xff]
    %v2723 = vld [vmem:[#allocation7 + $0x90] sm:$0xff]
    %v2724 = vld [vmem:[#allocation7 + $0x98] sm:$0xff]
    %v2725 = vld [vmem:[#allocation7 + $0xa0] sm:$0xff]
    %v2726 = vld [vmem:[#allocation7 + $0xa8] sm:$0xff]
    %v2727 = vld [vmem:[#allocation7 + $0xb0] sm:$0xff]
    %v2728 = vld [vmem:[#allocation7 + $0xb8] sm:$0xff]
    %v2729 = vld [vmem:[#allocation7 + $0xc0] sm:$0xff]
    %v2730 = vld [vmem:[#allocation7 + $0xc8] sm:$0xff]
    %v2731 = vld [vmem:[#allocation7 + $0xd0] sm:$0xff]
    %v2732 = vld [vmem:[#allocation7 + $0xd8] sm:$0xff]
    %v2733 = vld [vmem:[#allocation7 + $0xe0] sm:$0xff]
    %v2734 = vld [vmem:[#allocation7 + $0xe8] sm:$0xff]
    %v2735 = vld [vmem:[#allocation7 + $0xf0] sm:$0xff]
    %v2736 = vld [vmem:[#allocation7 + $0xf8] sm:$0xff]
    %v2769 = vunpack.c.l.b16 %v2705
    %v2770 = vunpack.c.h.b16 %v2705
    %v2771 = vunpack.c.l.b16 %v2706
    %v2772 = vunpack.c.h.b16 %v2706
    %v2773 = vunpack.c.l.b16 %v2707
    %v2774 = vunpack.c.h.b16 %v2707
    %v2775 = vunpack.c.l.b16 %v2708
    %v2776 = vunpack.c.h.b16 %v2708
    %v2777 = vunpack.c.l.b16 %v2709
    %v2778 = vunpack.c.h.b16 %v2709
    %v2779 = vunpack.c.l.b16 %v2710
    %v2780 = vunpack.c.h.b16 %v2710
    %v2781 = vunpack.c.l.b16 %v2711
    %v2782 = vunpack.c.h.b16 %v2711
    %v2783 = vunpack.c.l.b16 %v2712
    %v2784 = vunpack.c.h.b16 %v2712
    %v2785 = vunpack.c.l.b16 %v2713
    %v2786 = vunpack.c.h.b16 %v2713
    %v2787 = vunpack.c.l.b16 %v2714
    %v2788 = vunpack.c.h.b16 %v2714
    %v2789 = vunpack.c.l.b16 %v2715
    %v2790 = vunpack.c.h.b16 %v2715
    %v2791 = vunpack.c.l.b16 %v2716
    %v2792 = vunpack.c.h.b16 %v2716
    %v2793 = vunpack.c.l.b16 %v2717
    %v2794 = vunpack.c.h.b16 %v2717
    %v2795 = vunpack.c.l.b16 %v2718
    %v2796 = vunpack.c.h.b16 %v2718
    %v2797 = vunpack.c.l.b16 %v2719
    %v2798 = vunpack.c.h.b16 %v2719
    %v2799 = vunpack.c.l.b16 %v2720
    %v2800 = vunpack.c.h.b16 %v2720
    %v2801 = vunpack.c.l.b16 %v2721
    %v2802 = vunpack.c.h.b16 %v2721
    %v2803 = vunpack.c.l.b16 %v2722
    %v2804 = vunpack.c.h.b16 %v2722
    %v2805 = vunpack.c.l.b16 %v2723
    %v2806 = vunpack.c.h.b16 %v2723
    %v2807 = vunpack.c.l.b16 %v2724
    %v2808 = vunpack.c.h.b16 %v2724
    %v2809 = vunpack.c.l.b16 %v2725
    %v2810 = vunpack.c.h.b16 %v2725
    %v2811 = vunpack.c.l.b16 %v2726
    %v2812 = vunpack.c.h.b16 %v2726
    %v2813 = vunpack.c.l.b16 %v2727
    %v2814 = vunpack.c.h.b16 %v2727
    %v2815 = vunpack.c.l.b16 %v2728
    %v2816 = vunpack.c.h.b16 %v2728
    %v2817 = vunpack.c.l.b16 %v2729
    %v2818 = vunpack.c.h.b16 %v2729
    %v2819 = vunpack.c.l.b16 %v2730
    %v2820 = vunpack.c.h.b16 %v2730
    %v2821 = vunpack.c.l.b16 %v2731
    %v2822 = vunpack.c.h.b16 %v2731
    %v2823 = vunpack.c.l.b16 %v2732
    %v2824 = vunpack.c.h.b16 %v2732
    %v2825 = vunpack.c.l.b16 %v2733
    %v2826 = vunpack.c.h.b16 %v2733
    %v2827 = vunpack.c.l.b16 %v2734
    %v2828 = vunpack.c.h.b16 %v2734
    %v2829 = vunpack.c.l.b16 %v2735
    %v2830 = vunpack.c.h.b16 %v2735
    %v2831 = vunpack.c.l.b16 %v2736
    %v2832 = vunpack.c.h.b16 %v2736
    %v2833 = vpack.c.b16 %v2773, %v2769
    %v2834 = vpack.c.b16 %v2774, %v2770
    %v2835 = vpack.c.b16 %v2775, %v2771
    %v2836 = vpack.c.b16 %v2776, %v2772
    %v2837 = vpack.c.b16 %v2781, %v2777
    %v2838 = vpack.c.b16 %v2782, %v2778
    %v2839 = vpack.c.b16 %v2783, %v2779
    %v2840 = vpack.c.b16 %v2784, %v2780
    %v2841 = vpack.c.b16 %v2789, %v2785
    %v2842 = vpack.c.b16 %v2790, %v2786
    %v2843 = vpack.c.b16 %v2791, %v2787
    %v2844 = vpack.c.b16 %v2792, %v2788
    %v2845 = vpack.c.b16 %v2797, %v2793
    %v2846 = vpack.c.b16 %v2798, %v2794
    %v2847 = vpack.c.b16 %v2799, %v2795
    %v2848 = vpack.c.b16 %v2800, %v2796
    %v2849 = vpack.c.b16 %v2805, %v2801
    %v2850 = vpack.c.b16 %v2806, %v2802
    %v2851 = vpack.c.b16 %v2807, %v2803
    %v2852 = vpack.c.b16 %v2808, %v2804
    %v2853 = vpack.c.b16 %v2813, %v2809
    %v2854 = vpack.c.b16 %v2814, %v2810
    %v2855 = vpack.c.b16 %v2815, %v2811
    %v2856 = vpack.c.b16 %v2816, %v2812
    %v2857 = vpack.c.b16 %v2821, %v2817
    %v2858 = vpack.c.b16 %v2822, %v2818
    %v2859 = vpack.c.b16 %v2823, %v2819
    %v2860 = vpack.c.b16 %v2824, %v2820
    %v2861 = vpack.c.b16 %v2829, %v2825
    %v2862 = vpack.c.b16 %v2830, %v2826
    %v2863 = vpack.c.b16 %v2831, %v2827
    %v2864 = vpack.c.b16 %v2832, %v2828
    %2897 = vmatpush.bf16.msra.mxu0 %v2861
    %2898 = vmatpush.bf16.msra.mxu0 %v2857
    %2899 = vmatpush.bf16.msra.mxu0 %v2853
    %2900 = vmatpush.bf16.msra.mxu0 %v2849
    %2901 = vmatpush.bf16.msra.mxu0 %v2845
    %2902 = vmatpush.bf16.msra.mxu0 %v2841
    %2903 = vmatpush.bf16.msra.mxu0 %v2837
    %2904 = vmatpush.bf16.msra.mxu0 %v2833
    %2905 = vmatmul.bf16.gmra.mxu0 %v2704
    %v2906 = vpop.f32.mrf.mxu0
    %v2907 = vadd.f32 0.0, %v2906
    %v2908 = vpop.f32.mrf.mxu0
    %2909 = vdwg.mxu0
    %2910 = vmatpush.bf16.msra.mxu0 %v2862
    %2911 = vmatpush.bf16.msra.mxu0 %v2858
    %2912 = vmatpush.bf16.msra.mxu0 %v2854
    %2913 = vmatpush.bf16.msra.mxu0 %v2850
    %2914 = vmatpush.bf16.msra.mxu0 %v2846
    %2915 = vmatpush.bf16.msra.mxu0 %v2842
    %2916 = vmatpush.bf16.msra.mxu0 %v2838
    %2917 = vmatpush.bf16.msra.mxu0 %v2834
    %2918 = vmatmul.bf16.gmra.mxu0 %v2704
    %v2919 = vpop.f32.mrf.mxu0
    %v2920 = vadd.f32 0.0, %v2919
    %v2921 = vpop.f32.mrf.mxu0
    %2922 = vdwg.mxu0
    %2923 = vmatpush.bf16.msra.mxu0 %v2863
    %2924 = vmatpush.bf16.msra.mxu0 %v2859
    %2925 = vmatpush.bf16.msra.mxu0 %v2855
    %2926 = vmatpush.bf16.msra.mxu0 %v2851
    %2927 = vmatpush.bf16.msra.mxu0 %v2847
    %2928 = vmatpush.bf16.msra.mxu0 %v2843
    %2929 = vmatpush.bf16.msra.mxu0 %v2839
    %2930 = vmatpush.bf16.msra.mxu0 %v2835
    %2931 = vmatmul.bf16.gmra.mxu0 %v2704
    %v2932 = vpop.f32.mrf.mxu0
    %v2933 = vadd.f32 0.0, %v2932
    %v2934 = vpop.f32.mrf.mxu0
    %2935 = vdwg.mxu0
    %2936 = vmatpush.bf16.msra.mxu0 %v2864
    %2937 = vmatpush.bf16.msra.mxu0 %v2860
    %2938 = vmatpush.bf16.msra.mxu0 %v2856
    %2939 = vmatpush.bf16.msra.mxu0 %v2852
    %2940 = vmatpush.bf16.msra.mxu0 %v2848
    %2941 = vmatpush.bf16.msra.mxu0 %v2844
    %2942 = vmatpush.bf16.msra.mxu0 %v2840
    %2943 = vmatpush.bf16.msra.mxu0 %v2836
    %2944 = vmatmul.bf16.gmra.mxu0 %v2704
    %v2945 = vpop.f32.mrf.mxu0
    %v2946 = vadd.f32 0.0, %v2945
    %v2947 = vpop.f32.mrf.mxu0
    %2948 = vdwg.mxu0
    %v2949 = vadd.f32 %v2700, %v2907
    %v2950 = vadd.f32 %v2701, %v2920
    %v2951 = vadd.f32 %v2702, %v2933
    %v2952 = vadd.f32 %v2703, %v2946
    %v2953 = vxor.u32 %v2949, 2147483648
    %v2954 = vxor.u32 %v2950, 2147483648
    %v2955 = vxor.u32 %v2951, 2147483648
    %v2956 = vmul.f32 %v2953, 1.442695
    %v2957 = vpow.pop %v2956
    %v2958 = vmul.f32 %v2954, 1.442695
    %v2959 = vpow.pop %v2958
    %v2960 = vmul.f32 %v2955, 1.442695
    %v2961 = vpow.pop %v2960
    %v2962 = vadd.f32 %v2957, 1.0
    %v2963 = vadd.f32 %v2959, 1.0
    %v2964 = vadd.f32 %v2961, 1.0
    %v2965 = vrcp.pop %v2962
    %v2966 = vmul.f32 %v2962, %v2965
    %v2967 = vsub.f32 1.0, %v2966
    %v2968 = vmul.f32 %v2965, %v2967
    %v2969 = vadd.f32 %v2965, %v2968
    %vm2970 = vweird.f32 %v2962
    %vm2971 = vweird.f32 %v2965
    %vm2972 = vmor %vm2970, %vm2971
    %v2973 = vsel %vm2972, %v2965, %v2969
    %v2974 = vand.u32 2147483647, %v2962
    %vm2975 = vcmp.eq.f32.partialorder %v2974, 8.507059e+37
    %v2976 = vand.u32 %v2962, 2147483648
    %v2977 = vor.u32 1.1754944e-38, %v2976
    %v2978 = vsel %vm2975, %v2977, %v2973
    %v2979 = vmul.f32 1.0, %v2978
    %v2980 = vrcp.pop %v2963
    %v2981 = vmul.f32 %v2963, %v2980
    %v2982 = vsub.f32 1.0, %v2981
    %v2983 = vmul.f32 %v2980, %v2982
    %v2984 = vadd.f32 %v2980, %v2983
    %vm2985 = vweird.f32 %v2963
    %vm2986 = vweird.f32 %v2980
    %vm2987 = vmor %vm2985, %vm2986
    %v2988 = vsel %vm2987, %v2980, %v2984
    %v2989 = vand.u32 2147483647, %v2963
    %vm2990 = vcmp.eq.f32.partialorder %v2989, 8.507059e+37
    %v2991 = vand.u32 %v2963, 2147483648
    %v2992 = vor.u32 1.1754944e-38, %v2991
    %v2993 = vsel %vm2990, %v2992, %v2988
    %v2994 = vmul.f32 1.0, %v2993
    %v2995 = vrcp.pop %v2964
    %v2996 = vmul.f32 %v2964, %v2995
    %v2997 = vsub.f32 1.0, %v2996
    %v2998 = vmul.f32 %v2995, %v2997
    %v2999 = vadd.f32 %v2995, %v2998
    %vm3000 = vweird.f32 %v2964
    %vm3001 = vweird.f32 %v2995
    %vm3002 = vmor %vm3000, %vm3001
    %v3003 = vsel %vm3002, %v2995, %v2999
    %v3004 = vand.u32 2147483647, %v2964
    %vm3005 = vcmp.eq.f32.partialorder %v3004, 8.507059e+37
    %v3006 = vand.u32 %v2964, 2147483648
    %v3007 = vor.u32 1.1754944e-38, %v3006
    %v3008 = vsel %vm3005, %v3007, %v3003
    %v3009 = vmul.f32 1.0, %v3008
    %v3010 = vtanh.pop %v2952
    %v3011 = vmul.f32 %v2994, %v2690
    %v3012 = vmul.f32 %v2979, %v3010
    %v3013 = vadd.f32 %v3011, %v3012
    %v3014 = vtanh.pop %v3013
    %v3015 = vmul.f32 %v3009, %v3014
    %s3016 = sadd.s32 %s437, 7
    %p3017 = scmp.eq.s32.totalorder %s3016, 7
    // Predicated region
    $region58: #{tk_stacked_lstm_forward.3} parent=1 // pred_check
      %p3018 = pneg %p3017
    $region59: #{tk_stacked_lstm_forward.3} parent=1 // pred_check_branch
      %3020 = sbr.rel (%p3018) target = $region61
    $region60: #{tk_stacked_lstm_forward.3} parent=1 // pred_region
      %3021 = vst [vmem:[%s4] sm:$0xff] %v3015
    $region61: #{tk_stacked_lstm_forward.3} parent=1 // pred_fallthru
      _
    %3022 = vst [vmem:[#allocation2] sm:$0xff] %v3015
    %3023 = vst [vmem:[#allocation3] sm:$0xff] %v3013
    // Predicated region
    $region62: #{tk_stacked_lstm_forward.3} parent=1 // pred_check
      _
    $region63: #{tk_stacked_lstm_forward.3} parent=1 // pred_check_branch
      %3025 = sbr.rel (0) target = $region65
    $region64: #{tk_stacked_lstm_forward.3} parent=1 // pred_region
      _
    $region65: #{tk_stacked_lstm_forward.3} parent=1 // pred_fallthru
      _
    // Predicated region
    $region66: #{tk_stacked_lstm_forward.3} parent=1 // pred_check
      _
    $region67: #{tk_stacked_lstm_forward.3} parent=1 // pred_check_branch
      %3027 = sbr.rel (0) target = $region69
    $region68: #{tk_stacked_lstm_forward.3} parent=1 // pred_region
      _
    $region69: #{tk_stacked_lstm_forward.3} parent=1 // pred_fallthru
      _
    %3028 = vsyncpa [#allocation6], 1
    %3029 = vsyncpa [#allocation8], 1

// kernel: tk_stacked_lstm_forward.2
$region0: #{tk_stacked_lstm_forward.2}
  #allocation0 [shape = 'u32[]', space=smem, size = 0x4, offset = 0x4, fixed_abs, tag = 'smem constant byte address 0x4 - core index']
  #allocation1 [shape = 'u32[72,128]{1,0:T(1,128)}', space=vmem, size = 0x9000, scoped, tag = 'internal scratch']
  #allocation2 [shape = 'f32[8,128]{1,0:T(8,128)}', space=vmem, size = 0x1000, scoped, tag = 'scratch operand']
  #allocation3 [shape = 'f32[8,128]{1,0:T(8,128)}', space=vmem, size = 0x1000, scoped, tag = 'scratch operand']
  #allocation4 [shape = 'f32[8,8,512]{2,1,0:T(8,128)}', space=vmem, size = 0x20000, scoped, tag = 'scratch operand']
  %s0 = inlined_call_operand.vmem [shape: bf16[8,8,16], index: 0, kind: input, shape index: {}]
  %s1 = inlined_call_operand.vmem [shape: bf16[16,512], index: 1, kind: input, shape index: {}]
  %s2 = inlined_call_operand.hbm [shape: bf16[128,512], index: 2, kind: input, shape index: {}]
  %s3 = inlined_call_operand.vmem [shape: f32[1,512], index: 3, kind: input, shape index: {}]
  %s4 = inlined_call_operand.vmem [shape: bf16[8,8,128], index: 4, kind: output, shape index: {}]
  %s5 = sld [smem:[#allocation0]]
  $region34: #{tk_stacked_lstm_forward.2} parent=0
    _
  %s7 = ssub.s32 1, %s5
  %s8 = scalar_select 0, %s7, %s5
  $region1: #{tk_stacked_lstm_forward.2} parent=0
    #allocation5 [shape = 'u8[131072]{0}', space=vmem, size = 0x20000, scoped, tag = 'input window, operand 2, single buffered']
    #allocation6 [shape = 's32[1]{0}', space=sflag, size = 0x4, scoped, tag = 'scoped memory for tk_stacked_lstm_forward.2']
    %9 = vsyncpa [#allocation6], 0
    // Predicated region
    $region2: #{tk_stacked_lstm_forward.2} parent=1 // pred_check
      _
    $region3: #{tk_stacked_lstm_forward.2} parent=1 // pred_check_branch
      %11 = sbr.rel (0) target = $region5
    $region4: #{tk_stacked_lstm_forward.2} parent=1 // pred_region
      _
    $region5: #{tk_stacked_lstm_forward.2} parent=1 // pred_fallthru
      _
    // Predicated region
    $region6: #{tk_stacked_lstm_forward.2} parent=1 // pred_check
      _
    $region7: #{tk_stacked_lstm_forward.2} parent=1 // pred_check_branch
      %13 = sbr.rel (0) target = $region9
    $region8: #{tk_stacked_lstm_forward.2} parent=1 // pred_region
      _
    $region9: #{tk_stacked_lstm_forward.2} parent=1 // pred_fallthru
      _
    // Predicated region
    $region10: #{tk_stacked_lstm_forward.2} parent=1 // pred_check
      _
    $region11: #{tk_stacked_lstm_forward.2} parent=1 // pred_check_branch
      %15 = sbr.rel (0) target = $region13
    $region12: #{tk_stacked_lstm_forward.2} parent=1 // pred_region
      %17 = vsyncadd [#allocation6], 0
      %s18 = sshll.u32 %s2, 4
      %s19 = int_to_ptr.hbm [resolvable:$true] %s18
      %s20 = sshll.u32 [#allocation5], 4
      %s21 = int_to_ptr.vmem [resolvable:$true] %s20
      %26 = dma.hbm_to_vmem [thread:$0]  %s19, 4096, %s21, [#allocation6], 256, 256, 16
    $region13: #{tk_stacked_lstm_forward.2} parent=1 // pred_fallthru
      _
    // Predicated region
    $region14: #{tk_stacked_lstm_forward.2} parent=1 // pred_check
      _
    $region15: #{tk_stacked_lstm_forward.2} parent=1 // pred_check_branch
      %28 = sbr.rel (0) target = $region17
    $region16: #{tk_stacked_lstm_forward.2} parent=1 // pred_region
      _
    $region17: #{tk_stacked_lstm_forward.2} parent=1 // pred_fallthru
      _
    // Predicated region
    $region18: #{tk_stacked_lstm_forward.2} parent=1 // pred_check
      _
    $region19: #{tk_stacked_lstm_forward.2} parent=1 // pred_check_branch
      %30 = sbr.rel (0) target = $region21
    $region20: #{tk_stacked_lstm_forward.2} parent=1 // pred_region
      %32 = dma.done [#allocation6], 4096
    $region21: #{tk_stacked_lstm_forward.2} parent=1 // pred_fallthru
      _
    %p34 = scmp.eq.s32.totalorder 0, 0
    // Predicated region
    $region22: #{tk_stacked_lstm_forward.2} parent=1 // pred_check
      %p35 = pneg %p34
    $region23: #{tk_stacked_lstm_forward.2} parent=1 // pred_check_branch
      %37 = sbr.rel (%p35) target = $region25
    $region24: #{tk_stacked_lstm_forward.2} parent=1 // pred_region
      %38 = vst [vmem:[#allocation2] sm:$0xff] 0.0
      %39 = vst [vmem:[#allocation3] sm:$0xff] 0.0
    $region25: #{tk_stacked_lstm_forward.2} parent=1 // pred_fallthru
      _
    %v40 = vld [vmem:[%s0] sm:$0xf]
    %v41 = vld [vmem:[%s0 + $0x4] sm:$0xf]
    %v42 = vld [vmem:[%s0 + $0x8] sm:$0xf]
    %v43 = vld [vmem:[%s0 + $0xc] sm:$0xf]
    %v44 = vld [vmem:[%s0 + $0x10] sm:$0xf]
    %v45 = vld [vmem:[%s0 + $0x14] sm:$0xf]
    %v46 = vld [vmem:[%s0 + $0x18] sm:$0xf]
    %v47 = vld [vmem:[%s0 + $0x1c] sm:$0xf]
    %v48 = vld [vmem:[%s1] sm:$0xff]
    %v49 = vld [vmem:[%s1 + $0x8] sm:$0xff]
    %v50 = vld [vmem:[%s1 + $0x10] sm:$0xff]
    %v51 = vld [vmem:[%s1 + $0x18] sm:$0xff]
    %v52 = vld [vmem:[%s3] sm:$0xf]
    %v54 = vperm.slane %v52, 0
    %v55 = vperm.slane %v52, 1
    %v56 = vperm.slane %v52, 2
    %v57 = vperm.slane %v52, 3
    %v70 = vunpack.c.l.b16 %v40
    %v71 = vunpack.c.l.b16 %v41
    %v72 = vunpack.c.l.b16 %v42
    %v73 = vunpack.c.l.b16 %v43
    %v74 = vunpack.c.l.b16 %v44
    %v75 = vunpack.c.l.b16 %v45
    %v76 = vunpack.c.l.b16 %v46
    %v77 = vunpack.c.l.b16 %v47
    %v78 = vpack.c.b16 %v71, %v70
    %v79 = vpack.c.b16 %v73, %v72
    %v80 = vpack.c.b16 %v75, %v74
    %v81 = vpack.c.b16 %v77, %v76
    %v86 = vunpack.c.l.b16 %v48
    %v87 = vunpack.c.h.b16 %v48
    %v88 = vunpack.c.l.b16 %v49
    %v89 = vunpack.c.h.b16 %v49
    %v90 = vunpack.c.l.b16 %v50
    %v91 = vunpack.c.h.b16 %v50
    %v92 = vunpack.c.l.b16 %v51
    %v93 = vunpack.c.h.b16 %v51
    %v94 = vpack.c.b16 %v90, %v86
    %v95 = vpack.c.b16 %v91, %v87
    %v96 = vpack.c.b16 %v92, %v88
    %v97 = vpack.c.b16 %v93, %v89
    %vm102 = vcmask 130048
    %v104 = vsel %vm102, %v78, 0
    %v107 = vsel %vm102, %v79, 0
    %v110 = vsel %vm102, %v80, 0
    %v113 = vsel %vm102, %v81, 0
    %115 = vmatpush.bf16.msra.mxu0 0
    %116 = vmatpush.bf16.msra.mxu0 0
    %117 = vmatpush.bf16.msra.mxu0 0
    %118 = vmatpush.bf16.msra.mxu0 0
    %119 = vmatpush.bf16.msra.mxu0 0
    %120 = vmatpush.bf16.msra.mxu0 0
    %121 = vmatpush.bf16.msra.mxu0 0
    %122 = vmatpush.bf16.msra.mxu0 %v94
    %123 = vmatmul.bf16.gmra.mxu0 %v104
    %v124 = vpop.f32.mrf.mxu0
    %v125 = vadd.f32 %v54, %v124
    %v126 = vpop.f32.mrf.mxu0
    %v127 = vadd.f32 %v54, %v126
    %128 = vmatmul.bf16.gmra.mxu0 %v107
    %v129 = vpop.f32.mrf.mxu0
    %v130 = vadd.f32 %v54, %v129
    %v131 = vpop.f32.mrf.mxu0
    %v132 = vadd.f32 %v54, %v131
    %133 = vmatmul.bf16.gmra.mxu0 %v110
    %v134 = vpop.f32.mrf.mxu0
    %v135 = vadd.f32 %v54, %v134
    %v136 = vpop.f32.mrf.mxu0
    %v137 = vadd.f32 %v54, %v136
    %138 = vmatmul.bf16.gmra.mxu0 %v113
    %v139 = vpop.f32.mrf.mxu0
    %v140 = vadd.f32 %v54, %v139
    %v141 = vpop.f32.mrf.mxu0
    %v142 = vadd.f32 %v54, %v141
    %143 = vdwg.mxu0
    %144 = vmatpush.bf16.msra.mxu0 0
    %145 = vmatpush.bf16.msra.mxu0 0
    %146 = vmatpush.bf16.msra.mxu0 0
    %147 = vmatpush.bf16.msra.mxu0 0
    %148 = vmatpush.bf16.msra.mxu0 0
    %149 = vmatpush.bf16.msra.mxu0 0
    %150 = vmatpush.bf16.msra.mxu0 0
    %151 = vmatpush.bf16.msra.mxu0 %v95
    %152 = vmatmul.bf16.gmra.mxu0 %v104
    %v153 = vpop.f32.mrf.mxu0
    %v154 = vadd.f32 %v55, %v153
    %v155 = vpop.f32.mrf.mxu0
    %v156 = vadd.f32 %v55, %v155
    %157 = vmatmul.bf16.gmra.mxu0 %v107
    %v158 = vpop.f32.mrf.mxu0
    %v159 = vadd.f32 %v55, %v158
    %v160 = vpop.f32.mrf.mxu0
    %v161 = vadd.f32 %v55, %v160
    %162 = vmatmul.bf16.gmra.mxu0 %v110
    %v163 = vpop.f32.mrf.mxu0
    %v164 = vadd.f32 %v55, %v163
    %v165 = vpop.f32.mrf.mxu0
    %v166 = vadd.f32 %v55, %v165
    %167 = vmatmul.bf16.gmra.mxu0 %v113
    %v168 = vpop.f32.mrf.mxu0
    %v169 = vadd.f32 %v55, %v168
    %v170 = vpop.f32.mrf.mxu0
    %v171 = vadd.f32 %v55, %v170
    %172 = vdwg.mxu0
    %173 = vmatpush.bf16.msra.mxu0 0
    %174 = vmatpush.bf16.msra.mxu0 0
    %175 = vmatpush.bf16.msra.mxu0 0
    %176 = vmatpush.bf16.msra.mxu0 0
    %177 = vmatpush.bf16.msra.mxu0 0
    %178 = vmatpush.bf16.msra.mxu0 0
    %179 = vmatpush.bf16.msra.mxu0 0
    %180 = vmatpush.bf16.msra.mxu0 %v96
    %181 = vmatmul.bf16.gmra.mxu0 %v104
    %v182 = vpop.f32.mrf.mxu0
    %v183 = vadd.f32 %v56, %v182
    %v184 = vpop.f32.mrf.mxu0
    %v185 = vadd.f32 %v56, %v184
    %186 = vmatmul.bf16.gmra.mxu0 %v107
    %v187 = vpop.f32.mrf.mxu0
    %v188 = vadd.f32 %v56, %v187
    %v189 = vpop.f32.mrf.mxu0
    %v190 = vadd.f32 %v56, %v189
    %191 = vmatmul.bf16.gmra.mxu0 %v110
    %v192 = vpop.f32.mrf.mxu0
    %v193 = vadd.f32 %v56, %v192
    %v194 = vpop.f32.mrf.mxu0
    %v195 = vadd.f32 %v56, %v194
    %196 = vmatmul.bf16.gmra.mxu0 %v113
    %v197 = vpop.f32.mrf.mxu0
    %v198 = vadd.f32 %v56, %v197
    %v199 = vpop.f32.mrf.mxu0
    %v200 = vadd.f32 %v56, %v199
    %201 = vdwg.mxu0
    %202 = vmatpush.bf16.msra.mxu0 0
    %203 = vmatpush.bf16.msra.mxu0 0
    %204 = vmatpush.bf16.msra.mxu0 0
    %205 = vmatpush.bf16.msra.mxu0 0
    %206 = vmatpush.bf16.msra.mxu0 0
    %207 = vmatpush.bf16.msra.mxu0 0
    %208 = vmatpush.bf16.msra.mxu0 0
    %209 = vmatpush.bf16.msra.mxu0 %v97
    %210 = vmatmul.bf16.gmra.mxu0 %v104
    %v211 = vpop.f32.mrf.mxu0
    %v212 = vadd.f32 %v57, %v211
    %v213 = vpop.f32.mrf.mxu0
    %v214 = vadd.f32 %v57, %v213
    %215 = vmatmul.bf16.gmra.mxu0 %v107
    %v216 = vpop.f32.mrf.mxu0
    %v217 = vadd.f32 %v57, %v216
    %v218 = vpop.f32.mrf.mxu0
    %v219 = vadd.f32 %v57, %v218
    %220 = vmatmul.bf16.gmra.mxu0 %v110
    %v221 = vpop.f32.mrf.mxu0
    %v222 = vadd.f32 %v57, %v221
    %v223 = vpop.f32.mrf.mxu0
    %v224 = vadd.f32 %v57, %v223
    %225 = vmatmul.bf16.gmra.mxu0 %v113
    %v226 = vpop.f32.mrf.mxu0
    %v227 = vadd.f32 %v57, %v226
    %v228 = vpop.f32.mrf.mxu0
    %v229 = vadd.f32 %v57, %v228
    %230 = vdwg.mxu0
    %231 = vst [vmem:[#allocation4] sm:$0xff] %v125
    %232 = vst [vmem:[#allocation4 + $0x8] sm:$0xff] %v154
    %233 = vst [vmem:[#allocation4 + $0x10] sm:$0xff] %v183
    %234 = vst [vmem:[#allocation4 + $0x18] sm:$0xff] %v212
    %235 = vst [vmem:[#allocation4 + $0x20] sm:$0xff] %v127
    %236 = vst [vmem:[#allocation4 + $0x28] sm:$0xff] %v156
    %237 = vst [vmem:[#allocation4 + $0x30] sm:$0xff] %v185
    %238 = vst [vmem:[#allocation4 + $0x38] sm:$0xff] %v214
    %239 = vst [vmem:[#allocation4 + $0x40] sm:$0xff] %v130
    %240 = vst [vmem:[#allocation4 + $0x48] sm:$0xff] %v159
    %241 = vst [vmem:[#allocation4 + $0x50] sm:$0xff] %v188
    %242 = vst [vmem:[#allocation4 + $0x58] sm:$0xff] %v217
    %243 = vst [vmem:[#allocation4 + $0x60] sm:$0xff] %v132
    %244 = vst [vmem:[#allocation4 + $0x68] sm:$0xff] %v161
    %245 = vst [vmem:[#allocation4 + $0x70] sm:$0xff] %v190
    %246 = vst [vmem:[#allocation4 + $0x78] sm:$0xff] %v219
    %247 = vst [vmem:[#allocation4 + $0x80] sm:$0xff] %v135
    %248 = vst [vmem:[#allocation4 + $0x88] sm:$0xff] %v164
    %249 = vst [vmem:[#allocation4 + $0x90] sm:$0xff] %v193
    %250 = vst [vmem:[#allocation4 + $0x98] sm:$0xff] %v222
    %251 = vst [vmem:[#allocation4 + $0xa0] sm:$0xff] %v137
    %252 = vst [vmem:[#allocation4 + $0xa8] sm:$0xff] %v166
    %253 = vst [vmem:[#allocation4 + $0xb0] sm:$0xff] %v195
    %254 = vst [vmem:[#allocation4 + $0xb8] sm:$0xff] %v224
    %255 = vst [vmem:[#allocation4 + $0xc0] sm:$0xff] %v140
    %256 = vst [vmem:[#allocation4 + $0xc8] sm:$0xff] %v169
    %257 = vst [vmem:[#allocation4 + $0xd0] sm:$0xff] %v198
    %258 = vst [vmem:[#allocation4 + $0xd8] sm:$0xff] %v227
    %259 = vst [vmem:[#allocation4 + $0xe0] sm:$0xff] %v142
    %260 = vst [vmem:[#allocation4 + $0xe8] sm:$0xff] %v171
    %261 = vst [vmem:[#allocation4 + $0xf0] sm:$0xff] %v200
    %262 = vst [vmem:[#allocation4 + $0xf8] sm:$0xff] %v229
    %v263 = vld [vmem:[#allocation2] sm:$0xff]
    %v264 = vld [vmem:[#allocation3] sm:$0xff]
    %v265 = vld [vmem:[#allocation4] sm:$0xff]
    %v266 = vld [vmem:[#allocation4 + $0x8] sm:$0xff]
    %v267 = vld [vmem:[#allocation4 + $0x10] sm:$0xff]
    %v268 = vld [vmem:[#allocation4 + $0x18] sm:$0xff]
    %v269 = vpack.c.bf16 %v263, %v263
    %v270 = vld [vmem:[#allocation5] sm:$0xff]
    %v271 = vld [vmem:[#allocation5 + $0x8] sm:$0xff]
    %v272 = vld [vmem:[#allocation5 + $0x10] sm:$0xff]
    %v273 = vld [vmem:[#allocation5 + $0x18] sm:$0xff]
    %v274 = vld [vmem:[#allocation5 + $0x20] sm:$0xff]
    %v275 = vld [vmem:[#allocation5 + $0x28] sm:$0xff]
    %v276 = vld [vmem:[#allocation5 + $0x30] sm:$0xff]
    %v277 = vld [vmem:[#allocation5 + $0x38] sm:$0xff]
    %v278 = vld [vmem:[#allocation5 + $0x40] sm:$0xff]
    %v279 = vld [vmem:[#allocation5 + $0x48] sm:$0xff]
    %v280 = vld [vmem:[#allocation5 + $0x50] sm:$0xff]
    %v281 = vld [vmem:[#allocation5 + $0x58] sm:$0xff]
    %v282 = vld [vmem:[#allocation5 + $0x60] sm:$0xff]
    %v283 = vld [vmem:[#allocation5 + $0x68] sm:$0xff]
    %v284 = vld [vmem:[#allocation5 + $0x70] sm:$0xff]
    %v285 = vld [vmem:[#allocation5 + $0x78] sm:$0xff]
    %v286 = vld [vmem:[#allocation5 + $0x80] sm:$0xff]
    %v287 = vld [vmem:[#allocation5 + $0x88] sm:$0xff]
    %v288 = vld [vmem:[#allocation5 + $0x90] sm:$0xff]
    %v289 = vld [vmem:[#allocation5 + $0x98] sm:$0xff]
    %v290 = vld [vmem:[#allocation5 + $0xa0] sm:$0xff]
    %v291 = vld [vmem:[#allocation5 + $0xa8] sm:$0xff]
    %v292 = vld [vmem:[#allocation5 + $0xb0] sm:$0xff]
    %v293 = vld [vmem:[#allocation5 + $0xb8] sm:$0xff]
    %v294 = vld [vmem:[#allocation5 + $0xc0] sm:$0xff]
    %v295 = vld [vmem:[#allocation5 + $0xc8] sm:$0xff]
    %v296 = vld [vmem:[#allocation5 + $0xd0] sm:$0xff]
    %v297 = vld [vmem:[#allocation5 + $0xd8] sm:$0xff]
    %v298 = vld [vmem:[#allocation5 + $0xe0] sm:$0xff]
    %v299 = vld [vmem:[#allocation5 + $0xe8] sm:$0xff]
    %v300 = vld [vmem:[#allocation5 + $0xf0] sm:$0xff]
    %v301 = vld [vmem:[#allocation5 + $0xf8] sm:$0xff]
    %v334 = vunpack.c.l.b16 %v270
    %v335 = vunpack.c.h.b16 %v270
    %v336 = vunpack.c.l.b16 %v271
    %v337 = vunpack.c.h.b16 %v271
    %v338 = vunpack.c.l.b16 %v272
    %v339 = vunpack.c.h.b16 %v272
    %v340 = vunpack.c.l.b16 %v273
    %v341 = vunpack.c.h.b16 %v273
    %v342 = vunpack.c.l.b16 %v274
    %v343 = vunpack.c.h.b16 %v274
    %v344 = vunpack.c.l.b16 %v275
    %v345 = vunpack.c.h.b16 %v275
    %v346 = vunpack.c.l.b16 %v276
    %v347 = vunpack.c.h.b16 %v276
    %v348 = vunpack.c.l.b16 %v277
    %v349 = vunpack.c.h.b16 %v277
    %v350 = vunpack.c.l.b16 %v278
    %v351 = vunpack.c.h.b16 %v278
    %v352 = vunpack.c.l.b16 %v279
    %v353 = vunpack.c.h.b16 %v279
    %v354 = vunpack.c.l.b16 %v280
    %v355 = vunpack.c.h.b16 %v280
    %v356 = vunpack.c.l.b16 %v281
    %v357 = vunpack.c.h.b16 %v281
    %v358 = vunpack.c.l.b16 %v282
    %v359 = vunpack.c.h.b16 %v282
    %v360 = vunpack.c.l.b16 %v283
    %v361 = vunpack.c.h.b16 %v283
    %v362 = vunpack.c.l.b16 %v284
    %v363 = vunpack.c.h.b16 %v284
    %v364 = vunpack.c.l.b16 %v285
    %v365 = vunpack.c.h.b16 %v285
    %v366 = vunpack.c.l.b16 %v286
    %v367 = vunpack.c.h.b16 %v286
    %v368 = vunpack.c.l.b16 %v287
    %v369 = vunpack.c.h.b16 %v287
    %v370 = vunpack.c.l.b16 %v288
    %v371 = vunpack.c.h.b16 %v288
    %v372 = vunpack.c.l.b16 %v289
    %v373 = vunpack.c.h.b16 %v289
    %v374 = vunpack.c.l.b16 %v290
    %v375 = vunpack.c.h.b16 %v290
    %v376 = vunpack.c.l.b16 %v291
    %v377 = vunpack.c.h.b16 %v291
    %v378 = vunpack.c.l.b16 %v292
    %v379 = vunpack.c.h.b16 %v292
    %v380 = vunpack.c.l.b16 %v293
    %v381 = vunpack.c.h.b16 %v293
    %v382 = vunpack.c.l.b16 %v294
    %v383 = vunpack.c.h.b16 %v294
    %v384 = vunpack.c.l.b16 %v295
    %v385 = vunpack.c.h.b16 %v295
    %v386 = vunpack.c.l.b16 %v296
    %v387 = vunpack.c.h.b16 %v296
    %v388 = vunpack.c.l.b16 %v297
    %v389 = vunpack.c.h.b16 %v297
    %v390 = vunpack.c.l.b16 %v298
    %v391 = vunpack.c.h.b16 %v298
    %v392 = vunpack.c.l.b16 %v299
    %v393 = vunpack.c.h.b16 %v299
    %v394 = vunpack.c.l.b16 %v300
    %v395 = vunpack.c.h.b16 %v300
    %v396 = vunpack.c.l.b16 %v301
    %v397 = vunpack.c.h.b16 %v301
    %v398 = vpack.c.b16 %v338, %v334
    %v399 = vpack.c.b16 %v339, %v335
    %v400 = vpack.c.b16 %v340, %v336
    %v401 = vpack.c.b16 %v341, %v337
    %v402 = vpack.c.b16 %v346, %v342
    %v403 = vpack.c.b16 %v347, %v343
    %v404 = vpack.c.b16 %v348, %v344
    %v405 = vpack.c.b16 %v349, %v345
    %v406 = vpack.c.b16 %v354, %v350
    %v407 = vpack.c.b16 %v355, %v351
    %v408 = vpack.c.b16 %v356, %v352
    %v409 = vpack.c.b16 %v357, %v353
    %v410 = vpack.c.b16 %v362, %v358
    %v411 = vpack.c.b16 %v363, %v359
    %v412 = vpack.c.b16 %v364, %v360
    %v413 = vpack.c.b16 %v365, %v361
    %v414 = vpack.c.b16 %v370, %v366
    %v415 = vpack.c.b16 %v371, %v367
    %v416 = vpack.c.b16 %v372, %v368
    %v417 = vpack.c.b16 %v373, %v369
    %v418 = vpack.c.b16 %v378, %v374
    %v419 = vpack.c.b16 %v379, %v375
    %v420 = vpack.c.b16 %v380, %v376
    %v421 = vpack.c.b16 %v381, %v377
    %v422 = vpack.c.b16 %v386, %v382
    %v423 = vpack.c.b16 %v387, %v383
    %v424 = vpack.c.b16 %v388, %v384
    %v425 = vpack.c.b16 %v389, %v385
    %v426 = vpack.c.b16 %v394, %v390
    %v427 = vpack.c.b16 %v395, %v391
    %v428 = vpack.c.b16 %v396, %v392
    %v429 = vpack.c.b16 %v397, %v393
    %462 = vmatpush.bf16.msra.mxu0 %v426
    %463 = vmatpush.bf16.msra.mxu0 %v422
    %464 = vmatpush.bf16.msra.mxu0 %v418
    %465 = vmatpush.bf16.msra.mxu0 %v414
    %466 = vmatpush.bf16.msra.mxu0 %v410
    %467 = vmatpush.bf16.msra.mxu0 %v406
    %468 = vmatpush.bf16.msra.mxu0 %v402
    %469 = vmatpush.bf16.msra.mxu0 %v398
    %470 = vmatmul.bf16.gmra.mxu0 %v269
    %v471 = vpop.f32.mrf.mxu0
    %v472 = vadd.f32 0.0, %v471
    %v473 = vpop.f32.mrf.mxu0
    %474 = vdwg.mxu0
    %475 = vmatpush.bf16.msra.mxu0 %v427
    %476 = vmatpush.bf16.msra.mxu0 %v423
    %477 = vmatpush.bf16.msra.mxu0 %v419
    %478 = vmatpush.bf16.msra.mxu0 %v415
    %479 = vmatpush.bf16.msra.mxu0 %v411
    %480 = vmatpush.bf16.msra.mxu0 %v407
    %481 = vmatpush.bf16.msra.mxu0 %v403
    %482 = vmatpush.bf16.msra.mxu0 %v399
    %483 = vmatmul.bf16.gmra.mxu0 %v269
    %v484 = vpop.f32.mrf.mxu0
    %v485 = vadd.f32 0.0, %v484
    %v486 = vpop.f32.mrf.mxu0
    %487 = vdwg.mxu0
    %488 = vmatpush.bf16.msra.mxu0 %v428
    %489 = vmatpush.bf16.msra.mxu0 %v424
    %490 = vmatpush.bf16.msra.mxu0 %v420
    %491 = vmatpush.bf16.msra.mxu0 %v416
    %492 = vmatpush.bf16.msra.mxu0 %v412
    %493 = vmatpush.bf16.msra.mxu0 %v408
    %494 = vmatpush.bf16.msra.mxu0 %v404
    %495 = vmatpush.bf16.msra.mxu0 %v400
    %496 = vmatmul.bf16.gmra.mxu0 %v269
    %v497 = vpop.f32.mrf.mxu0
    %v498 = vadd.f32 0.0, %v497
    %v499 = vpop.f32.mrf.mxu0
    %500 = vdwg.mxu0
    %501 = vmatpush.bf16.msra.mxu0 %v429
    %502 = vmatpush.bf16.msra.mxu0 %v425
    %503 = vmatpush.bf16.msra.mxu0 %v421
    %504 = vmatpush.bf16.msra.mxu0 %v417
    %505 = vmatpush.bf16.msra.mxu0 %v413
    %506 = vmatpush.bf16.msra.mxu0 %v409
    %507 = vmatpush.bf16.msra.mxu0 %v405
    %508 = vmatpush.bf16.msra.mxu0 %v401
    %509 = vmatmul.bf16.gmra.mxu0 %v269
    %v510 = vpop.f32.mrf.mxu0
    %v511 = vadd.f32 0.0, %v510
    %v512 = vpop.f32.mrf.mxu0
    %513 = vdwg.mxu0
    %v514 = vadd.f32 %v265, %v472
    %v515 = vadd.f32 %v266, %v485
    %v516 = vadd.f32 %v267, %v498
    %v517 = vadd.f32 %v268, %v511
    %v518 = vxor.u32 %v514, 2147483648
    %v519 = vxor.u32 %v515, 2147483648
    %v520 = vxor.u32 %v516, 2147483648
    %v521 = vmul.f32 %v518, 1.442695
    %v522 = vpow.pop %v521
    %v523 = vmul.f32 %v519, 1.442695
    %v524 = vpow.pop %v523
    %v525 = vmul.f32 %v520, 1.442695
    %v526 = vpow.pop %v525
    %v527 = vadd.f32 %v522, 1.0
    %v528 = vadd.f32 %v524, 1.0
    %v529 = vadd.f32 %v526, 1.0
    %v530 = vrcp.pop %v527
    %v531 = vmul.f32 %v527, %v530
    %v532 = vsub.f32 1.0, %v531
    %v533 = vmul.f32 %v530, %v532
    %v534 = vadd.f32 %v530, %v533
    %vm535 = vweird.f32 %v527
    %vm536 = vweird.f32 %v530
    %vm537 = vmor %vm535, %vm536
    %v538 = vsel %vm537, %v530, %v534
    %v539 = vand.u32 2147483647, %v527
    %vm540 = vcmp.eq.f32.partialorder %v539, 8.507059e+37
    %v541 = vand.u32 %v527, 2147483648
    %v542 = vor.u32 1.1754944e-38, %v541
    %v543 = vsel %vm540, %v542, %v538
    %v544 = vmul.f32 1.0, %v543
    %v545 = vrcp.pop %v528
    %v546 = vmul.f32 %v528, %v545
    %v547 = vsub.f32 1.0, %v546
    %v548 = vmul.f32 %v545, %v547
    %v549 = vadd.f32 %v545, %v548
    %vm550 = vweird.f32 %v528
    %vm551 = vweird.f32 %v545
    %vm552 = vmor %vm550, %vm551
    %v553 = vsel %vm552, %v545, %v549
    %v554 = vand.u32 2147483647, %v528
    %vm555 = vcmp.eq.f32.partialorder %v554, 8.507059e+37
    %v556 = vand.u32 %v528, 2147483648
    %v557 = vor.u32 1.1754944e-38, %v556
    %v558 = vsel %vm555, %v557, %v553
    %v559 = vmul.f32 1.0, %v558
    %v560 = vrcp.pop %v529
    %v561 = vmul.f32 %v529, %v560
    %v562 = vsub.f32 1.0, %v561
    %v563 = vmul.f32 %v560, %v562
    %v564 = vadd.f32 %v560, %v563
    %vm565 = vweird.f32 %v529
    %vm566 = vweird.f32 %v560
    %vm567 = vmor %vm565, %vm566
    %v568 = vsel %vm567, %v560, %v564
    %v569 = vand.u32 2147483647, %v529
    %vm570 = vcmp.eq.f32.partialorder %v569, 8.507059e+37
    %v571 = vand.u32 %v529, 2147483648
    %v572 = vor.u32 1.1754944e-38, %v571
    %v573 = vsel %vm570, %v572, %v568
    %v574 = vmul.f32 1.0, %v573
    %v575 = vtanh.pop %v517
    %v576 = vmul.f32 %v559, %v264
    %v577 = vmul.f32 %v544, %v575
    %v578 = vadd.f32 %v576, %v577
    %v579 = vtanh.pop %v578
    %v580 = vmul.f32 %v574, %v579
    %v581 = vpack.c.bf16 %v580, %v580
    %582 = vst [vmem:[%s4] sm:$0xf] %v581
    %s583 = scalar_lea.vmem [#allocation4], 32
    %v584 = vld [vmem:[%s583] sm:$0xff]
    %v585 = vld [vmem:[%s583 + $0x8] sm:$0xff]
    %v586 = vld [vmem:[%s583 + $0x10] sm:$0xff]
    %v587 = vld [vmem:[%s583 + $0x18] sm:$0xff]
    %v588 = vld [vmem:[#allocation5] sm:$0xff]
    %v589 = vld [vmem:[#allocation5 + $0x8] sm:$0xff]
    %v590 = vld [vmem:[#allocation5 + $0x10] sm:$0xff]
    %v591 = vld [vmem:[#allocation5 + $0x18] sm:$0xff]
    %v592 = vld [vmem:[#allocation5 + $0x20] sm:$0xff]
    %v593 = vld [vmem:[#allocation5 + $0x28] sm:$0xff]
    %v594 = vld [vmem:[#allocation5 + $0x30] sm:$0xff]
    %v595 = vld [vmem:[#allocation5 + $0x38] sm:$0xff]
    %v596 = vld [vmem:[#allocation5 + $0x40] sm:$0xff]
    %v597 = vld [vmem:[#allocation5 + $0x48] sm:$0xff]
    %v598 = vld [vmem:[#allocation5 + $0x50] sm:$0xff]
    %v599 = vld [vmem:[#allocation5 + $0x58] sm:$0xff]
    %v600 = vld [vmem:[#allocation5 + $0x60] sm:$0xff]
    %v601 = vld [vmem:[#allocation5 + $0x68] sm:$0xff]
    %v602 = vld [vmem:[#allocation5 + $0x70] sm:$0xff]
    %v603 = vld [vmem:[#allocation5 + $0x78] sm:$0xff]
    %v604 = vld [vmem:[#allocation5 + $0x80] sm:$0xff]
    %v605 = vld [vmem:[#allocation5 + $0x88] sm:$0xff]
    %v606 = vld [vmem:[#allocation5 + $0x90] sm:$0xff]
    %v607 = vld [vmem:[#allocation5 + $0x98] sm:$0xff]
    %v608 = vld [vmem:[#allocation5 + $0xa0] sm:$0xff]
    %v609 = vld [vmem:[#allocation5 + $0xa8] sm:$0xff]
    %v610 = vld [vmem:[#allocation5 + $0xb0] sm:$0xff]
    %v611 = vld [vmem:[#allocation5 + $0xb8] sm:$0xff]
    %v612 = vld [vmem:[#allocation5 + $0xc0] sm:$0xff]
    %v613 = vld [vmem:[#allocation5 + $0xc8] sm:$0xff]
    %v614 = vld [vmem:[#allocation5 + $0xd0] sm:$0xff]
    %v615 = vld [vmem:[#allocation5 + $0xd8] sm:$0xff]
    %v616 = vld [vmem:[#allocation5 + $0xe0] sm:$0xff]
    %v617 = vld [vmem:[#allocation5 + $0xe8] sm:$0xff]
    %v618 = vld [vmem:[#allocation5 + $0xf0] sm:$0xff]
    %v619 = vld [vmem:[#allocation5 + $0xf8] sm:$0xff]
    %v652 = vunpack.c.l.b16 %v588
    %v653 = vunpack.c.h.b16 %v588
    %v654 = vunpack.c.l.b16 %v589
    %v655 = vunpack.c.h.b16 %v589
    %v656 = vunpack.c.l.b16 %v590
    %v657 = vunpack.c.h.b16 %v590
    %v658 = vunpack.c.l.b16 %v591
    %v659 = vunpack.c.h.b16 %v591
    %v660 = vunpack.c.l.b16 %v592
    %v661 = vunpack.c.h.b16 %v592
    %v662 = vunpack.c.l.b16 %v593
    %v663 = vunpack.c.h.b16 %v593
    %v664 = vunpack.c.l.b16 %v594
    %v665 = vunpack.c.h.b16 %v594
    %v666 = vunpack.c.l.b16 %v595
    %v667 = vunpack.c.h.b16 %v595
    %v668 = vunpack.c.l.b16 %v596
    %v669 = vunpack.c.h.b16 %v596
    %v670 = vunpack.c.l.b16 %v597
    %v671 = vunpack.c.h.b16 %v597
    %v672 = vunpack.c.l.b16 %v598
    %v673 = vunpack.c.h.b16 %v598
    %v674 = vunpack.c.l.b16 %v599
    %v675 = vunpack.c.h.b16 %v599
    %v676 = vunpack.c.l.b16 %v600
    %v677 = vunpack.c.h.b16 %v600
    %v678 = vunpack.c.l.b16 %v601
    %v679 = vunpack.c.h.b16 %v601
    %v680 = vunpack.c.l.b16 %v602
    %v681 = vunpack.c.h.b16 %v602
    %v682 = vunpack.c.l.b16 %v603
    %v683 = vunpack.c.h.b16 %v603
    %v684 = vunpack.c.l.b16 %v604
    %v685 = vunpack.c.h.b16 %v604
    %v686 = vunpack.c.l.b16 %v605
    %v687 = vunpack.c.h.b16 %v605
    %v688 = vunpack.c.l.b16 %v606
    %v689 = vunpack.c.h.b16 %v606
    %v690 = vunpack.c.l.b16 %v607
    %v691 = vunpack.c.h.b16 %v607
    %v692 = vunpack.c.l.b16 %v608
    %v693 = vunpack.c.h.b16 %v608
    %v694 = vunpack.c.l.b16 %v609
    %v695 = vunpack.c.h.b16 %v609
    %v696 = vunpack.c.l.b16 %v610
    %v697 = vunpack.c.h.b16 %v610
    %v698 = vunpack.c.l.b16 %v611
    %v699 = vunpack.c.h.b16 %v611
    %v700 = vunpack.c.l.b16 %v612
    %v701 = vunpack.c.h.b16 %v612
    %v702 = vunpack.c.l.b16 %v613
    %v703 = vunpack.c.h.b16 %v613
    %v704 = vunpack.c.l.b16 %v614
    %v705 = vunpack.c.h.b16 %v614
    %v706 = vunpack.c.l.b16 %v615
    %v707 = vunpack.c.h.b16 %v615
    %v708 = vunpack.c.l.b16 %v616
    %v709 = vunpack.c.h.b16 %v616
    %v710 = vunpack.c.l.b16 %v617
    %v711 = vunpack.c.h.b16 %v617
    %v712 = vunpack.c.l.b16 %v618
    %v713 = vunpack.c.h.b16 %v618
    %v714 = vunpack.c.l.b16 %v619
    %v715 = vunpack.c.h.b16 %v619
    %v716 = vpack.c.b16 %v656, %v652
    %v717 = vpack.c.b16 %v657, %v653
    %v718 = vpack.c.b16 %v658, %v654
    %v719 = vpack.c.b16 %v659, %v655
    %v720 = vpack.c.b16 %v664, %v660
    %v721 = vpack.c.b16 %v665, %v661
    %v722 = vpack.c.b16 %v666, %v662
    %v723 = vpack.c.b16 %v667, %v663
    %v724 = vpack.c.b16 %v672, %v668
    %v725 = vpack.c.b16 %v673, %v669
    %v726 = vpack.c.b16 %v674, %v670
    %v727 = vpack.c.b16 %v675, %v671
    %v728 = vpack.c.b16 %v680, %v676
    %v729 = vpack.c.b16 %v681, %v677
    %v730 = vpack.c.b16 %v682, %v678
    %v731 = vpack.c.b16 %v683, %v679
    %v732 = vpack.c.b16 %v688, %v684
    %v733 = vpack.c.b16 %v689, %v685
    %v734 = vpack.c.b16 %v690, %v686
    %v735 = vpack.c.b16 %v691, %v687
    %v736 = vpack.c.b16 %v696, %v692
    %v737 = vpack.c.b16 %v697, %v693
    %v738 = vpack.c.b16 %v698, %v694
    %v739 = vpack.c.b16 %v699, %v695
    %v740 = vpack.c.b16 %v704, %v700
    %v741 = vpack.c.b16 %v705, %v701
    %v742 = vpack.c.b16 %v706, %v702
    %v743 = vpack.c.b16 %v707, %v703
    %v744 = vpack.c.b16 %v712, %v708
    %v745 = vpack.c.b16 %v713, %v709
    %v746 = vpack.c.b16 %v714, %v710
    %v747 = vpack.c.b16 %v715, %v711
    %780 = vmatpush.bf16.msra.mxu0 %v744
    %781 = vmatpush.bf16.msra.mxu0 %v740
    %782 = vmatpush.bf16.msra.mxu0 %v736
    %783 = vmatpush.bf16.msra.mxu0 %v732
    %784 = vmatpush.bf16.msra.mxu0 %v728
    %785 = vmatpush.bf16.msra.mxu0 %v724
    %786 = vmatpush.bf16.msra.mxu0 %v720
    %787 = vmatpush.bf16.msra.mxu0 %v716
    %788 = vmatmul.bf16.gmra.mxu0 %v581
    %v789 = vpop.f32.mrf.mxu0
    %v790 = vadd.f32 0.0, %v789
    %v791 = vpop.f32.mrf.mxu0
    %792 = vdwg.mxu0
    %793 = vmatpush.bf16.msra.mxu0 %v745
    %794 = vmatpush.bf16.msra.mxu0 %v741
    %795 = vmatpush.bf16.msra.mxu0 %v737
    %796 = vmatpush.bf16.msra.mxu0 %v733
    %797 = vmatpush.bf16.msra.mxu0 %v729
    %798 = vmatpush.bf16.msra.mxu0 %v725
    %799 = vmatpush.bf16.msra.mxu0 %v721
    %800 = vmatpush.bf16.msra.mxu0 %v717
    %801 = vmatmul.bf16.gmra.mxu0 %v581
    %v802 = vpop.f32.mrf.mxu0
    %v803 = vadd.f32 0.0, %v802
    %v804 = vpop.f32.mrf.mxu0
    %805 = vdwg.mxu0
    %806 = vmatpush.bf16.msra.mxu0 %v746
    %807 = vmatpush.bf16.msra.mxu0 %v742
    %808 = vmatpush.bf16.msra.mxu0 %v738
    %809 = vmatpush.bf16.msra.mxu0 %v734
    %810 = vmatpush.bf16.msra.mxu0 %v730
    %811 = vmatpush.bf16.msra.mxu0 %v726
    %812 = vmatpush.bf16.msra.mxu0 %v722
    %813 = vmatpush.bf16.msra.mxu0 %v718
    %814 = vmatmul.bf16.gmra.mxu0 %v581
    %v815 = vpop.f32.mrf.mxu0
    %v816 = vadd.f32 0.0, %v815
    %v817 = vpop.f32.mrf.mxu0
    %818 = vdwg.mxu0
    %819 = vmatpush.bf16.msra.mxu0 %v747
    %820 = vmatpush.bf16.msra.mxu0 %v743
    %821 = vmatpush.bf16.msra.mxu0 %v739
    %822 = vmatpush.bf16.msra.mxu0 %v735
    %823 = vmatpush.bf16.msra.mxu0 %v731
    %824 = vmatpush.bf16.msra.mxu0 %v727
    %825 = vmatpush.bf16.msra.mxu0 %v723
    %826 = vmatpush.bf16.msra.mxu0 %v719
    %827 = vmatmul.bf16.gmra.mxu0 %v581
    %v828 = vpop.f32.mrf.mxu0
    %v829 = vadd.f32 0.0, %v828
    %v830 = vpop.f32.mrf.mxu0
    %831 = vdwg.mxu0
    %v832 = vadd.f32 %v584, %v790
    %v833 = vadd.f32 %v585, %v803
    %v834 = vadd.f32 %v586, %v816
    %v835 = vadd.f32 %v587, %v829
    %v836 = vxor.u32 %v832, 2147483648
    %v837 = vxor.u32 %v833, 2147483648
    %v838 = vxor.u32 %v834, 2147483648
    %v839 = vmul.f32 %v836, 1.442695
    %v840 = vpow.pop %v839
    %v841 = vmul.f32 %v837, 1.442695
    %v842 = vpow.pop %v841
    %v843 = vmul.f32 %v838, 1.442695
    %v844 = vpow.pop %v843
    %v845 = vadd.f32 %v840, 1.0
    %v846 = vadd.f32 %v842, 1.0
    %v847 = vadd.f32 %v844, 1.0
    %v848 = vrcp.pop %v845
    %v849 = vmul.f32 %v845, %v848
    %v850 = vsub.f32 1.0, %v849
    %v851 = vmul.f32 %v848, %v850
    %v852 = vadd.f32 %v848, %v851
    %vm853 = vweird.f32 %v845
    %vm854 = vweird.f32 %v848
    %vm855 = vmor %vm853, %vm854
    %v856 = vsel %vm855, %v848, %v852
    %v857 = vand.u32 2147483647, %v845
    %vm858 = vcmp.eq.f32.partialorder %v857, 8.507059e+37
    %v859 = vand.u32 %v845, 2147483648
    %v860 = vor.u32 1.1754944e-38, %v859
    %v861 = vsel %vm858, %v860, %v856
    %v862 = vmul.f32 1.0, %v861
    %v863 = vrcp.pop %v846
    %v864 = vmul.f32 %v846, %v863
    %v865 = vsub.f32 1.0, %v864
    %v866 = vmul.f32 %v863, %v865
    %v867 = vadd.f32 %v863, %v866
    %vm868 = vweird.f32 %v846
    %vm869 = vweird.f32 %v863
    %vm870 = vmor %vm868, %vm869
    %v871 = vsel %vm870, %v863, %v867
    %v872 = vand.u32 2147483647, %v846
    %vm873 = vcmp.eq.f32.partialorder %v872, 8.507059e+37
    %v874 = vand.u32 %v846, 2147483648
    %v875 = vor.u32 1.1754944e-38, %v874
    %v876 = vsel %vm873, %v875, %v871
    %v877 = vmul.f32 1.0, %v876
    %v878 = vrcp.pop %v847
    %v879 = vmul.f32 %v847, %v878
    %v880 = vsub.f32 1.0, %v879
    %v881 = vmul.f32 %v878, %v880
    %v882 = vadd.f32 %v878, %v881
    %vm883 = vweird.f32 %v847
    %vm884 = vweird.f32 %v878
    %vm885 = vmor %vm883, %vm884
    %v886 = vsel %vm885, %v878, %v882
    %v887 = vand.u32 2147483647, %v847
    %vm888 = vcmp.eq.f32.partialorder %v887, 8.507059e+37
    %v889 = vand.u32 %v847, 2147483648
    %v890 = vor.u32 1.1754944e-38, %v889
    %v891 = vsel %vm888, %v890, %v886
    %v892 = vmul.f32 1.0, %v891
    %v893 = vtanh.pop %v835
    %v894 = vmul.f32 %v877, %v578
    %v895 = vmul.f32 %v862, %v893
    %v896 = vadd.f32 %v894, %v895
    %v897 = vtanh.pop %v896
    %v898 = vmul.f32 %v892, %v897
    %v899 = vpack.c.bf16 %v898, %v898
    %s900 = scalar_lea.vmem %s4, 4
    %901 = vst [vmem:[%s900] sm:$0xf] %v899
    %s902 = scalar_lea.vmem [#allocation4], 64
    %v903 = vld [vmem:[%s902] sm:$0xff]
    %v904 = vld [vmem:[%s902 + $0x8] sm:$0xff]
    %v905 = vld [vmem:[%s902 + $0x10] sm:$0xff]
    %v906 = vld [vmem:[%s902 + $0x18] sm:$0xff]
    %v907 = vld [vmem:[#allocation5] sm:$0xff]
    %v908 = vld [vmem:[#allocation5 + $0x8] sm:$0xff]
    %v909 = vld [vmem:[#allocation5 + $0x10] sm:$0xff]
    %v910 = vld [vmem:[#allocation5 + $0x18] sm:$0xff]
    %v911 = vld [vmem:[#allocation5 + $0x20] sm:$0xff]
    %v912 = vld [vmem:[#allocation5 + $0x28] sm:$0xff]
    %v913 = vld [vmem:[#allocation5 + $0x30] sm:$0xff]
    %v914 = vld [vmem:[#allocation5 + $0x38] sm:$0xff]
    %v915 = vld [vmem:[#allocation5 + $0x40] sm:$0xff]
    %v916 = vld [vmem:[#allocation5 + $0x48] sm:$0xff]
    %v917 = vld [vmem:[#allocation5 + $0x50] sm:$0xff]
    %v918 = vld [vmem:[#allocation5 + $0x58] sm:$0xff]
    %v919 = vld [vmem:[#allocation5 + $0x60] sm:$0xff]
    %v920 = vld [vmem:[#allocation5 + $0x68] sm:$0xff]
    %v921 = vld [vmem:[#allocation5 + $0x70] sm:$0xff]
    %v922 = vld [vmem:[#allocation5 + $0x78] sm:$0xff]
    %v923 = vld [vmem:[#allocation5 + $0x80] sm:$0xff]
    %v924 = vld [vmem:[#allocation5 + $0x88] sm:$0xff]
    %v925 = vld [vmem:[#allocation5 + $0x90] sm:$0xff]
    %v926 = vld [vmem:[#allocation5 + $0x98] sm:$0xff]
    %v927 = vld [vmem:[#allocation5 + $0xa0] sm:$0xff]
    %v928 = vld [vmem:[#allocation5 + $0xa8] sm:$0xff]
    %v929 = vld [vmem:[#allocation5 + $0xb0] sm:$0xff]
    %v930 = vld [vmem:[#allocation5 + $0xb8] sm:$0xff]
    %v931 = vld [vmem:[#allocation5 + $0xc0] sm:$0xff]
    %v932 = vld [vmem:[#allocation5 + $0xc8] sm:$0xff]
    %v933 = vld [vmem:[#allocation5 + $0xd0] sm:$0xff]
    %v934 = vld [vmem:[#allocation5 + $0xd8] sm:$0xff]
    %v935 = vld [vmem:[#allocation5 + $0xe0] sm:$0xff]
    %v936 = vld [vmem:[#allocation5 + $0xe8] sm:$0xff]
    %v937 = vld [vmem:[#allocation5 + $0xf0] sm:$0xff]
    %v938 = vld [vmem:[#allocation5 + $0xf8] sm:$0xff]
    %v971 = vunpack.c.l.b16 %v907
    %v972 = vunpack.c.h.b16 %v907
    %v973 = vunpack.c.l.b16 %v908
    %v974 = vunpack.c.h.b16 %v908
    %v975 = vunpack.c.l.b16 %v909
    %v976 = vunpack.c.h.b16 %v909
    %v977 = vunpack.c.l.b16 %v910
    %v978 = vunpack.c.h.b16 %v910
    %v979 = vunpack.c.l.b16 %v911
    %v980 = vunpack.c.h.b16 %v911
    %v981 = vunpack.c.l.b16 %v912
    %v982 = vunpack.c.h.b16 %v912
    %v983 = vunpack.c.l.b16 %v913
    %v984 = vunpack.c.h.b16 %v913
    %v985 = vunpack.c.l.b16 %v914
    %v986 = vunpack.c.h.b16 %v914
    %v987 = vunpack.c.l.b16 %v915
    %v988 = vunpack.c.h.b16 %v915
    %v989 = vunpack.c.l.b16 %v916
    %v990 = vunpack.c.h.b16 %v916
    %v991 = vunpack.c.l.b16 %v917
    %v992 = vunpack.c.h.b16 %v917
    %v993 = vunpack.c.l.b16 %v918
    %v994 = vunpack.c.h.b16 %v918
    %v995 = vunpack.c.l.b16 %v919
    %v996 = vunpack.c.h.b16 %v919
    %v997 = vunpack.c.l.b16 %v920
    %v998 = vunpack.c.h.b16 %v920
    %v999 = vunpack.c.l.b16 %v921
    %v1000 = vunpack.c.h.b16 %v921
    %v1001 = vunpack.c.l.b16 %v922
    %v1002 = vunpack.c.h.b16 %v922
    %v1003 = vunpack.c.l.b16 %v923
    %v1004 = vunpack.c.h.b16 %v923
    %v1005 = vunpack.c.l.b16 %v924
    %v1006 = vunpack.c.h.b16 %v924
    %v1007 = vunpack.c.l.b16 %v925
    %v1008 = vunpack.c.h.b16 %v925
    %v1009 = vunpack.c.l.b16 %v926
    %v1010 = vunpack.c.h.b16 %v926
    %v1011 = vunpack.c.l.b16 %v927
    %v1012 = vunpack.c.h.b16 %v927
    %v1013 = vunpack.c.l.b16 %v928
    %v1014 = vunpack.c.h.b16 %v928
    %v1015 = vunpack.c.l.b16 %v929
    %v1016 = vunpack.c.h.b16 %v929
    %v1017 = vunpack.c.l.b16 %v930
    %v1018 = vunpack.c.h.b16 %v930
    %v1019 = vunpack.c.l.b16 %v931
    %v1020 = vunpack.c.h.b16 %v931
    %v1021 = vunpack.c.l.b16 %v932
    %v1022 = vunpack.c.h.b16 %v932
    %v1023 = vunpack.c.l.b16 %v933
    %v1024 = vunpack.c.h.b16 %v933
    %v1025 = vunpack.c.l.b16 %v934
    %v1026 = vunpack.c.h.b16 %v934
    %v1027 = vunpack.c.l.b16 %v935
    %v1028 = vunpack.c.h.b16 %v935
    %v1029 = vunpack.c.l.b16 %v936
    %v1030 = vunpack.c.h.b16 %v936
    %v1031 = vunpack.c.l.b16 %v937
    %v1032 = vunpack.c.h.b16 %v937
    %v1033 = vunpack.c.l.b16 %v938
    %v1034 = vunpack.c.h.b16 %v938
    %v1035 = vpack.c.b16 %v975, %v971
    %v1036 = vpack.c.b16 %v976, %v972
    %v1037 = vpack.c.b16 %v977, %v973
    %v1038 = vpack.c.b16 %v978, %v974
    %v1039 = vpack.c.b16 %v983, %v979
    %v1040 = vpack.c.b16 %v984, %v980
    %v1041 = vpack.c.b16 %v985, %v981
    %v1042 = vpack.c.b16 %v986, %v982
    %v1043 = vpack.c.b16 %v991, %v987
    %v1044 = vpack.c.b16 %v992, %v988
    %v1045 = vpack.c.b16 %v993, %v989
    %v1046 = vpack.c.b16 %v994, %v990
    %v1047 = vpack.c.b16 %v999, %v995
    %v1048 = vpack.c.b16 %v1000, %v996
    %v1049 = vpack.c.b16 %v1001, %v997
    %v1050 = vpack.c.b16 %v1002, %v998
    %v1051 = vpack.c.b16 %v1007, %v1003
    %v1052 = vpack.c.b16 %v1008, %v1004
    %v1053 = vpack.c.b16 %v1009, %v1005
    %v1054 = vpack.c.b16 %v1010, %v1006
    %v1055 = vpack.c.b16 %v1015, %v1011
    %v1056 = vpack.c.b16 %v1016, %v1012
    %v1057 = vpack.c.b16 %v1017, %v1013
    %v1058 = vpack.c.b16 %v1018, %v1014
    %v1059 = vpack.c.b16 %v1023, %v1019
    %v1060 = vpack.c.b16 %v1024, %v1020
    %v1061 = vpack.c.b16 %v1025, %v1021
    %v1062 = vpack.c.b16 %v1026, %v1022
    %v1063 = vpack.c.b16 %v1031, %v1027
    %v1064 = vpack.c.b16 %v1032, %v1028
    %v1065 = vpack.c.b16 %v1033, %v1029
    %v1066 = vpack.c.b16 %v1034, %v1030
    %1099 = vmatpush.bf16.msra.mxu0 %v1063
    %1100 = vmatpush.bf16.msra.mxu0 %v1059
    %1101 = vmatpush.bf16.msra.mxu0 %v1055
    %1102 = vmatpush.bf16.msra.mxu0 %v1051
    %1103 = vmatpush.bf16.msra.mxu0 %v1047
    %1104 = vmatpush.bf16.msra.mxu0 %v1043
    %1105 = vmatpush.bf16.msra.mxu0 %v1039
    %1106 = vmatpush.bf16.msra.mxu0 %v1035
    %1107 = vmatmul.bf16.gmra.mxu0 %v899
    %v1108 = vpop.f32.mrf.mxu0
    %v1109 = vadd.f32 0.0, %v1108
    %v1110 = vpop.f32.mrf.mxu0
    %1111 = vdwg.mxu0
    %1112 = vmatpush.bf16.msra.mxu0 %v1064
    %1113 = vmatpush.bf16.msra.mxu0 %v1060
    %1114 = vmatpush.bf16.msra.mxu0 %v1056
    %1115 = vmatpush.bf16.msra.mxu0 %v1052
    %1116 = vmatpush.bf16.msra.mxu0 %v1048
    %1117 = vmatpush.bf16.msra.mxu0 %v1044
    %1118 = vmatpush.bf16.msra.mxu0 %v1040
    %1119 = vmatpush.bf16.msra.mxu0 %v1036
    %1120 = vmatmul.bf16.gmra.mxu0 %v899
    %v1121 = vpop.f32.mrf.mxu0
    %v1122 = vadd.f32 0.0, %v1121
    %v1123 = vpop.f32.mrf.mxu0
    %1124 = vdwg.mxu0
    %1125 = vmatpush.bf16.msra.mxu0 %v1065
    %1126 = vmatpush.bf16.msra.mxu0 %v1061
    %1127 = vmatpush.bf16.msra.mxu0 %v1057
    %1128 = vmatpush.bf16.msra.mxu0 %v1053
    %1129 = vmatpush.bf16.msra.mxu0 %v1049
    %1130 = vmatpush.bf16.msra.mxu0 %v1045
    %1131 = vmatpush.bf16.msra.mxu0 %v1041
    %1132 = vmatpush.bf16.msra.mxu0 %v1037
    %1133 = vmatmul.bf16.gmra.mxu0 %v899
    %v1134 = vpop.f32.mrf.mxu0
    %v1135 = vadd.f32 0.0, %v1134
    %v1136 = vpop.f32.mrf.mxu0
    %1137 = vdwg.mxu0
    %1138 = vmatpush.bf16.msra.mxu0 %v1066
    %1139 = vmatpush.bf16.msra.mxu0 %v1062
    %1140 = vmatpush.bf16.msra.mxu0 %v1058
    %1141 = vmatpush.bf16.msra.mxu0 %v1054
    %1142 = vmatpush.bf16.msra.mxu0 %v1050
    %1143 = vmatpush.bf16.msra.mxu0 %v1046
    %1144 = vmatpush.bf16.msra.mxu0 %v1042
    %1145 = vmatpush.bf16.msra.mxu0 %v1038
    %1146 = vmatmul.bf16.gmra.mxu0 %v899
    %v1147 = vpop.f32.mrf.mxu0
    %v1148 = vadd.f32 0.0, %v1147
    %v1149 = vpop.f32.mrf.mxu0
    %1150 = vdwg.mxu0
    %v1151 = vadd.f32 %v903, %v1109
    %v1152 = vadd.f32 %v904, %v1122
    %v1153 = vadd.f32 %v905, %v1135
    %v1154 = vadd.f32 %v906, %v1148
    %v1155 = vxor.u32 %v1151, 2147483648
    %v1156 = vxor.u32 %v1152, 2147483648
    %v1157 = vxor.u32 %v1153, 2147483648
    %v1158 = vmul.f32 %v1155, 1.442695
    %v1159 = vpow.pop %v1158
    %v1160 = vmul.f32 %v1156, 1.442695
    %v1161 = vpow.pop %v1160
    %v1162 = vmul.f32 %v1157, 1.442695
    %v1163 = vpow.pop %v1162
    %v1164 = vadd.f32 %v1159, 1.0
    %v1165 = vadd.f32 %v1161, 1.0
    %v1166 = vadd.f32 %v1163, 1.0
    %v1167 = vrcp.pop %v1164
    %v1168 = vmul.f32 %v1164, %v1167
    %v1169 = vsub.f32 1.0, %v1168
    %v1170 = vmul.f32 %v1167, %v1169
    %v1171 = vadd.f32 %v1167, %v1170
    %vm1172 = vweird.f32 %v1164
    %vm1173 = vweird.f32 %v1167
    %vm1174 = vmor %vm1172, %vm1173
    %v1175 = vsel %vm1174, %v1167, %v1171
    %v1176 = vand.u32 2147483647, %v1164
    %vm1177 = vcmp.eq.f32.partialorder %v1176, 8.507059e+37
    %v1178 = vand.u32 %v1164, 2147483648
    %v1179 = vor.u32 1.1754944e-38, %v1178
    %v1180 = vsel %vm1177, %v1179, %v1175
    %v1181 = vmul.f32 1.0, %v1180
    %v1182 = vrcp.pop %v1165
    %v1183 = vmul.f32 %v1165, %v1182
    %v1184 = vsub.f32 1.0, %v1183
    %v1185 = vmul.f32 %v1182, %v1184
    %v1186 = vadd.f32 %v1182, %v1185
    %vm1187 = vweird.f32 %v1165
    %vm1188 = vweird.f32 %v1182
    %vm1189 = vmor %vm1187, %vm1188
    %v1190 = vsel %vm1189, %v1182, %v1186
    %v1191 = vand.u32 2147483647, %v1165
    %vm1192 = vcmp.eq.f32.partialorder %v1191, 8.507059e+37
    %v1193 = vand.u32 %v1165, 2147483648
    %v1194 = vor.u32 1.1754944e-38, %v1193
    %v1195 = vsel %vm1192, %v1194, %v1190
    %v1196 = vmul.f32 1.0, %v1195
    %v1197 = vrcp.pop %v1166
    %v1198 = vmul.f32 %v1166, %v1197
    %v1199 = vsub.f32 1.0, %v1198
    %v1200 = vmul.f32 %v1197, %v1199
    %v1201 = vadd.f32 %v1197, %v1200
    %vm1202 = vweird.f32 %v1166
    %vm1203 = vweird.f32 %v1197
    %vm1204 = vmor %vm1202, %vm1203
    %v1205 = vsel %vm1204, %v1197, %v1201
    %v1206 = vand.u32 2147483647, %v1166
    %vm1207 = vcmp.eq.f32.partialorder %v1206, 8.507059e+37
    %v1208 = vand.u32 %v1166, 2147483648
    %v1209 = vor.u32 1.1754944e-38, %v1208
    %v1210 = vsel %vm1207, %v1209, %v1205
    %v1211 = vmul.f32 1.0, %v1210
    %v1212 = vtanh.pop %v1154
    %v1213 = vmul.f32 %v1196, %v896
    %v1214 = vmul.f32 %v1181, %v1212
    %v1215 = vadd.f32 %v1213, %v1214
    %v1216 = vtanh.pop %v1215
    %v1217 = vmul.f32 %v1211, %v1216
    %v1218 = vpack.c.bf16 %v1217, %v1217
    %s1219 = scalar_lea.vmem %s4, 8
    %1220 = vst [vmem:[%s1219] sm:$0xf] %v1218
    %s1221 = scalar_lea.vmem [#allocation4], 96
    %v1222 = vld [vmem:[%s1221] sm:$0xff]
    %v1223 = vld [vmem:[%s1221 + $0x8] sm:$0xff]
    %v1224 = vld [vmem:[%s1221 + $0x10] sm:$0xff]
    %v1225 = vld [vmem:[%s1221 + $0x18] sm:$0xff]
    %v1226 = vld [vmem:[#allocation5] sm:$0xff]
    %v1227 = vld [vmem:[#allocation5 + $0x8] sm:$0xff]
    %v1228 = vld [vmem:[#allocation5 + $0x10] sm:$0xff]
    %v1229 = vld [vmem:[#allocation5 + $0x18] sm:$0xff]
    %v1230 = vld [vmem:[#allocation5 + $0x20] sm:$0xff]
    %v1231 = vld [vmem:[#allocation5 + $0x28] sm:$0xff]
    %v1232 = vld [vmem:[#allocation5 + $0x30] sm:$0xff]
    %v1233 = vld [vmem:[#allocation5 + $0x38] sm:$0xff]
    %v1234 = vld [vmem:[#allocation5 + $0x40] sm:$0xff]
    %v1235 = vld [vmem:[#allocation5 + $0x48] sm:$0xff]
    %v1236 = vld [vmem:[#allocation5 + $0x50] sm:$0xff]
    %v1237 = vld [vmem:[#allocation5 + $0x58] sm:$0xff]
    %v1238 = vld [vmem:[#allocation5 + $0x60] sm:$0xff]
    %v1239 = vld [vmem:[#allocation5 + $0x68] sm:$0xff]
    %v1240 = vld [vmem:[#allocation5 + $0x70] sm:$0xff]
    %v1241 = vld [vmem:[#allocation5 + $0x78] sm:$0xff]
    %v1242 = vld [vmem:[#allocation5 + $0x80] sm:$0xff]
    %v1243 = vld [vmem:[#allocation5 + $0x88] sm:$0xff]
    %v1244 = vld [vmem:[#allocation5 + $0x90] sm:$0xff]
    %v1245 = vld [vmem:[#allocation5 + $0x98] sm:$0xff]
    %v1246 = vld [vmem:[#allocation5 + $0xa0] sm:$0xff]
    %v1247 = vld [vmem:[#allocation5 + $0xa8] sm:$0xff]
    %v1248 = vld [vmem:[#allocation5 + $0xb0] sm:$0xff]
    %v1249 = vld [vmem:[#allocation5 + $0xb8] sm:$0xff]
    %v1250 = vld [vmem:[#allocation5 + $0xc0] sm:$0xff]
    %v1251 = vld [vmem:[#allocation5 + $0xc8] sm:$0xff]
    %v1252 = vld [vmem:[#allocation5 + $0xd0] sm:$0xff]
    %v1253 = vld [vmem:[#allocation5 + $0xd8] sm:$0xff]
    %v1254 = vld [vmem:[#allocation5 + $0xe0] sm:$0xff]
    %v1255 = vld [vmem:[#allocation5 + $0xe8] sm:$0xff]
    %v1256 = vld [vmem:[#allocation5 + $0xf0] sm:$0xff]
    %v1257 = vld [vmem:[#allocation5 + $0xf8] sm:$0xff]
    %v1290 = vunpack.c.l.b16 %v1226
    %v1291 = vunpack.c.h.b16 %v1226
    %v1292 = vunpack.c.l.b16 %v1227
    %v1293 = vunpack.c.h.b16 %v1227
    %v1294 = vunpack.c.l.b16 %v1228
    %v1295 = vunpack.c.h.b16 %v1228
    %v1296 = vunpack.c.l.b16 %v1229
    %v1297 = vunpack.c.h.b16 %v1229
    %v1298 = vunpack.c.l.b16 %v1230
    %v1299 = vunpack.c.h.b16 %v1230
    %v1300 = vunpack.c.l.b16 %v1231
    %v1301 = vunpack.c.h.b16 %v1231
    %v1302 = vunpack.c.l.b16 %v1232
    %v1303 = vunpack.c.h.b16 %v1232
    %v1304 = vunpack.c.l.b16 %v1233
    %v1305 = vunpack.c.h.b16 %v1233
    %v1306 = vunpack.c.l.b16 %v1234
    %v1307 = vunpack.c.h.b16 %v1234
    %v1308 = vunpack.c.l.b16 %v1235
    %v1309 = vunpack.c.h.b16 %v1235
    %v1310 = vunpack.c.l.b16 %v1236
    %v1311 = vunpack.c.h.b16 %v1236
    %v1312 = vunpack.c.l.b16 %v1237
    %v1313 = vunpack.c.h.b16 %v1237
    %v1314 = vunpack.c.l.b16 %v1238
    %v1315 = vunpack.c.h.b16 %v1238
    %v1316 = vunpack.c.l.b16 %v1239
    %v1317 = vunpack.c.h.b16 %v1239
    %v1318 = vunpack.c.l.b16 %v1240
    %v1319 = vunpack.c.h.b16 %v1240
    %v1320 = vunpack.c.l.b16 %v1241
    %v1321 = vunpack.c.h.b16 %v1241
    %v1322 = vunpack.c.l.b16 %v1242
    %v1323 = vunpack.c.h.b16 %v1242
    %v1324 = vunpack.c.l.b16 %v1243
    %v1325 = vunpack.c.h.b16 %v1243
    %v1326 = vunpack.c.l.b16 %v1244
    %v1327 = vunpack.c.h.b16 %v1244
    %v1328 = vunpack.c.l.b16 %v1245
    %v1329 = vunpack.c.h.b16 %v1245
    %v1330 = vunpack.c.l.b16 %v1246
    %v1331 = vunpack.c.h.b16 %v1246
    %v1332 = vunpack.c.l.b16 %v1247
    %v1333 = vunpack.c.h.b16 %v1247
    %v1334 = vunpack.c.l.b16 %v1248
    %v1335 = vunpack.c.h.b16 %v1248
    %v1336 = vunpack.c.l.b16 %v1249
    %v1337 = vunpack.c.h.b16 %v1249
    %v1338 = vunpack.c.l.b16 %v1250
    %v1339 = vunpack.c.h.b16 %v1250
    %v1340 = vunpack.c.l.b16 %v1251
    %v1341 = vunpack.c.h.b16 %v1251
    %v1342 = vunpack.c.l.b16 %v1252
    %v1343 = vunpack.c.h.b16 %v1252
    %v1344 = vunpack.c.l.b16 %v1253
    %v1345 = vunpack.c.h.b16 %v1253
    %v1346 = vunpack.c.l.b16 %v1254
    %v1347 = vunpack.c.h.b16 %v1254
    %v1348 = vunpack.c.l.b16 %v1255
    %v1349 = vunpack.c.h.b16 %v1255
    %v1350 = vunpack.c.l.b16 %v1256
    %v1351 = vunpack.c.h.b16 %v1256
    %v1352 = vunpack.c.l.b16 %v1257
    %v1353 = vunpack.c.h.b16 %v1257
    %v1354 = vpack.c.b16 %v1294, %v1290
    %v1355 = vpack.c.b16 %v1295, %v1291
    %v1356 = vpack.c.b16 %v1296, %v1292
    %v1357 = vpack.c.b16 %v1297, %v1293
    %v1358 = vpack.c.b16 %v1302, %v1298
    %v1359 = vpack.c.b16 %v1303, %v1299
    %v1360 = vpack.c.b16 %v1304, %v1300
    %v1361 = vpack.c.b16 %v1305, %v1301
    %v1362 = vpack.c.b16 %v1310, %v1306
    %v1363 = vpack.c.b16 %v1311, %v1307
    %v1364 = vpack.c.b16 %v1312, %v1308
    %v1365 = vpack.c.b16 %v1313, %v1309
    %v1366 = vpack.c.b16 %v1318, %v1314
    %v1367 = vpack.c.b16 %v1319, %v1315
    %v1368 = vpack.c.b16 %v1320, %v1316
    %v1369 = vpack.c.b16 %v1321, %v1317
    %v1370 = vpack.c.b16 %v1326, %v1322
    %v1371 = vpack.c.b16 %v1327, %v1323
    %v1372 = vpack.c.b16 %v1328, %v1324
    %v1373 = vpack.c.b16 %v1329, %v1325
    %v1374 = vpack.c.b16 %v1334, %v1330
    %v1375 = vpack.c.b16 %v1335, %v1331
    %v1376 = vpack.c.b16 %v1336, %v1332
    %v1377 = vpack.c.b16 %v1337, %v1333
    %v1378 = vpack.c.b16 %v1342, %v1338
    %v1379 = vpack.c.b16 %v1343, %v1339
    %v1380 = vpack.c.b16 %v1344, %v1340
    %v1381 = vpack.c.b16 %v1345, %v1341
    %v1382 = vpack.c.b16 %v1350, %v1346
    %v1383 = vpack.c.b16 %v1351, %v1347
    %v1384 = vpack.c.b16 %v1352, %v1348
    %v1385 = vpack.c.b16 %v1353, %v1349
    %1418 = vmatpush.bf16.msra.mxu0 %v1382
    %1419 = vmatpush.bf16.msra.mxu0 %v1378
    %1420 = vmatpush.bf16.msra.mxu0 %v1374
    %1421 = vmatpush.bf16.msra.mxu0 %v1370
    %1422 = vmatpush.bf16.msra.mxu0 %v1366
    %1423 = vmatpush.bf16.msra.mxu0 %v1362
    %1424 = vmatpush.bf16.msra.mxu0 %v1358
    %1425 = vmatpush.bf16.msra.mxu0 %v1354
    %1426 = vmatmul.bf16.gmra.mxu0 %v1218
    %v1427 = vpop.f32.mrf.mxu0
    %v1428 = vadd.f32 0.0, %v1427
    %v1429 = vpop.f32.mrf.mxu0
    %1430 = vdwg.mxu0
    %1431 = vmatpush.bf16.msra.mxu0 %v1383
    %1432 = vmatpush.bf16.msra.mxu0 %v1379
    %1433 = vmatpush.bf16.msra.mxu0 %v1375
    %1434 = vmatpush.bf16.msra.mxu0 %v1371
    %1435 = vmatpush.bf16.msra.mxu0 %v1367
    %1436 = vmatpush.bf16.msra.mxu0 %v1363
    %1437 = vmatpush.bf16.msra.mxu0 %v1359
    %1438 = vmatpush.bf16.msra.mxu0 %v1355
    %1439 = vmatmul.bf16.gmra.mxu0 %v1218
    %v1440 = vpop.f32.mrf.mxu0
    %v1441 = vadd.f32 0.0, %v1440
    %v1442 = vpop.f32.mrf.mxu0
    %1443 = vdwg.mxu0
    %1444 = vmatpush.bf16.msra.mxu0 %v1384
    %1445 = vmatpush.bf16.msra.mxu0 %v1380
    %1446 = vmatpush.bf16.msra.mxu0 %v1376
    %1447 = vmatpush.bf16.msra.mxu0 %v1372
    %1448 = vmatpush.bf16.msra.mxu0 %v1368
    %1449 = vmatpush.bf16.msra.mxu0 %v1364
    %1450 = vmatpush.bf16.msra.mxu0 %v1360
    %1451 = vmatpush.bf16.msra.mxu0 %v1356
    %1452 = vmatmul.bf16.gmra.mxu0 %v1218
    %v1453 = vpop.f32.mrf.mxu0
    %v1454 = vadd.f32 0.0, %v1453
    %v1455 = vpop.f32.mrf.mxu0
    %1456 = vdwg.mxu0
    %1457 = vmatpush.bf16.msra.mxu0 %v1385
    %1458 = vmatpush.bf16.msra.mxu0 %v1381
    %1459 = vmatpush.bf16.msra.mxu0 %v1377
    %1460 = vmatpush.bf16.msra.mxu0 %v1373
    %1461 = vmatpush.bf16.msra.mxu0 %v1369
    %1462 = vmatpush.bf16.msra.mxu0 %v1365
    %1463 = vmatpush.bf16.msra.mxu0 %v1361
    %1464 = vmatpush.bf16.msra.mxu0 %v1357
    %1465 = vmatmul.bf16.gmra.mxu0 %v1218
    %v1466 = vpop.f32.mrf.mxu0
    %v1467 = vadd.f32 0.0, %v1466
    %v1468 = vpop.f32.mrf.mxu0
    %1469 = vdwg.mxu0
    %v1470 = vadd.f32 %v1222, %v1428
    %v1471 = vadd.f32 %v1223, %v1441
    %v1472 = vadd.f32 %v1224, %v1454
    %v1473 = vadd.f32 %v1225, %v1467
    %v1474 = vxor.u32 %v1470, 2147483648
    %v1475 = vxor.u32 %v1471, 2147483648
    %v1476 = vxor.u32 %v1472, 2147483648
    %v1477 = vmul.f32 %v1474, 1.442695
    %v1478 = vpow.pop %v1477
    %v1479 = vmul.f32 %v1475, 1.442695
    %v1480 = vpow.pop %v1479
    %v1481 = vmul.f32 %v1476, 1.442695
    %v1482 = vpow.pop %v1481
    %v1483 = vadd.f32 %v1478, 1.0
    %v1484 = vadd.f32 %v1480, 1.0
    %v1485 = vadd.f32 %v1482, 1.0
    %v1486 = vrcp.pop %v1483
    %v1487 = vmul.f32 %v1483, %v1486
    %v1488 = vsub.f32 1.0, %v1487
    %v1489 = vmul.f32 %v1486, %v1488
    %v1490 = vadd.f32 %v1486, %v1489
    %vm1491 = vweird.f32 %v1483
    %vm1492 = vweird.f32 %v1486
    %vm1493 = vmor %vm1491, %vm1492
    %v1494 = vsel %vm1493, %v1486, %v1490
    %v1495 = vand.u32 2147483647, %v1483
    %vm1496 = vcmp.eq.f32.partialorder %v1495, 8.507059e+37
    %v1497 = vand.u32 %v1483, 2147483648
    %v1498 = vor.u32 1.1754944e-38, %v1497
    %v1499 = vsel %vm1496, %v1498, %v1494
    %v1500 = vmul.f32 1.0, %v1499
    %v1501 = vrcp.pop %v1484
    %v1502 = vmul.f32 %v1484, %v1501
    %v1503 = vsub.f32 1.0, %v1502
    %v1504 = vmul.f32 %v1501, %v1503
    %v1505 = vadd.f32 %v1501, %v1504
    %vm1506 = vweird.f32 %v1484
    %vm1507 = vweird.f32 %v1501
    %vm1508 = vmor %vm1506, %vm1507
    %v1509 = vsel %vm1508, %v1501, %v1505
    %v1510 = vand.u32 2147483647, %v1484
    %vm1511 = vcmp.eq.f32.partialorder %v1510, 8.507059e+37
    %v1512 = vand.u32 %v1484, 2147483648
    %v1513 = vor.u32 1.1754944e-38, %v1512
    %v1514 = vsel %vm1511, %v1513, %v1509
    %v1515 = vmul.f32 1.0, %v1514
    %v1516 = vrcp.pop %v1485
    %v1517 = vmul.f32 %v1485, %v1516
    %v1518 = vsub.f32 1.0, %v1517
    %v1519 = vmul.f32 %v1516, %v1518
    %v1520 = vadd.f32 %v1516, %v1519
    %vm1521 = vweird.f32 %v1485
    %vm1522 = vweird.f32 %v1516
    %vm1523 = vmor %vm1521, %vm1522
    %v1524 = vsel %vm1523, %v1516, %v1520
    %v1525 = vand.u32 2147483647, %v1485
    %vm1526 = vcmp.eq.f32.partialorder %v1525, 8.507059e+37
    %v1527 = vand.u32 %v1485, 2147483648
    %v1528 = vor.u32 1.1754944e-38, %v1527
    %v1529 = vsel %vm1526, %v1528, %v1524
    %v1530 = vmul.f32 1.0, %v1529
    %v1531 = vtanh.pop %v1473
    %v1532 = vmul.f32 %v1515, %v1215
    %v1533 = vmul.f32 %v1500, %v1531
    %v1534 = vadd.f32 %v1532, %v1533
    %v1535 = vtanh.pop %v1534
    %v1536 = vmul.f32 %v1530, %v1535
    %v1537 = vpack.c.bf16 %v1536, %v1536
    %s1538 = scalar_lea.vmem %s4, 12
    %1539 = vst [vmem:[%s1538] sm:$0xf] %v1537
    %s1540 = scalar_lea.vmem [#allocation4], 128
    %v1541 = vld [vmem:[%s1540] sm:$0xff]
    %v1542 = vld [vmem:[%s1540 + $0x8] sm:$0xff]
    %v1543 = vld [vmem:[%s1540 + $0x10] sm:$0xff]
    %v1544 = vld [vmem:[%s1540 + $0x18] sm:$0xff]
    %v1545 = vld [vmem:[#allocation5] sm:$0xff]
    %v1546 = vld [vmem:[#allocation5 + $0x8] sm:$0xff]
    %v1547 = vld [vmem:[#allocation5 + $0x10] sm:$0xff]
    %v1548 = vld [vmem:[#allocation5 + $0x18] sm:$0xff]
    %v1549 = vld [vmem:[#allocation5 + $0x20] sm:$0xff]
    %v1550 = vld [vmem:[#allocation5 + $0x28] sm:$0xff]
    %v1551 = vld [vmem:[#allocation5 + $0x30] sm:$0xff]
    %v1552 = vld [vmem:[#allocation5 + $0x38] sm:$0xff]
    %v1553 = vld [vmem:[#allocation5 + $0x40] sm:$0xff]
    %v1554 = vld [vmem:[#allocation5 + $0x48] sm:$0xff]
    %v1555 = vld [vmem:[#allocation5 + $0x50] sm:$0xff]
    %v1556 = vld [vmem:[#allocation5 + $0x58] sm:$0xff]
    %v1557 = vld [vmem:[#allocation5 + $0x60] sm:$0xff]
    %v1558 = vld [vmem:[#allocation5 + $0x68] sm:$0xff]
    %v1559 = vld [vmem:[#allocation5 + $0x70] sm:$0xff]
    %v1560 = vld [vmem:[#allocation5 + $0x78] sm:$0xff]
    %v1561 = vld [vmem:[#allocation5 + $0x80] sm:$0xff]
    %v1562 = vld [vmem:[#allocation5 + $0x88] sm:$0xff]
    %v1563 = vld [vmem:[#allocation5 + $0x90] sm:$0xff]
    %v1564 = vld [vmem:[#allocation5 + $0x98] sm:$0xff]
    %v1565 = vld [vmem:[#allocation5 + $0xa0] sm:$0xff]
    %v1566 = vld [vmem:[#allocation5 + $0xa8] sm:$0xff]
    %v1567 = vld [vmem:[#allocation5 + $0xb0] sm:$0xff]
    %v1568 = vld [vmem:[#allocation5 + $0xb8] sm:$0xff]
    %v1569 = vld [vmem:[#allocation5 + $0xc0] sm:$0xff]
    %v1570 = vld [vmem:[#allocation5 + $0xc8] sm:$0xff]
    %v1571 = vld [vmem:[#allocation5 + $0xd0] sm:$0xff]
    %v1572 = vld [vmem:[#allocation5 + $0xd8] sm:$0xff]
    %v1573 = vld [vmem:[#allocation5 + $0xe0] sm:$0xff]
    %v1574 = vld [vmem:[#allocation5 + $0xe8] sm:$0xff]
    %v1575 = vld [vmem:[#allocation5 + $0xf0] sm:$0xff]
    %v1576 = vld [vmem:[#allocation5 + $0xf8] sm:$0xff]
    %v1609 = vunpack.c.l.b16 %v1545
    %v1610 = vunpack.c.h.b16 %v1545
    %v1611 = vunpack.c.l.b16 %v1546
    %v1612 = vunpack.c.h.b16 %v1546
    %v1613 = vunpack.c.l.b16 %v1547
    %v1614 = vunpack.c.h.b16 %v1547
    %v1615 = vunpack.c.l.b16 %v1548
    %v1616 = vunpack.c.h.b16 %v1548
    %v1617 = vunpack.c.l.b16 %v1549
    %v1618 = vunpack.c.h.b16 %v1549
    %v1619 = vunpack.c.l.b16 %v1550
    %v1620 = vunpack.c.h.b16 %v1550
    %v1621 = vunpack.c.l.b16 %v1551
    %v1622 = vunpack.c.h.b16 %v1551
    %v1623 = vunpack.c.l.b16 %v1552
    %v1624 = vunpack.c.h.b16 %v1552
    %v1625 = vunpack.c.l.b16 %v1553
    %v1626 = vunpack.c.h.b16 %v1553
    %v1627 = vunpack.c.l.b16 %v1554
    %v1628 = vunpack.c.h.b16 %v1554
    %v1629 = vunpack.c.l.b16 %v1555
    %v1630 = vunpack.c.h.b16 %v1555
    %v1631 = vunpack.c.l.b16 %v1556
    %v1632 = vunpack.c.h.b16 %v1556
    %v1633 = vunpack.c.l.b16 %v1557
    %v1634 = vunpack.c.h.b16 %v1557
    %v1635 = vunpack.c.l.b16 %v1558
    %v1636 = vunpack.c.h.b16 %v1558
    %v1637 = vunpack.c.l.b16 %v1559
    %v1638 = vunpack.c.h.b16 %v1559
    %v1639 = vunpack.c.l.b16 %v1560
    %v1640 = vunpack.c.h.b16 %v1560
    %v1641 = vunpack.c.l.b16 %v1561
    %v1642 = vunpack.c.h.b16 %v1561
    %v1643 = vunpack.c.l.b16 %v1562
    %v1644 = vunpack.c.h.b16 %v1562
    %v1645 = vunpack.c.l.b16 %v1563
    %v1646 = vunpack.c.h.b16 %v1563
    %v1647 = vunpack.c.l.b16 %v1564
    %v1648 = vunpack.c.h.b16 %v1564
    %v1649 = vunpack.c.l.b16 %v1565
    %v1650 = vunpack.c.h.b16 %v1565
    %v1651 = vunpack.c.l.b16 %v1566
    %v1652 = vunpack.c.h.b16 %v1566
    %v1653 = vunpack.c.l.b16 %v1567
    %v1654 = vunpack.c.h.b16 %v1567
    %v1655 = vunpack.c.l.b16 %v1568
    %v1656 = vunpack.c.h.b16 %v1568
    %v1657 = vunpack.c.l.b16 %v1569
    %v1658 = vunpack.c.h.b16 %v1569
    %v1659 = vunpack.c.l.b16 %v1570
    %v1660 = vunpack.c.h.b16 %v1570
    %v1661 = vunpack.c.l.b16 %v1571
    %v1662 = vunpack.c.h.b16 %v1571
    %v1663 = vunpack.c.l.b16 %v1572
    %v1664 = vunpack.c.h.b16 %v1572
    %v1665 = vunpack.c.l.b16 %v1573
    %v1666 = vunpack.c.h.b16 %v1573
    %v1667 = vunpack.c.l.b16 %v1574
    %v1668 = vunpack.c.h.b16 %v1574
    %v1669 = vunpack.c.l.b16 %v1575
    %v1670 = vunpack.c.h.b16 %v1575
    %v1671 = vunpack.c.l.b16 %v1576
    %v1672 = vunpack.c.h.b16 %v1576
    %v1673 = vpack.c.b16 %v1613, %v1609
    %v1674 = vpack.c.b16 %v1614, %v1610
    %v1675 = vpack.c.b16 %v1615, %v1611
    %v1676 = vpack.c.b16 %v1616, %v1612
    %v1677 = vpack.c.b16 %v1621, %v1617
    %v1678 = vpack.c.b16 %v1622, %v1618
    %v1679 = vpack.c.b16 %v1623, %v1619
    %v1680 = vpack.c.b16 %v1624, %v1620
    %v1681 = vpack.c.b16 %v1629, %v1625
    %v1682 = vpack.c.b16 %v1630, %v1626
    %v1683 = vpack.c.b16 %v1631, %v1627
    %v1684 = vpack.c.b16 %v1632, %v1628
    %v1685 = vpack.c.b16 %v1637, %v1633
    %v1686 = vpack.c.b16 %v1638, %v1634
    %v1687 = vpack.c.b16 %v1639, %v1635
    %v1688 = vpack.c.b16 %v1640, %v1636
    %v1689 = vpack.c.b16 %v1645, %v1641
    %v1690 = vpack.c.b16 %v1646, %v1642
    %v1691 = vpack.c.b16 %v1647, %v1643
    %v1692 = vpack.c.b16 %v1648, %v1644
    %v1693 = vpack.c.b16 %v1653, %v1649
    %v1694 = vpack.c.b16 %v1654, %v1650
    %v1695 = vpack.c.b16 %v1655, %v1651
    %v1696 = vpack.c.b16 %v1656, %v1652
    %v1697 = vpack.c.b16 %v1661, %v1657
    %v1698 = vpack.c.b16 %v1662, %v1658
    %v1699 = vpack.c.b16 %v1663, %v1659
    %v1700 = vpack.c.b16 %v1664, %v1660
    %v1701 = vpack.c.b16 %v1669, %v1665
    %v1702 = vpack.c.b16 %v1670, %v1666
    %v1703 = vpack.c.b16 %v1671, %v1667
    %v1704 = vpack.c.b16 %v1672, %v1668
    %1737 = vmatpush.bf16.msra.mxu0 %v1701
    %1738 = vmatpush.bf16.msra.mxu0 %v1697
    %1739 = vmatpush.bf16.msra.mxu0 %v1693
    %1740 = vmatpush.bf16.msra.mxu0 %v1689
    %1741 = vmatpush.bf16.msra.mxu0 %v1685
    %1742 = vmatpush.bf16.msra.mxu0 %v1681
    %1743 = vmatpush.bf16.msra.mxu0 %v1677
    %1744 = vmatpush.bf16.msra.mxu0 %v1673
    %1745 = vmatmul.bf16.gmra.mxu0 %v1537
    %v1746 = vpop.f32.mrf.mxu0
    %v1747 = vadd.f32 0.0, %v1746
    %v1748 = vpop.f32.mrf.mxu0
    %1749 = vdwg.mxu0
    %1750 = vmatpush.bf16.msra.mxu0 %v1702
    %1751 = vmatpush.bf16.msra.mxu0 %v1698
    %1752 = vmatpush.bf16.msra.mxu0 %v1694
    %1753 = vmatpush.bf16.msra.mxu0 %v1690
    %1754 = vmatpush.bf16.msra.mxu0 %v1686
    %1755 = vmatpush.bf16.msra.mxu0 %v1682
    %1756 = vmatpush.bf16.msra.mxu0 %v1678
    %1757 = vmatpush.bf16.msra.mxu0 %v1674
    %1758 = vmatmul.bf16.gmra.mxu0 %v1537
    %v1759 = vpop.f32.mrf.mxu0
    %v1760 = vadd.f32 0.0, %v1759
    %v1761 = vpop.f32.mrf.mxu0
    %1762 = vdwg.mxu0
    %1763 = vmatpush.bf16.msra.mxu0 %v1703
    %1764 = vmatpush.bf16.msra.mxu0 %v1699
    %1765 = vmatpush.bf16.msra.mxu0 %v1695
    %1766 = vmatpush.bf16.msra.mxu0 %v1691
    %1767 = vmatpush.bf16.msra.mxu0 %v1687
    %1768 = vmatpush.bf16.msra.mxu0 %v1683
    %1769 = vmatpush.bf16.msra.mxu0 %v1679
    %1770 = vmatpush.bf16.msra.mxu0 %v1675
    %1771 = vmatmul.bf16.gmra.mxu0 %v1537
    %v1772 = vpop.f32.mrf.mxu0
    %v1773 = vadd.f32 0.0, %v1772
    %v1774 = vpop.f32.mrf.mxu0
    %1775 = vdwg.mxu0
    %1776 = vmatpush.bf16.msra.mxu0 %v1704
    %1777 = vmatpush.bf16.msra.mxu0 %v1700
    %1778 = vmatpush.bf16.msra.mxu0 %v1696
    %1779 = vmatpush.bf16.msra.mxu0 %v1692
    %1780 = vmatpush.bf16.msra.mxu0 %v1688
    %1781 = vmatpush.bf16.msra.mxu0 %v1684
    %1782 = vmatpush.bf16.msra.mxu0 %v1680
    %1783 = vmatpush.bf16.msra.mxu0 %v1676
    %1784 = vmatmul.bf16.gmra.mxu0 %v1537
    %v1785 = vpop.f32.mrf.mxu0
    %v1786 = vadd.f32 0.0, %v1785
    %v1787 = vpop.f32.mrf.mxu0
    %1788 = vdwg.mxu0
    %v1789 = vadd.f32 %v1541, %v1747
    %v1790 = vadd.f32 %v1542, %v1760
    %v1791 = vadd.f32 %v1543, %v1773
    %v1792 = vadd.f32 %v1544, %v1786
    %v1793 = vxor.u32 %v1789, 2147483648
    %v1794 = vxor.u32 %v1790, 2147483648
    %v1795 = vxor.u32 %v1791, 2147483648
    %v1796 = vmul.f32 %v1793, 1.442695
    %v1797 = vpow.pop %v1796
    %v1798 = vmul.f32 %v1794, 1.442695
    %v1799 = vpow.pop %v1798
    %v1800 = vmul.f32 %v1795, 1.442695
    %v1801 = vpow.pop %v1800
    %v1802 = vadd.f32 %v1797, 1.0
    %v1803 = vadd.f32 %v1799, 1.0
    %v1804 = vadd.f32 %v1801, 1.0
    %v1805 = vrcp.pop %v1802
    %v1806 = vmul.f32 %v1802, %v1805
    %v1807 = vsub.f32 1.0, %v1806
    %v1808 = vmul.f32 %v1805, %v1807
    %v1809 = vadd.f32 %v1805, %v1808
    %vm1810 = vweird.f32 %v1802
    %vm1811 = vweird.f32 %v1805
    %vm1812 = vmor %vm1810, %vm1811
    %v1813 = vsel %vm1812, %v1805, %v1809
    %v1814 = vand.u32 2147483647, %v1802
    %vm1815 = vcmp.eq.f32.partialorder %v1814, 8.507059e+37
    %v1816 = vand.u32 %v1802, 2147483648
    %v1817 = vor.u32 1.1754944e-38, %v1816
    %v1818 = vsel %vm1815, %v1817, %v1813
    %v1819 = vmul.f32 1.0, %v1818
    %v1820 = vrcp.pop %v1803
    %v1821 = vmul.f32 %v1803, %v1820
    %v1822 = vsub.f32 1.0, %v1821
    %v1823 = vmul.f32 %v1820, %v1822
    %v1824 = vadd.f32 %v1820, %v1823
    %vm1825 = vweird.f32 %v1803
    %vm1826 = vweird.f32 %v1820
    %vm1827 = vmor %vm1825, %vm1826
    %v1828 = vsel %vm1827, %v1820, %v1824
    %v1829 = vand.u32 2147483647, %v1803
    %vm1830 = vcmp.eq.f32.partialorder %v1829, 8.507059e+37
    %v1831 = vand.u32 %v1803, 2147483648
    %v1832 = vor.u32 1.1754944e-38, %v1831
    %v1833 = vsel %vm1830, %v1832, %v1828
    %v1834 = vmul.f32 1.0, %v1833
    %v1835 = vrcp.pop %v1804
    %v1836 = vmul.f32 %v1804, %v1835
    %v1837 = vsub.f32 1.0, %v1836
    %v1838 = vmul.f32 %v1835, %v1837
    %v1839 = vadd.f32 %v1835, %v1838
    %vm1840 = vweird.f32 %v1804
    %vm1841 = vweird.f32 %v1835
    %vm1842 = vmor %vm1840, %vm1841
    %v1843 = vsel %vm1842, %v1835, %v1839
    %v1844 = vand.u32 2147483647, %v1804
    %vm1845 = vcmp.eq.f32.partialorder %v1844, 8.507059e+37
    %v1846 = vand.u32 %v1804, 2147483648
    %v1847 = vor.u32 1.1754944e-38, %v1846
    %v1848 = vsel %vm1845, %v1847, %v1843
    %v1849 = vmul.f32 1.0, %v1848
    %v1850 = vtanh.pop %v1792
    %v1851 = vmul.f32 %v1834, %v1534
    %v1852 = vmul.f32 %v1819, %v1850
    %v1853 = vadd.f32 %v1851, %v1852
    %v1854 = vtanh.pop %v1853
    %v1855 = vmul.f32 %v1849, %v1854
    %v1856 = vpack.c.bf16 %v1855, %v1855
    %s1857 = scalar_lea.vmem %s4, 16
    %1858 = vst [vmem:[%s1857] sm:$0xf] %v1856
    %s1859 = scalar_lea.vmem [#allocation4], 160
    %v1860 = vld [vmem:[%s1859] sm:$0xff]
    %v1861 = vld [vmem:[%s1859 + $0x8] sm:$0xff]
    %v1862 = vld [vmem:[%s1859 + $0x10] sm:$0xff]
    %v1863 = vld [vmem:[%s1859 + $0x18] sm:$0xff]
    %v1864 = vld [vmem:[#allocation5] sm:$0xff]
    %v1865 = vld [vmem:[#allocation5 + $0x8] sm:$0xff]
    %v1866 = vld [vmem:[#allocation5 + $0x10] sm:$0xff]
    %v1867 = vld [vmem:[#allocation5 + $0x18] sm:$0xff]
    %v1868 = vld [vmem:[#allocation5 + $0x20] sm:$0xff]
    %v1869 = vld [vmem:[#allocation5 + $0x28] sm:$0xff]
    %v1870 = vld [vmem:[#allocation5 + $0x30] sm:$0xff]
    %v1871 = vld [vmem:[#allocation5 + $0x38] sm:$0xff]
    %v1872 = vld [vmem:[#allocation5 + $0x40] sm:$0xff]
    %v1873 = vld [vmem:[#allocation5 + $0x48] sm:$0xff]
    %v1874 = vld [vmem:[#allocation5 + $0x50] sm:$0xff]
    %v1875 = vld [vmem:[#allocation5 + $0x58] sm:$0xff]
    %v1876 = vld [vmem:[#allocation5 + $0x60] sm:$0xff]
    %v1877 = vld [vmem:[#allocation5 + $0x68] sm:$0xff]
    %v1878 = vld [vmem:[#allocation5 + $0x70] sm:$0xff]
    %v1879 = vld [vmem:[#allocation5 + $0x78] sm:$0xff]
    %v1880 = vld [vmem:[#allocation5 + $0x80] sm:$0xff]
    %v1881 = vld [vmem:[#allocation5 + $0x88] sm:$0xff]
    %v1882 = vld [vmem:[#allocation5 + $0x90] sm:$0xff]
    %v1883 = vld [vmem:[#allocation5 + $0x98] sm:$0xff]
    %v1884 = vld [vmem:[#allocation5 + $0xa0] sm:$0xff]
    %v1885 = vld [vmem:[#allocation5 + $0xa8] sm:$0xff]
    %v1886 = vld [vmem:[#allocation5 + $0xb0] sm:$0xff]
    %v1887 = vld [vmem:[#allocation5 + $0xb8] sm:$0xff]
    %v1888 = vld [vmem:[#allocation5 + $0xc0] sm:$0xff]
    %v1889 = vld [vmem:[#allocation5 + $0xc8] sm:$0xff]
    %v1890 = vld [vmem:[#allocation5 + $0xd0] sm:$0xff]
    %v1891 = vld [vmem:[#allocation5 + $0xd8] sm:$0xff]
    %v1892 = vld [vmem:[#allocation5 + $0xe0] sm:$0xff]
    %v1893 = vld [vmem:[#allocation5 + $0xe8] sm:$0xff]
    %v1894 = vld [vmem:[#allocation5 + $0xf0] sm:$0xff]
    %v1895 = vld [vmem:[#allocation5 + $0xf8] sm:$0xff]
    %v1928 = vunpack.c.l.b16 %v1864
    %v1929 = vunpack.c.h.b16 %v1864
    %v1930 = vunpack.c.l.b16 %v1865
    %v1931 = vunpack.c.h.b16 %v1865
    %v1932 = vunpack.c.l.b16 %v1866
    %v1933 = vunpack.c.h.b16 %v1866
    %v1934 = vunpack.c.l.b16 %v1867
    %v1935 = vunpack.c.h.b16 %v1867
    %v1936 = vunpack.c.l.b16 %v1868
    %v1937 = vunpack.c.h.b16 %v1868
    %v1938 = vunpack.c.l.b16 %v1869
    %v1939 = vunpack.c.h.b16 %v1869
    %v1940 = vunpack.c.l.b16 %v1870
    %v1941 = vunpack.c.h.b16 %v1870
    %v1942 = vunpack.c.l.b16 %v1871
    %v1943 = vunpack.c.h.b16 %v1871
    %v1944 = vunpack.c.l.b16 %v1872
    %v1945 = vunpack.c.h.b16 %v1872
    %v1946 = vunpack.c.l.b16 %v1873
    %v1947 = vunpack.c.h.b16 %v1873
    %v1948 = vunpack.c.l.b16 %v1874
    %v1949 = vunpack.c.h.b16 %v1874
    %v1950 = vunpack.c.l.b16 %v1875
    %v1951 = vunpack.c.h.b16 %v1875
    %v1952 = vunpack.c.l.b16 %v1876
    %v1953 = vunpack.c.h.b16 %v1876
    %v1954 = vunpack.c.l.b16 %v1877
    %v1955 = vunpack.c.h.b16 %v1877
    %v1956 = vunpack.c.l.b16 %v1878
    %v1957 = vunpack.c.h.b16 %v1878
    %v1958 = vunpack.c.l.b16 %v1879
    %v1959 = vunpack.c.h.b16 %v1879
    %v1960 = vunpack.c.l.b16 %v1880
    %v1961 = vunpack.c.h.b16 %v1880
    %v1962 = vunpack.c.l.b16 %v1881
    %v1963 = vunpack.c.h.b16 %v1881
    %v1964 = vunpack.c.l.b16 %v1882
    %v1965 = vunpack.c.h.b16 %v1882
    %v1966 = vunpack.c.l.b16 %v1883
    %v1967 = vunpack.c.h.b16 %v1883
    %v1968 = vunpack.c.l.b16 %v1884
    %v1969 = vunpack.c.h.b16 %v1884
    %v1970 = vunpack.c.l.b16 %v1885
    %v1971 = vunpack.c.h.b16 %v1885
    %v1972 = vunpack.c.l.b16 %v1886
    %v1973 = vunpack.c.h.b16 %v1886
    %v1974 = vunpack.c.l.b16 %v1887
    %v1975 = vunpack.c.h.b16 %v1887
    %v1976 = vunpack.c.l.b16 %v1888
    %v1977 = vunpack.c.h.b16 %v1888
    %v1978 = vunpack.c.l.b16 %v1889
    %v1979 = vunpack.c.h.b16 %v1889
    %v1980 = vunpack.c.l.b16 %v1890
    %v1981 = vunpack.c.h.b16 %v1890
    %v1982 = vunpack.c.l.b16 %v1891
    %v1983 = vunpack.c.h.b16 %v1891
    %v1984 = vunpack.c.l.b16 %v1892
    %v1985 = vunpack.c.h.b16 %v1892
    %v1986 = vunpack.c.l.b16 %v1893
    %v1987 = vunpack.c.h.b16 %v1893
    %v1988 = vunpack.c.l.b16 %v1894
    %v1989 = vunpack.c.h.b16 %v1894
    %v1990 = vunpack.c.l.b16 %v1895
    %v1991 = vunpack.c.h.b16 %v1895
    %v1992 = vpack.c.b16 %v1932, %v1928
    %v1993 = vpack.c.b16 %v1933, %v1929
    %v1994 = vpack.c.b16 %v1934, %v1930
    %v1995 = vpack.c.b16 %v1935, %v1931
    %v1996 = vpack.c.b16 %v1940, %v1936
    %v1997 = vpack.c.b16 %v1941, %v1937
    %v1998 = vpack.c.b16 %v1942, %v1938
    %v1999 = vpack.c.b16 %v1943, %v1939
    %v2000 = vpack.c.b16 %v1948, %v1944
    %v2001 = vpack.c.b16 %v1949, %v1945
    %v2002 = vpack.c.b16 %v1950, %v1946
    %v2003 = vpack.c.b16 %v1951, %v1947
    %v2004 = vpack.c.b16 %v1956, %v1952
    %v2005 = vpack.c.b16 %v1957, %v1953
    %v2006 = vpack.c.b16 %v1958, %v1954
    %v2007 = vpack.c.b16 %v1959, %v1955
    %v2008 = vpack.c.b16 %v1964, %v1960
    %v2009 = vpack.c.b16 %v1965, %v1961
    %v2010 = vpack.c.b16 %v1966, %v1962
    %v2011 = vpack.c.b16 %v1967, %v1963
    %v2012 = vpack.c.b16 %v1972, %v1968
    %v2013 = vpack.c.b16 %v1973, %v1969
    %v2014 = vpack.c.b16 %v1974, %v1970
    %v2015 = vpack.c.b16 %v1975, %v1971
    %v2016 = vpack.c.b16 %v1980, %v1976
    %v2017 = vpack.c.b16 %v1981, %v1977
    %v2018 = vpack.c.b16 %v1982, %v1978
    %v2019 = vpack.c.b16 %v1983, %v1979
    %v2020 = vpack.c.b16 %v1988, %v1984
    %v2021 = vpack.c.b16 %v1989, %v1985
    %v2022 = vpack.c.b16 %v1990, %v1986
    %v2023 = vpack.c.b16 %v1991, %v1987
    %2056 = vmatpush.bf16.msra.mxu0 %v2020
    %2057 = vmatpush.bf16.msra.mxu0 %v2016
    %2058 = vmatpush.bf16.msra.mxu0 %v2012
    %2059 = vmatpush.bf16.msra.mxu0 %v2008
    %2060 = vmatpush.bf16.msra.mxu0 %v2004
    %2061 = vmatpush.bf16.msra.mxu0 %v2000
    %2062 = vmatpush.bf16.msra.mxu0 %v1996
    %2063 = vmatpush.bf16.msra.mxu0 %v1992
    %2064 = vmatmul.bf16.gmra.mxu0 %v1856
    %v2065 = vpop.f32.mrf.mxu0
    %v2066 = vadd.f32 0.0, %v2065
    %v2067 = vpop.f32.mrf.mxu0
    %2068 = vdwg.mxu0
    %2069 = vmatpush.bf16.msra.mxu0 %v2021
    %2070 = vmatpush.bf16.msra.mxu0 %v2017
    %2071 = vmatpush.bf16.msra.mxu0 %v2013
    %2072 = vmatpush.bf16.msra.mxu0 %v2009
    %2073 = vmatpush.bf16.msra.mxu0 %v2005
    %2074 = vmatpush.bf16.msra.mxu0 %v2001
    %2075 = vmatpush.bf16.msra.mxu0 %v1997
    %2076 = vmatpush.bf16.msra.mxu0 %v1993
    %2077 = vmatmul.bf16.gmra.mxu0 %v1856
    %v2078 = vpop.f32.mrf.mxu0
    %v2079 = vadd.f32 0.0, %v2078
    %v2080 = vpop.f32.mrf.mxu0
    %2081 = vdwg.mxu0
    %2082 = vmatpush.bf16.msra.mxu0 %v2022
    %2083 = vmatpush.bf16.msra.mxu0 %v2018
    %2084 = vmatpush.bf16.msra.mxu0 %v2014
    %2085 = vmatpush.bf16.msra.mxu0 %v2010
    %2086 = vmatpush.bf16.msra.mxu0 %v2006
    %2087 = vmatpush.bf16.msra.mxu0 %v2002
    %2088 = vmatpush.bf16.msra.mxu0 %v1998
    %2089 = vmatpush.bf16.msra.mxu0 %v1994
    %2090 = vmatmul.bf16.gmra.mxu0 %v1856
    %v2091 = vpop.f32.mrf.mxu0
    %v2092 = vadd.f32 0.0, %v2091
    %v2093 = vpop.f32.mrf.mxu0
    %2094 = vdwg.mxu0
    %2095 = vmatpush.bf16.msra.mxu0 %v2023
    %2096 = vmatpush.bf16.msra.mxu0 %v2019
    %2097 = vmatpush.bf16.msra.mxu0 %v2015
    %2098 = vmatpush.bf16.msra.mxu0 %v2011
    %2099 = vmatpush.bf16.msra.mxu0 %v2007
    %2100 = vmatpush.bf16.msra.mxu0 %v2003
    %2101 = vmatpush.bf16.msra.mxu0 %v1999
    %2102 = vmatpush.bf16.msra.mxu0 %v1995
    %2103 = vmatmul.bf16.gmra.mxu0 %v1856
    %v2104 = vpop.f32.mrf.mxu0
    %v2105 = vadd.f32 0.0, %v2104
    %v2106 = vpop.f32.mrf.mxu0
    %2107 = vdwg.mxu0
    %v2108 = vadd.f32 %v1860, %v2066
    %v2109 = vadd.f32 %v1861, %v2079
    %v2110 = vadd.f32 %v1862, %v2092
    %v2111 = vadd.f32 %v1863, %v2105
    %v2112 = vxor.u32 %v2108, 2147483648
    %v2113 = vxor.u32 %v2109, 2147483648
    %v2114 = vxor.u32 %v2110, 2147483648
    %v2115 = vmul.f32 %v2112, 1.442695
    %v2116 = vpow.pop %v2115
    %v2117 = vmul.f32 %v2113, 1.442695
    %v2118 = vpow.pop %v2117
    %v2119 = vmul.f32 %v2114, 1.442695
    %v2120 = vpow.pop %v2119
    %v2121 = vadd.f32 %v2116, 1.0
    %v2122 = vadd.f32 %v2118, 1.0
    %v2123 = vadd.f32 %v2120, 1.0
    %v2124 = vrcp.pop %v2121
    %v2125 = vmul.f32 %v2121, %v2124
    %v2126 = vsub.f32 1.0, %v2125
    %v2127 = vmul.f32 %v2124, %v2126
    %v2128 = vadd.f32 %v2124, %v2127
    %vm2129 = vweird.f32 %v2121
    %vm2130 = vweird.f32 %v2124
    %vm2131 = vmor %vm2129, %vm2130
    %v2132 = vsel %vm2131, %v2124, %v2128
    %v2133 = vand.u32 2147483647, %v2121
    %vm2134 = vcmp.eq.f32.partialorder %v2133, 8.507059e+37
    %v2135 = vand.u32 %v2121, 2147483648
    %v2136 = vor.u32 1.1754944e-38, %v2135
    %v2137 = vsel %vm2134, %v2136, %v2132
    %v2138 = vmul.f32 1.0, %v2137
    %v2139 = vrcp.pop %v2122
    %v2140 = vmul.f32 %v2122, %v2139
    %v2141 = vsub.f32 1.0, %v2140
    %v2142 = vmul.f32 %v2139, %v2141
    %v2143 = vadd.f32 %v2139, %v2142
    %vm2144 = vweird.f32 %v2122
    %vm2145 = vweird.f32 %v2139
    %vm2146 = vmor %vm2144, %vm2145
    %v2147 = vsel %vm2146, %v2139, %v2143
    %v2148 = vand.u32 2147483647, %v2122
    %vm2149 = vcmp.eq.f32.partialorder %v2148, 8.507059e+37
    %v2150 = vand.u32 %v2122, 2147483648
    %v2151 = vor.u32 1.1754944e-38, %v2150
    %v2152 = vsel %vm2149, %v2151, %v2147
    %v2153 = vmul.f32 1.0, %v2152
    %v2154 = vrcp.pop %v2123
    %v2155 = vmul.f32 %v2123, %v2154
    %v2156 = vsub.f32 1.0, %v2155
    %v2157 = vmul.f32 %v2154, %v2156
    %v2158 = vadd.f32 %v2154, %v2157
    %vm2159 = vweird.f32 %v2123
    %vm2160 = vweird.f32 %v2154
    %vm2161 = vmor %vm2159, %vm2160
    %v2162 = vsel %vm2161, %v2154, %v2158
    %v2163 = vand.u32 2147483647, %v2123
    %vm2164 = vcmp.eq.f32.partialorder %v2163, 8.507059e+37
    %v2165 = vand.u32 %v2123, 2147483648
    %v2166 = vor.u32 1.1754944e-38, %v2165
    %v2167 = vsel %vm2164, %v2166, %v2162
    %v2168 = vmul.f32 1.0, %v2167
    %v2169 = vtanh.pop %v2111
    %v2170 = vmul.f32 %v2153, %v1853
    %v2171 = vmul.f32 %v2138, %v2169
    %v2172 = vadd.f32 %v2170, %v2171
    %v2173 = vtanh.pop %v2172
    %v2174 = vmul.f32 %v2168, %v2173
    %v2175 = vpack.c.bf16 %v2174, %v2174
    %s2176 = scalar_lea.vmem %s4, 20
    %2177 = vst [vmem:[%s2176] sm:$0xf] %v2175
    %s2178 = scalar_lea.vmem [#allocation4], 192
    %v2179 = vld [vmem:[%s2178] sm:$0xff]
    %v2180 = vld [vmem:[%s2178 + $0x8] sm:$0xff]
    %v2181 = vld [vmem:[%s2178 + $0x10] sm:$0xff]
    %v2182 = vld [vmem:[%s2178 + $0x18] sm:$0xff]
    %v2183 = vld [vmem:[#allocation5] sm:$0xff]
    %v2184 = vld [vmem:[#allocation5 + $0x8] sm:$0xff]
    %v2185 = vld [vmem:[#allocation5 + $0x10] sm:$0xff]
    %v2186 = vld [vmem:[#allocation5 + $0x18] sm:$0xff]
    %v2187 = vld [vmem:[#allocation5 + $0x20] sm:$0xff]
    %v2188 = vld [vmem:[#allocation5 + $0x28] sm:$0xff]
    %v2189 = vld [vmem:[#allocation5 + $0x30] sm:$0xff]
    %v2190 = vld [vmem:[#allocation5 + $0x38] sm:$0xff]
    %v2191 = vld [vmem:[#allocation5 + $0x40] sm:$0xff]
    %v2192 = vld [vmem:[#allocation5 + $0x48] sm:$0xff]
    %v2193 = vld [vmem:[#allocation5 + $0x50] sm:$0xff]
    %v2194 = vld [vmem:[#allocation5 + $0x58] sm:$0xff]
    %v2195 = vld [vmem:[#allocation5 + $0x60] sm:$0xff]
    %v2196 = vld [vmem:[#allocation5 + $0x68] sm:$0xff]
    %v2197 = vld [vmem:[#allocation5 + $0x70] sm:$0xff]
    %v2198 = vld [vmem:[#allocation5 + $0x78] sm:$0xff]
    %v2199 = vld [vmem:[#allocation5 + $0x80] sm:$0xff]
    %v2200 = vld [vmem:[#allocation5 + $0x88] sm:$0xff]
    %v2201 = vld [vmem:[#allocation5 + $0x90] sm:$0xff]
    %v2202 = vld [vmem:[#allocation5 + $0x98] sm:$0xff]
    %v2203 = vld [vmem:[#allocation5 + $0xa0] sm:$0xff]
    %v2204 = vld [vmem:[#allocation5 + $0xa8] sm:$0xff]
    %v2205 = vld [vmem:[#allocation5 + $0xb0] sm:$0xff]
    %v2206 = vld [vmem:[#allocation5 + $0xb8] sm:$0xff]
    %v2207 = vld [vmem:[#allocation5 + $0xc0] sm:$0xff]
    %v2208 = vld [vmem:[#allocation5 + $0xc8] sm:$0xff]
    %v2209 = vld [vmem:[#allocation5 + $0xd0] sm:$0xff]
    %v2210 = vld [vmem:[#allocation5 + $0xd8] sm:$0xff]
    %v2211 = vld [vmem:[#allocation5 + $0xe0] sm:$0xff]
    %v2212 = vld [vmem:[#allocation5 + $0xe8] sm:$0xff]
    %v2213 = vld [vmem:[#allocation5 + $0xf0] sm:$0xff]
    %v2214 = vld [vmem:[#allocation5 + $0xf8] sm:$0xff]
    %v2247 = vunpack.c.l.b16 %v2183
    %v2248 = vunpack.c.h.b16 %v2183
    %v2249 = vunpack.c.l.b16 %v2184
    %v2250 = vunpack.c.h.b16 %v2184
    %v2251 = vunpack.c.l.b16 %v2185
    %v2252 = vunpack.c.h.b16 %v2185
    %v2253 = vunpack.c.l.b16 %v2186
    %v2254 = vunpack.c.h.b16 %v2186
    %v2255 = vunpack.c.l.b16 %v2187
    %v2256 = vunpack.c.h.b16 %v2187
    %v2257 = vunpack.c.l.b16 %v2188
    %v2258 = vunpack.c.h.b16 %v2188
    %v2259 = vunpack.c.l.b16 %v2189
    %v2260 = vunpack.c.h.b16 %v2189
    %v2261 = vunpack.c.l.b16 %v2190
    %v2262 = vunpack.c.h.b16 %v2190
    %v2263 = vunpack.c.l.b16 %v2191
    %v2264 = vunpack.c.h.b16 %v2191
    %v2265 = vunpack.c.l.b16 %v2192
    %v2266 = vunpack.c.h.b16 %v2192
    %v2267 = vunpack.c.l.b16 %v2193
    %v2268 = vunpack.c.h.b16 %v2193
    %v2269 = vunpack.c.l.b16 %v2194
    %v2270 = vunpack.c.h.b16 %v2194
    %v2271 = vunpack.c.l.b16 %v2195
    %v2272 = vunpack.c.h.b16 %v2195
    %v2273 = vunpack.c.l.b16 %v2196
    %v2274 = vunpack.c.h.b16 %v2196
    %v2275 = vunpack.c.l.b16 %v2197
    %v2276 = vunpack.c.h.b16 %v2197
    %v2277 = vunpack.c.l.b16 %v2198
    %v2278 = vunpack.c.h.b16 %v2198
    %v2279 = vunpack.c.l.b16 %v2199
    %v2280 = vunpack.c.h.b16 %v2199
    %v2281 = vunpack.c.l.b16 %v2200
    %v2282 = vunpack.c.h.b16 %v2200
    %v2283 = vunpack.c.l.b16 %v2201
    %v2284 = vunpack.c.h.b16 %v2201
    %v2285 = vunpack.c.l.b16 %v2202
    %v2286 = vunpack.c.h.b16 %v2202
    %v2287 = vunpack.c.l.b16 %v2203
    %v2288 = vunpack.c.h.b16 %v2203
    %v2289 = vunpack.c.l.b16 %v2204
    %v2290 = vunpack.c.h.b16 %v2204
    %v2291 = vunpack.c.l.b16 %v2205
    %v2292 = vunpack.c.h.b16 %v2205
    %v2293 = vunpack.c.l.b16 %v2206
    %v2294 = vunpack.c.h.b16 %v2206
    %v2295 = vunpack.c.l.b16 %v2207
    %v2296 = vunpack.c.h.b16 %v2207
    %v2297 = vunpack.c.l.b16 %v2208
    %v2298 = vunpack.c.h.b16 %v2208
    %v2299 = vunpack.c.l.b16 %v2209
    %v2300 = vunpack.c.h.b16 %v2209
    %v2301 = vunpack.c.l.b16 %v2210
    %v2302 = vunpack.c.h.b16 %v2210
    %v2303 = vunpack.c.l.b16 %v2211
    %v2304 = vunpack.c.h.b16 %v2211
    %v2305 = vunpack.c.l.b16 %v2212
    %v2306 = vunpack.c.h.b16 %v2212
    %v2307 = vunpack.c.l.b16 %v2213
    %v2308 = vunpack.c.h.b16 %v2213
    %v2309 = vunpack.c.l.b16 %v2214
    %v2310 = vunpack.c.h.b16 %v2214
    %v2311 = vpack.c.b16 %v2251, %v2247
    %v2312 = vpack.c.b16 %v2252, %v2248
    %v2313 = vpack.c.b16 %v2253, %v2249
    %v2314 = vpack.c.b16 %v2254, %v2250
    %v2315 = vpack.c.b16 %v2259, %v2255
    %v2316 = vpack.c.b16 %v2260, %v2256
    %v2317 = vpack.c.b16 %v2261, %v2257
    %v2318 = vpack.c.b16 %v2262, %v2258
    %v2319 = vpack.c.b16 %v2267, %v2263
    %v2320 = vpack.c.b16 %v2268, %v2264
    %v2321 = vpack.c.b16 %v2269, %v2265
    %v2322 = vpack.c.b16 %v2270, %v2266
    %v2323 = vpack.c.b16 %v2275, %v2271
    %v2324 = vpack.c.b16 %v2276, %v2272
    %v2325 = vpack.c.b16 %v2277, %v2273
    %v2326 = vpack.c.b16 %v2278, %v2274
    %v2327 = vpack.c.b16 %v2283, %v2279
    %v2328 = vpack.c.b16 %v2284, %v2280
    %v2329 = vpack.c.b16 %v2285, %v2281
    %v2330 = vpack.c.b16 %v2286, %v2282
    %v2331 = vpack.c.b16 %v2291, %v2287
    %v2332 = vpack.c.b16 %v2292, %v2288
    %v2333 = vpack.c.b16 %v2293, %v2289
    %v2334 = vpack.c.b16 %v2294, %v2290
    %v2335 = vpack.c.b16 %v2299, %v2295
    %v2336 = vpack.c.b16 %v2300, %v2296
    %v2337 = vpack.c.b16 %v2301, %v2297
    %v2338 = vpack.c.b16 %v2302, %v2298
    %v2339 = vpack.c.b16 %v2307, %v2303
    %v2340 = vpack.c.b16 %v2308, %v2304
    %v2341 = vpack.c.b16 %v2309, %v2305
    %v2342 = vpack.c.b16 %v2310, %v2306
    %2375 = vmatpush.bf16.msra.mxu0 %v2339
    %2376 = vmatpush.bf16.msra.mxu0 %v2335
    %2377 = vmatpush.bf16.msra.mxu0 %v2331
    %2378 = vmatpush.bf16.msra.mxu0 %v2327
    %2379 = vmatpush.bf16.msra.mxu0 %v2323
    %2380 = vmatpush.bf16.msra.mxu0 %v2319
    %2381 = vmatpush.bf16.msra.mxu0 %v2315
    %2382 = vmatpush.bf16.msra.mxu0 %v2311
    %2383 = vmatmul.bf16.gmra.mxu0 %v2175
    %v2384 = vpop.f32.mrf.mxu0
    %v2385 = vadd.f32 0.0, %v2384
    %v2386 = vpop.f32.mrf.mxu0
    %2387 = vdwg.mxu0
    %2388 = vmatpush.bf16.msra.mxu0 %v2340
    %2389 = vmatpush.bf16.msra.mxu0 %v2336
    %2390 = vmatpush.bf16.msra.mxu0 %v2332
    %2391 = vmatpush.bf16.msra.mxu0 %v2328
    %2392 = vmatpush.bf16.msra.mxu0 %v2324
    %2393 = vmatpush.bf16.msra.mxu0 %v2320
    %2394 = vmatpush.bf16.msra.mxu0 %v2316
    %2395 = vmatpush.bf16.msra.mxu0 %v2312
    %2396 = vmatmul.bf16.gmra.mxu0 %v2175
    %v2397 = vpop.f32.mrf.mxu0
    %v2398 = vadd.f32 0.0, %v2397
    %v2399 = vpop.f32.mrf.mxu0
    %2400 = vdwg.mxu0
    %2401 = vmatpush.bf16.msra.mxu0 %v2341
    %2402 = vmatpush.bf16.msra.mxu0 %v2337
    %2403 = vmatpush.bf16.msra.mxu0 %v2333
    %2404 = vmatpush.bf16.msra.mxu0 %v2329
    %2405 = vmatpush.bf16.msra.mxu0 %v2325
    %2406 = vmatpush.bf16.msra.mxu0 %v2321
    %2407 = vmatpush.bf16.msra.mxu0 %v2317
    %2408 = vmatpush.bf16.msra.mxu0 %v2313
    %2409 = vmatmul.bf16.gmra.mxu0 %v2175
    %v2410 = vpop.f32.mrf.mxu0
    %v2411 = vadd.f32 0.0, %v2410
    %v2412 = vpop.f32.mrf.mxu0
    %2413 = vdwg.mxu0
    %2414 = vmatpush.bf16.msra.mxu0 %v2342
    %2415 = vmatpush.bf16.msra.mxu0 %v2338
    %2416 = vmatpush.bf16.msra.mxu0 %v2334
    %2417 = vmatpush.bf16.msra.mxu0 %v2330
    %2418 = vmatpush.bf16.msra.mxu0 %v2326
    %2419 = vmatpush.bf16.msra.mxu0 %v2322
    %2420 = vmatpush.bf16.msra.mxu0 %v2318
    %2421 = vmatpush.bf16.msra.mxu0 %v2314
    %2422 = vmatmul.bf16.gmra.mxu0 %v2175
    %v2423 = vpop.f32.mrf.mxu0
    %v2424 = vadd.f32 0.0, %v2423
    %v2425 = vpop.f32.mrf.mxu0
    %2426 = vdwg.mxu0
    %v2427 = vadd.f32 %v2179, %v2385
    %v2428 = vadd.f32 %v2180, %v2398
    %v2429 = vadd.f32 %v2181, %v2411
    %v2430 = vadd.f32 %v2182, %v2424
    %v2431 = vxor.u32 %v2427, 2147483648
    %v2432 = vxor.u32 %v2428, 2147483648
    %v2433 = vxor.u32 %v2429, 2147483648
    %v2434 = vmul.f32 %v2431, 1.442695
    %v2435 = vpow.pop %v2434
    %v2436 = vmul.f32 %v2432, 1.442695
    %v2437 = vpow.pop %v2436
    %v2438 = vmul.f32 %v2433, 1.442695
    %v2439 = vpow.pop %v2438
    %v2440 = vadd.f32 %v2435, 1.0
    %v2441 = vadd.f32 %v2437, 1.0
    %v2442 = vadd.f32 %v2439, 1.0
    %v2443 = vrcp.pop %v2440
    %v2444 = vmul.f32 %v2440, %v2443
    %v2445 = vsub.f32 1.0, %v2444
    %v2446 = vmul.f32 %v2443, %v2445
    %v2447 = vadd.f32 %v2443, %v2446
    %vm2448 = vweird.f32 %v2440
    %vm2449 = vweird.f32 %v2443
    %vm2450 = vmor %vm2448, %vm2449
    %v2451 = vsel %vm2450, %v2443, %v2447
    %v2452 = vand.u32 2147483647, %v2440
    %vm2453 = vcmp.eq.f32.partialorder %v2452, 8.507059e+37
    %v2454 = vand.u32 %v2440, 2147483648
    %v2455 = vor.u32 1.1754944e-38, %v2454
    %v2456 = vsel %vm2453, %v2455, %v2451
    %v2457 = vmul.f32 1.0, %v2456
    %v2458 = vrcp.pop %v2441
    %v2459 = vmul.f32 %v2441, %v2458
    %v2460 = vsub.f32 1.0, %v2459
    %v2461 = vmul.f32 %v2458, %v2460
    %v2462 = vadd.f32 %v2458, %v2461
    %vm2463 = vweird.f32 %v2441
    %vm2464 = vweird.f32 %v2458
    %vm2465 = vmor %vm2463, %vm2464
    %v2466 = vsel %vm2465, %v2458, %v2462
    %v2467 = vand.u32 2147483647, %v2441
    %vm2468 = vcmp.eq.f32.partialorder %v2467, 8.507059e+37
    %v2469 = vand.u32 %v2441, 2147483648
    %v2470 = vor.u32 1.1754944e-38, %v2469
    %v2471 = vsel %vm2468, %v2470, %v2466
    %v2472 = vmul.f32 1.0, %v2471
    %v2473 = vrcp.pop %v2442
    %v2474 = vmul.f32 %v2442, %v2473
    %v2475 = vsub.f32 1.0, %v2474
    %v2476 = vmul.f32 %v2473, %v2475
    %v2477 = vadd.f32 %v2473, %v2476
    %vm2478 = vweird.f32 %v2442
    %vm2479 = vweird.f32 %v2473
    %vm2480 = vmor %vm2478, %vm2479
    %v2481 = vsel %vm2480, %v2473, %v2477
    %v2482 = vand.u32 2147483647, %v2442
    %vm2483 = vcmp.eq.f32.partialorder %v2482, 8.507059e+37
    %v2484 = vand.u32 %v2442, 2147483648
    %v2485 = vor.u32 1.1754944e-38, %v2484
    %v2486 = vsel %vm2483, %v2485, %v2481
    %v2487 = vmul.f32 1.0, %v2486
    %v2488 = vtanh.pop %v2430
    %v2489 = vmul.f32 %v2472, %v2172
    %v2490 = vmul.f32 %v2457, %v2488
    %v2491 = vadd.f32 %v2489, %v2490
    %v2492 = vtanh.pop %v2491
    %v2493 = vmul.f32 %v2487, %v2492
    %v2494 = vpack.c.bf16 %v2493, %v2493
    %s2495 = scalar_lea.vmem %s4, 24
    %2496 = vst [vmem:[%s2495] sm:$0xf] %v2494
    %s2497 = scalar_lea.vmem [#allocation4], 224
    %v2498 = vld [vmem:[%s2497] sm:$0xff]
    %v2499 = vld [vmem:[%s2497 + $0x8] sm:$0xff]
    %v2500 = vld [vmem:[%s2497 + $0x10] sm:$0xff]
    %v2501 = vld [vmem:[%s2497 + $0x18] sm:$0xff]
    %v2502 = vld [vmem:[#allocation5] sm:$0xff]
    %v2503 = vld [vmem:[#allocation5 + $0x8] sm:$0xff]
    %v2504 = vld [vmem:[#allocation5 + $0x10] sm:$0xff]
    %v2505 = vld [vmem:[#allocation5 + $0x18] sm:$0xff]
    %v2506 = vld [vmem:[#allocation5 + $0x20] sm:$0xff]
    %v2507 = vld [vmem:[#allocation5 + $0x28] sm:$0xff]
    %v2508 = vld [vmem:[#allocation5 + $0x30] sm:$0xff]
    %v2509 = vld [vmem:[#allocation5 + $0x38] sm:$0xff]
    %v2510 = vld [vmem:[#allocation5 + $0x40] sm:$0xff]
    %v2511 = vld [vmem:[#allocation5 + $0x48] sm:$0xff]
    %v2512 = vld [vmem:[#allocation5 + $0x50] sm:$0xff]
    %v2513 = vld [vmem:[#allocation5 + $0x58] sm:$0xff]
    %v2514 = vld [vmem:[#allocation5 + $0x60] sm:$0xff]
    %v2515 = vld [vmem:[#allocation5 + $0x68] sm:$0xff]
    %v2516 = vld [vmem:[#allocation5 + $0x70] sm:$0xff]
    %v2517 = vld [vmem:[#allocation5 + $0x78] sm:$0xff]
    %v2518 = vld [vmem:[#allocation5 + $0x80] sm:$0xff]
    %v2519 = vld [vmem:[#allocation5 + $0x88] sm:$0xff]
    %v2520 = vld [vmem:[#allocation5 + $0x90] sm:$0xff]
    %v2521 = vld [vmem:[#allocation5 + $0x98] sm:$0xff]
    %v2522 = vld [vmem:[#allocation5 + $0xa0] sm:$0xff]
    %v2523 = vld [vmem:[#allocation5 + $0xa8] sm:$0xff]
    %v2524 = vld [vmem:[#allocation5 + $0xb0] sm:$0xff]
    %v2525 = vld [vmem:[#allocation5 + $0xb8] sm:$0xff]
    %v2526 = vld [vmem:[#allocation5 + $0xc0] sm:$0xff]
    %v2527 = vld [vmem:[#allocation5 + $0xc8] sm:$0xff]
    %v2528 = vld [vmem:[#allocation5 + $0xd0] sm:$0xff]
    %v2529 = vld [vmem:[#allocation5 + $0xd8] sm:$0xff]
    %v2530 = vld [vmem:[#allocation5 + $0xe0] sm:$0xff]
    %v2531 = vld [vmem:[#allocation5 + $0xe8] sm:$0xff]
    %v2532 = vld [vmem:[#allocation5 + $0xf0] sm:$0xff]
    %v2533 = vld [vmem:[#allocation5 + $0xf8] sm:$0xff]
    %v2566 = vunpack.c.l.b16 %v2502
    %v2567 = vunpack.c.h.b16 %v2502
    %v2568 = vunpack.c.l.b16 %v2503
    %v2569 = vunpack.c.h.b16 %v2503
    %v2570 = vunpack.c.l.b16 %v2504
    %v2571 = vunpack.c.h.b16 %v2504
    %v2572 = vunpack.c.l.b16 %v2505
    %v2573 = vunpack.c.h.b16 %v2505
    %v2574 = vunpack.c.l.b16 %v2506
    %v2575 = vunpack.c.h.b16 %v2506
    %v2576 = vunpack.c.l.b16 %v2507
    %v2577 = vunpack.c.h.b16 %v2507
    %v2578 = vunpack.c.l.b16 %v2508
    %v2579 = vunpack.c.h.b16 %v2508
    %v2580 = vunpack.c.l.b16 %v2509
    %v2581 = vunpack.c.h.b16 %v2509
    %v2582 = vunpack.c.l.b16 %v2510
    %v2583 = vunpack.c.h.b16 %v2510
    %v2584 = vunpack.c.l.b16 %v2511
    %v2585 = vunpack.c.h.b16 %v2511
    %v2586 = vunpack.c.l.b16 %v2512
    %v2587 = vunpack.c.h.b16 %v2512
    %v2588 = vunpack.c.l.b16 %v2513
    %v2589 = vunpack.c.h.b16 %v2513
    %v2590 = vunpack.c.l.b16 %v2514
    %v2591 = vunpack.c.h.b16 %v2514
    %v2592 = vunpack.c.l.b16 %v2515
    %v2593 = vunpack.c.h.b16 %v2515
    %v2594 = vunpack.c.l.b16 %v2516
    %v2595 = vunpack.c.h.b16 %v2516
    %v2596 = vunpack.c.l.b16 %v2517
    %v2597 = vunpack.c.h.b16 %v2517
    %v2598 = vunpack.c.l.b16 %v2518
    %v2599 = vunpack.c.h.b16 %v2518
    %v2600 = vunpack.c.l.b16 %v2519
    %v2601 = vunpack.c.h.b16 %v2519
    %v2602 = vunpack.c.l.b16 %v2520
    %v2603 = vunpack.c.h.b16 %v2520
    %v2604 = vunpack.c.l.b16 %v2521
    %v2605 = vunpack.c.h.b16 %v2521
    %v2606 = vunpack.c.l.b16 %v2522
    %v2607 = vunpack.c.h.b16 %v2522
    %v2608 = vunpack.c.l.b16 %v2523
    %v2609 = vunpack.c.h.b16 %v2523
    %v2610 = vunpack.c.l.b16 %v2524
    %v2611 = vunpack.c.h.b16 %v2524
    %v2612 = vunpack.c.l.b16 %v2525
    %v2613 = vunpack.c.h.b16 %v2525
    %v2614 = vunpack.c.l.b16 %v2526
    %v2615 = vunpack.c.h.b16 %v2526
    %v2616 = vunpack.c.l.b16 %v2527
    %v2617 = vunpack.c.h.b16 %v2527
    %v2618 = vunpack.c.l.b16 %v2528
    %v2619 = vunpack.c.h.b16 %v2528
    %v2620 = vunpack.c.l.b16 %v2529
    %v2621 = vunpack.c.h.b16 %v2529
    %v2622 = vunpack.c.l.b16 %v2530
    %v2623 = vunpack.c.h.b16 %v2530
    %v2624 = vunpack.c.l.b16 %v2531
    %v2625 = vunpack.c.h.b16 %v2531
    %v2626 = vunpack.c.l.b16 %v2532
    %v2627 = vunpack.c.h.b16 %v2532
    %v2628 = vunpack.c.l.b16 %v2533
    %v2629 = vunpack.c.h.b16 %v2533
    %v2630 = vpack.c.b16 %v2570, %v2566
    %v2631 = vpack.c.b16 %v2571, %v2567
    %v2632 = vpack.c.b16 %v2572, %v2568
    %v2633 = vpack.c.b16 %v2573, %v2569
    %v2634 = vpack.c.b16 %v2578, %v2574
    %v2635 = vpack.c.b16 %v2579, %v2575
    %v2636 = vpack.c.b16 %v2580, %v2576
    %v2637 = vpack.c.b16 %v2581, %v2577
    %v2638 = vpack.c.b16 %v2586, %v2582
    %v2639 = vpack.c.b16 %v2587, %v2583
    %v2640 = vpack.c.b16 %v2588, %v2584
    %v2641 = vpack.c.b16 %v2589, %v2585
    %v2642 = vpack.c.b16 %v2594, %v2590
    %v2643 = vpack.c.b16 %v2595, %v2591
    %v2644 = vpack.c.b16 %v2596, %v2592
    %v2645 = vpack.c.b16 %v2597, %v2593
    %v2646 = vpack.c.b16 %v2602, %v2598
    %v2647 = vpack.c.b16 %v2603, %v2599
    %v2648 = vpack.c.b16 %v2604, %v2600
    %v2649 = vpack.c.b16 %v2605, %v2601
    %v2650 = vpack.c.b16 %v2610, %v2606
    %v2651 = vpack.c.b16 %v2611, %v2607
    %v2652 = vpack.c.b16 %v2612, %v2608
    %v2653 = vpack.c.b16 %v2613, %v2609
    %v2654 = vpack.c.b16 %v2618, %v2614
    %v2655 = vpack.c.b16 %v2619, %v2615
    %v2656 = vpack.c.b16 %v2620, %v2616
    %v2657 = vpack.c.b16 %v2621, %v2617
    %v2658 = vpack.c.b16 %v2626, %v2622
    %v2659 = vpack.c.b16 %v2627, %v2623
    %v2660 = vpack.c.b16 %v2628, %v2624
    %v2661 = vpack.c.b16 %v2629, %v2625
    %2694 = vmatpush.bf16.msra.mxu0 %v2658
    %2695 = vmatpush.bf16.msra.mxu0 %v2654
    %2696 = vmatpush.bf16.msra.mxu0 %v2650
    %2697 = vmatpush.bf16.msra.mxu0 %v2646
    %2698 = vmatpush.bf16.msra.mxu0 %v2642
    %2699 = vmatpush.bf16.msra.mxu0 %v2638
    %2700 = vmatpush.bf16.msra.mxu0 %v2634
    %2701 = vmatpush.bf16.msra.mxu0 %v2630
    %2702 = vmatmul.bf16.gmra.mxu0 %v2494
    %v2703 = vpop.f32.mrf.mxu0
    %v2704 = vadd.f32 0.0, %v2703
    %v2705 = vpop.f32.mrf.mxu0
    %2706 = vdwg.mxu0
    %2707 = vmatpush.bf16.msra.mxu0 %v2659
    %2708 = vmatpush.bf16.msra.mxu0 %v2655
    %2709 = vmatpush.bf16.msra.mxu0 %v2651
    %2710 = vmatpush.bf16.msra.mxu0 %v2647
    %2711 = vmatpush.bf16.msra.mxu0 %v2643
    %2712 = vmatpush.bf16.msra.mxu0 %v2639
    %2713 = vmatpush.bf16.msra.mxu0 %v2635
    %2714 = vmatpush.bf16.msra.mxu0 %v2631
    %2715 = vmatmul.bf16.gmra.mxu0 %v2494
    %v2716 = vpop.f32.mrf.mxu0
    %v2717 = vadd.f32 0.0, %v2716
    %v2718 = vpop.f32.mrf.mxu0
    %2719 = vdwg.mxu0
    %2720 = vmatpush.bf16.msra.mxu0 %v2660
    %2721 = vmatpush.bf16.msra.mxu0 %v2656
    %2722 = vmatpush.bf16.msra.mxu0 %v2652
    %2723 = vmatpush.bf16.msra.mxu0 %v2648
    %2724 = vmatpush.bf16.msra.mxu0 %v2644
    %2725 = vmatpush.bf16.msra.mxu0 %v2640
    %2726 = vmatpush.bf16.msra.mxu0 %v2636
    %2727 = vmatpush.bf16.msra.mxu0 %v2632
    %2728 = vmatmul.bf16.gmra.mxu0 %v2494
    %v2729 = vpop.f32.mrf.mxu0
    %v2730 = vadd.f32 0.0, %v2729
    %v2731 = vpop.f32.mrf.mxu0
    %2732 = vdwg.mxu0
    %2733 = vmatpush.bf16.msra.mxu0 %v2661
    %2734 = vmatpush.bf16.msra.mxu0 %v2657
    %2735 = vmatpush.bf16.msra.mxu0 %v2653
    %2736 = vmatpush.bf16.msra.mxu0 %v2649
    %2737 = vmatpush.bf16.msra.mxu0 %v2645
    %2738 = vmatpush.bf16.msra.mxu0 %v2641
    %2739 = vmatpush.bf16.msra.mxu0 %v2637
    %2740 = vmatpush.bf16.msra.mxu0 %v2633
    %2741 = vmatmul.bf16.gmra.mxu0 %v2494
    %v2742 = vpop.f32.mrf.mxu0
    %v2743 = vadd.f32 0.0, %v2742
    %v2744 = vpop.f32.mrf.mxu0
    %2745 = vdwg.mxu0
    %v2746 = vadd.f32 %v2498, %v2704
    %v2747 = vadd.f32 %v2499, %v2717
    %v2748 = vadd.f32 %v2500, %v2730
    %v2749 = vadd.f32 %v2501, %v2743
    %v2750 = vxor.u32 %v2746, 2147483648
    %v2751 = vxor.u32 %v2747, 2147483648
    %v2752 = vxor.u32 %v2748, 2147483648
    %v2753 = vmul.f32 %v2750, 1.442695
    %v2754 = vpow.pop %v2753
    %v2755 = vmul.f32 %v2751, 1.442695
    %v2756 = vpow.pop %v2755
    %v2757 = vmul.f32 %v2752, 1.442695
    %v2758 = vpow.pop %v2757
    %v2759 = vadd.f32 %v2754, 1.0
    %v2760 = vadd.f32 %v2756, 1.0
    %v2761 = vadd.f32 %v2758, 1.0
    %v2762 = vrcp.pop %v2759
    %v2763 = vmul.f32 %v2759, %v2762
    %v2764 = vsub.f32 1.0, %v2763
    %v2765 = vmul.f32 %v2762, %v2764
    %v2766 = vadd.f32 %v2762, %v2765
    %vm2767 = vweird.f32 %v2759
    %vm2768 = vweird.f32 %v2762
    %vm2769 = vmor %vm2767, %vm2768
    %v2770 = vsel %vm2769, %v2762, %v2766
    %v2771 = vand.u32 2147483647, %v2759
    %vm2772 = vcmp.eq.f32.partialorder %v2771, 8.507059e+37
    %v2773 = vand.u32 %v2759, 2147483648
    %v2774 = vor.u32 1.1754944e-38, %v2773
    %v2775 = vsel %vm2772, %v2774, %v2770
    %v2776 = vmul.f32 1.0, %v2775
    %v2777 = vrcp.pop %v2760
    %v2778 = vmul.f32 %v2760, %v2777
    %v2779 = vsub.f32 1.0, %v2778
    %v2780 = vmul.f32 %v2777, %v2779
    %v2781 = vadd.f32 %v2777, %v2780
    %vm2782 = vweird.f32 %v2760
    %vm2783 = vweird.f32 %v2777
    %vm2784 = vmor %vm2782, %vm2783
    %v2785 = vsel %vm2784, %v2777, %v2781
    %v2786 = vand.u32 2147483647, %v2760
    %vm2787 = vcmp.eq.f32.partialorder %v2786, 8.507059e+37
    %v2788 = vand.u32 %v2760, 2147483648
    %v2789 = vor.u32 1.1754944e-38, %v2788
    %v2790 = vsel %vm2787, %v2789, %v2785
    %v2791 = vmul.f32 1.0, %v2790
    %v2792 = vrcp.pop %v2761
    %v2793 = vmul.f32 %v2761, %v2792
    %v2794 = vsub.f32 1.0, %v2793
    %v2795 = vmul.f32 %v2792, %v2794
    %v2796 = vadd.f32 %v2792, %v2795
    %vm2797 = vweird.f32 %v2761
    %vm2798 = vweird.f32 %v2792
    %vm2799 = vmor %vm2797, %vm2798
    %v2800 = vsel %vm2799, %v2792, %v2796
    %v2801 = vand.u32 2147483647, %v2761
    %vm2802 = vcmp.eq.f32.partialorder %v2801, 8.507059e+37
    %v2803 = vand.u32 %v2761, 2147483648
    %v2804 = vor.u32 1.1754944e-38, %v2803
    %v2805 = vsel %vm2802, %v2804, %v2800
    %v2806 = vmul.f32 1.0, %v2805
    %v2807 = vtanh.pop %v2749
    %v2808 = vmul.f32 %v2791, %v2491
    %v2809 = vmul.f32 %v2776, %v2807
    %v2810 = vadd.f32 %v2808, %v2809
    %v2811 = vtanh.pop %v2810
    %v2812 = vmul.f32 %v2806, %v2811
    %v2813 = vpack.c.bf16 %v2812, %v2812
    %s2814 = scalar_lea.vmem %s4, 28
    %2815 = vst [vmem:[%s2814] sm:$0xf] %v2813
    %2816 = vst [vmem:[#allocation2] sm:$0xff] %v2812
    %2817 = vst [vmem:[#allocation3] sm:$0xff] %v2810
    // Predicated region
    $region26: #{tk_stacked_lstm_forward.2} parent=1 // pred_check
      _
    $region27: #{tk_stacked_lstm_forward.2} parent=1 // pred_check_branch
      %2819 = sbr.rel (0) target = $region29
    $region28: #{tk_stacked_lstm_forward.2} parent=1 // pred_region
      _
    $region29: #{tk_stacked_lstm_forward.2} parent=1 // pred_fallthru
      _
    // Predicated region
    $region30: #{tk_stacked_lstm_forward.2} parent=1 // pred_check
      _
    $region31: #{tk_stacked_lstm_forward.2} parent=1 // pred_check_branch
      %2821 = sbr.rel (0) target = $region33
    $region32: #{tk_stacked_lstm_forward.2} parent=1 // pred_region
      _
    $region33: #{tk_stacked_lstm_forward.2} parent=1 // pred_fallthru
      _
    %2822 = vsyncpa [#allocation6], 1

</llo_original>
